<compile_context>
chip_gen: v7x
topology: tpu7x:2x2x1
jax: 0.10.0
libtpu: 0.0.40
codegen_flags: <defaults>
</compile_context>

<pallas_src>
import functools

import numpy as np

import jax
import jax.numpy as jnp
from jax.experimental import pallas as pl
from jax.experimental.pallas import tpu as pltpu


# ----------------------------- fused Pallas kernel ---------------------------

def _fused_cnn_kernel(x_ref, wb1_ref, bt1_ref, wb2_ref, bt2_ref,
                      wb3_ref, bt3_ref, wb4_ref, bt4_ref,
                      wfc1_ref, bfc1_ref, wfc2_ref, bfc2_ref, o_ref,
                      *, pool_k, pool_stride, pool_channels,
                      images_per_step, rows_per_image, precision):
    f32 = jnp.float32
    s = pool_stride

    def dot(a, b):
        return jnp.dot(a, b, preferred_element_type=f32, precision=precision)

    def tree_sum(parts):
        # Balanced sum of independent matmul partials (keeps MXU ops unchained).
        while len(parts) > 1:
            nxt = [parts[i] + parts[i + 1] for i in range(0, len(parts) - 1, 2)]
            if len(parts) % 2:
                nxt.append(parts[-1])
            parts = nxt
        return parts[0]

    def conv(a, wb_ref, bias_ref, row_stride):
        # a: (rows, lanes) stacked activations; wb_ref: (kh, lanes, wo*cout)
        # packed block weight (kw/cin structure and any column downsample are
        # folded in).  Row downsampling from a preceding pool is folded into the
        # tap offsets (row_stride): all slices are static & unit-stride.
        kh = wb_ref.shape[0]
        m = a.shape[0] - (kh - 1) * row_stride
        parts = [dot(a[di * row_stride:di * row_stride + m, :], wb_ref[di])
                 for di in range(kh)]
        return tree_sum(parts) + bias_ref[...]

    def pool_rowmax(a, row_stride):
        # Sliding row max (no downsample: the stride is folded downstream).
        m = a.shape[0] - (pool_k - 1) * row_stride
        r = a[0:m, :]
        for d in range(1, pool_k):
            r = jnp.maximum(r, a[d * row_stride:d * row_stride + m, :])
        return r

    def pool_colmax(a, c):
        # Sliding max over channel-minor column groups (no downsample: the
        # column stride is folded into the next layer's packed weights).
        groups = a.shape[1] // c
        wg = groups - (pool_k - 1)
        r = a[:, 0:wg * c]
        for d in range(1, pool_k):
            r = jnp.maximum(r, a[:, d * c:(d + wg) * c])
        return r

    a = x_ref[...]                                            # (B*32, 128)
    a = conv(a, wb1_ref, bt1_ref, 1)                          # (B*32- 2, 240)
    a = conv(a, wb2_ref, bt2_ref, 1)                          # (B*32- 4, 224)
    a = pool_colmax(pool_rowmax(a, 1), pool_channels[0])      # (B*32- 6, 208)
    a = conv(a, wb3_ref, bt3_ref, s)                          # (B*32-10,  88)
    a = conv(a, wb4_ref, bt4_ref, s)                          # (B*32-14,  72)
    a = pool_colmax(pool_rowmax(a, s), pool_channels[1])      # (B*32-18,  56)

    # fc1 over the stacked rows (row stride s*s after two pools): hp independent
    # big-M dots, tree-summed.  Valid result for image i sits at row i*H.
    hp = wfc1_ref.shape[0]
    m = a.shape[0] - (hp - 1) * s * s
    parts = [dot(a[h * s * s:h * s * s + m, :], wfc1_ref[h]) for h in range(hp)]
    h1 = tree_sum(parts) + bfc1_ref[...]                      # (m, fc1_out)

    rows = jnp.concatenate(
        [h1[i * rows_per_image:i * rows_per_image + 1, :]
         for i in range(images_per_step)], axis=0)            # (B, fc1_out)
    rows = jnp.maximum(rows, 0.0)                             # ReLU
    o_ref[0] = dot(rows, wfc2_ref[...]) + bfc2_ref[...]       # (B, num_classes)


# ------------------------- host-side weight packing --------------------------

def _pack_conv(w_oihw, in_lanes, gs, wo):
    """(cout,cin,kh,kw) torch conv weight -> (kh, in_lanes, wo*cout) block weight.

    Block for output column `o`, kernel offset (di, dj), sits at rows
    [(o+dj)*gs*cin : +cin] and cols [o*cout : +cout]. `gs` is the column-group
    stride of the stored input layout (2 right after a stride-2 maxpool)."""
    cout, cin, kh, kw = w_oihw.shape
    wt = np.transpose(np.asarray(w_oihw, np.float32), (2, 3, 1, 0))  # (kh,kw,cin,cout)
    packed = np.zeros((kh, in_lanes, wo * cout), np.float32)
    for di in range(kh):
        for dj in range(kw):
            blk = wt[di, dj]
            for o in range(wo):
                r = (o + dj) * gs * cin
                assert r + cin <= in_lanes, "conv packing out of lane bounds"
                packed[di, r:r + cin, o * cout:(o + 1) * cout] = blk
    return packed


def _pack_fc1(fc1_w, hp, wp, c, in_lanes, gs):
    """torch fc1 weight (out, c*hp*wp) over NCHW flatten -> (hp, in_lanes, out)."""
    w = np.asarray(fc1_w, np.float32)
    out_features = w.shape[0]
    assert w.shape[1] == c * hp * wp, "fc1 input_size mismatch with conv trace"
    packed = np.zeros((hp, in_lanes, out_features), np.float32)
    for hh in range(hp):
        for ww in range(wp):
            for ch in range(c):
                src = ch * hp * wp + hh * wp + ww            # torch NCHW flatten
                lane = ww * gs * c + ch
                assert lane < in_lanes, "fc1 packing out of lane bounds"
                packed[hh, lane, :] = w[:, src]
    return packed


def pack_params(params, *, in_channels, height, width, size_kernel, stride_size):
    """One-time host-side packing of torch-layout params into kernel operands."""
    k, s = size_kernel, stride_size
    p = {}

    def do_conv(idx, h, w, cin, lanes, gs):
        wt = np.asarray(params[f"w{idx}"], np.float32)        # (cout, cin, kh, kw)
        cout, wcin, kh, kw = wt.shape
        assert wcin == cin and kh == k and kw == k, f"conv{idx} weight shape mismatch"
        assert h >= kh and w >= kw, f"conv{idx}: feature map smaller than kernel"
        assert lanes >= (w - 1) * gs * cin + cin, f"conv{idx}: lane layout mismatch"
        ho, wo = h - kh + 1, w - kw + 1
        p[f"wb{idx}"] = _pack_conv(wt, lanes, gs, wo)
        p[f"bt{idx}"] = np.tile(np.asarray(params[f"b{idx}"], np.float32), wo)[None, :]
        return ho, wo, cout, wo * cout, 1                     # dense output lanes

    def do_pool(h, w, cin, lanes, gs):
        # Sliding max only; the stride-s row/column downsample is folded into
        # the NEXT layer (row tap offsets / packed weight lane offsets).
        assert gs == 1 and lanes == w * cin, "pool expects dense channel-minor lanes"
        assert h >= k and w >= k, "pool window larger than feature map"
        hp_, wp_ = (h - k) // s + 1, (w - k) // s + 1
        return hp_, wp_, cin, (w - k + 1) * cin, s

    h, w, cin, lanes, gs = height, width, in_channels, width * in_channels, 1
    h, w, cin, lanes, gs = do_conv(1, h, w, cin, lanes, gs)
    h, w, cin, lanes, gs = do_conv(2, h, w, cin, lanes, gs)
    h, w, cin, lanes, gs = do_pool(h, w, cin, lanes, gs)
    h, w, cin, lanes, gs = do_conv(3, h, w, cin, lanes, gs)
    h, w, cin, lanes, gs = do_conv(4, h, w, cin, lanes, gs)
    h, w, cin, lanes, gs = do_pool(h, w, cin, lanes, gs)

    p["wfc1"] = _pack_fc1(params["fc1_w"], h, w, cin, lanes, gs)
    p["bfc1"] = np.asarray(params["fc1_b"], np.float32)[None, :]
    p["wfc2"] = np.ascontiguousarray(np.asarray(params["fc2_w"], np.float32).T)
    p["bfc2"] = np.asarray(params["fc2_b"], np.float32)[None, :]
    return {name: jnp.asarray(v) for name, v in p.items()}


# ------------------------------- full forward --------------------------------

def conv_neural_net_forward(x_nchw, packed, *, pool_k, pool_stride, pool_channels,
                            images_per_step=None, precision=None, interpret=False):
    N, C, H, W = x_nchw.shape
    B = images_per_step if images_per_step is not None else max(1, N // 2)
    assert N % B == 0, "batch must be divisible by images_per_step"
    num_steps = N // B
    assert (B * H) % 8 == 0 or num_steps == 1, "row block must be 8-aligned"
    num_classes = packed["wfc2"].shape[1]

    # Only layout glue on the raw input: NCHW -> row-stacked (N*H, W*C) with
    # channel-minor lanes.  No im2col / window materialization in HBM.
    x2d = jnp.transpose(x_nchw, (0, 2, 3, 1)).reshape(N * H, W * C)

    weights = (packed["wb1"], packed["bt1"], packed["wb2"], packed["bt2"],
               packed["wb3"], packed["bt3"], packed["wb4"], packed["bt4"],
               packed["wfc1"], packed["bfc1"], packed["wfc2"], packed["bfc2"])

    def _const_spec(a):
        # Grid-invariant index_map: weights are DMA'd once and stay VMEM-resident.
        return pl.BlockSpec(a.shape, lambda b: (0,) * a.ndim)

    kernel = functools.partial(
        _fused_cnn_kernel, pool_k=pool_k, pool_stride=pool_stride,
        pool_channels=pool_channels, images_per_step=B, rows_per_image=H,
        precision=precision)

    call_kwargs = {}
    if not interpret:
        # >=2 "parallel" steps keep both v7x TensorCores busy; harmless on
        # v5e/v6e (single TC) where images_per_step = N is the best choice.
        call_kwargs["compiler_params"] = pltpu.CompilerParams(
            dimension_semantics=("parallel",))

    out = pl.pallas_call(
        kernel,
        out_shape=jax.ShapeDtypeStruct((num_steps, B, num_classes), jnp.float32),
        grid=(num_steps,),
        in_specs=[pl.BlockSpec((B * H, W * C), lambda b: (b, 0))]
                 + [_const_spec(a) for a in weights],
        out_specs=pl.BlockSpec((1, B, num_classes), lambda b: (b, 0, 0)),
        interpret=interpret,
        **call_kwargs,
    )(x2d, *weights)
    return out.reshape(N, num_classes)


# --------------------------- pure-JAX reference -------------------------------

def reference_forward(x_nchw, params, *, pool_k, pool_stride, precision=None):
    def conv(x, w, b):
        y = jax.lax.conv_general_dilated(
            x, w, window_strides=(1, 1), padding="VALID",
            dimension_numbers=("NCHW", "OIHW", "NCHW"), precision=precision)
        return y + b[None, :, None, None]

    def pool(x):
        return jax.lax.reduce_window(
            x, -jnp.inf, jax.lax.max, (1, 1, pool_k, pool_k),
            (1, 1, pool_stride, pool_stride), "VALID")

    y = conv(x_nchw, params["w1"], params["b1"])
    y = conv(y, params["w2"], params["b2"])
    y = pool(y)
    y = conv(y, params["w3"], params["b3"])
    y = conv(y, params["w4"], params["b4"])
    y = pool(y)
    y = y.reshape(y.shape[0], -1)                      # torch.flatten(out, 1) on NCHW
    y = jnp.maximum(jnp.dot(y, params["fc1_w"].T, precision=precision)
                    + params["fc1_b"], 0.0)
    return jnp.dot(y, params["fc2_w"].T, precision=precision) + params["fc2_b"]


# ----------------------------------- main -------------------------------------

if __name__ == "__main__":
    # Module hyper-parameters. Spatial=32 so both 3x3 maxpools are valid:
    #   32 ->30 ->28 ->pool 13 ->11 ->9 ->pool 4   =>  input_size = 8*4*4 = 128
    imgs_channels = 4     # in_channels
    taille_image = 8      # conv1 out_channels
    size_kernel = 3
    taille_image2 = 8     # conv2 out_channels
    stride_size = 2
    taille_image3 = 8     # conv3 out_channels
    taille_image4 = 8     # conv4 out_channels
    output_size = 32
    num_classes = 10
    batch, H, W = 4, 32, 32
    images_per_step = 2   # grid = 2 "parallel" steps -> both v7x TCs busy.
                          # On v5e/v6e (single TC) use images_per_step = batch.
    input_size = taille_image4 * 4 * 4

    key = jax.random.PRNGKey(0)
    ks = jax.random.split(key, 13)

    def init(k, shape, fan_in):
        bound = 1.0 / jnp.sqrt(fan_in)
        return jax.random.uniform(k, shape, jnp.float32, -bound, bound)

    kk = size_kernel * size_kernel
    params = {
        "w1": init(ks[0], (taille_image, imgs_channels, size_kernel, size_kernel),
                   imgs_channels * kk),
        "b1": init(ks[1], (taille_image,), imgs_channels * kk),
        "w2": init(ks[2], (taille_image2, taille_image, size_kernel, size_kernel),
                   taille_image * kk),
        "b2": init(ks[3], (taille_image2,), taille_image * kk),
        "w3": init(ks[4], (taille_image3, taille_image2, size_kernel, size_kernel),
                   taille_image2 * kk),
        "b3": init(ks[5], (taille_image3,), taille_image2 * kk),
        "w4": init(ks[6], (taille_image4, taille_image3, size_kernel, size_kernel),
                   taille_image3 * kk),
        "b4": init(ks[7], (taille_image4,), taille_image3 * kk),
        "fc1_w": init(ks[8], (output_size, input_size), input_size),
        "fc1_b": init(ks[9], (output_size,), input_size),
        "fc2_w": init(ks[10], (num_classes, output_size), output_size),
        "fc2_b": init(ks[11], (num_classes,), output_size),
    }
    x = jax.random.normal(ks[12], (batch, imgs_channels, H, W), jnp.float32)

    # One-time host-side packing (outside the jitted forward).
    packed = pack_params(params, in_channels=imgs_channels, height=H, width=W,
                         size_kernel=size_kernel, stride_size=stride_size)

    fwd = jax.jit(functools.partial(
        conv_neural_net_forward, pool_k=size_kernel, pool_stride=stride_size,
        pool_channels=(taille_image2, taille_image4),
        images_per_step=images_per_step))
    out = fwd(x, packed)
    jax.block_until_ready(out)
    assert out.shape == (batch, num_classes) and out.dtype == jnp.float32

    # 1) Default-precision TPU run vs default-precision reference (loose tol:
    #    both paths use the TPU's reduced-precision f32 MXU matmuls).
    ref = jax.jit(functools.partial(reference_forward, pool_k=size_kernel,
                                    pool_stride=stride_size))(x, params)
    np.testing.assert_allclose(np.asarray(out), np.asarray(ref),
                               rtol=2e-2, atol=2e-2)

    # 2) Packing-exactness check: HIGHEST precision on both sides, Pallas kernel
    #    run in interpret mode, tight tolerance.  Proves _pack_conv/_pack_fc1 and
    #    the folded pool strides reproduce the PyTorch forward exactly.
    hi = jax.lax.Precision.HIGHEST
    out_hi = conv_neural_net_forward(
        x, packed, pool_k=size_kernel, pool_stride=stride_size,
        pool_channels=(taille_image2, taille_image4),
        images_per_step=images_per_step, precision=hi, interpret=True)
    ref_hi = reference_forward(x, params, pool_k=size_kernel,
                               pool_stride=stride_size, precision=hi)
    np.testing.assert_allclose(np.asarray(out_hi), np.asarray(ref_hi),
                               rtol=1e-5, atol=1e-5)
    print("KERNEL_OK")
</pallas_src>

<mosaic_0001>
module attributes {stable_mosaic.version = 11 : i64} {
  func.func @_fused_cnn_kernel(%arg0: i32, %arg1: memref<64x128xf32, #tpu.memory_space<vmem>>, %arg2: memref<3x128x240xf32, #tpu.memory_space<vmem>>, %arg3: memref<1x240xf32, #tpu.memory_space<vmem>>, %arg4: memref<3x240x224xf32, #tpu.memory_space<vmem>>, %arg5: memref<1x224xf32, #tpu.memory_space<vmem>>, %arg6: memref<3x208x88xf32, #tpu.memory_space<vmem>>, %arg7: memref<1x88xf32, #tpu.memory_space<vmem>>, %arg8: memref<3x88x72xf32, #tpu.memory_space<vmem>>, %arg9: memref<1x72xf32, #tpu.memory_space<vmem>>, %arg10: memref<4x56x32xf32, #tpu.memory_space<vmem>>, %arg11: memref<1x32xf32, #tpu.memory_space<vmem>>, %arg12: memref<32x10xf32, #tpu.memory_space<vmem>>, %arg13: memref<1x10xf32, #tpu.memory_space<vmem>>, %arg14: memref<1x2x10xf32, #tpu.memory_space<vmem>>) attributes {dimension_semantics = [#tpu.dimension_semantics<parallel>], iteration_bounds = array<i64: 2>, scalar_prefetch = 0 : i64, scratch_operands = 0 : i64, tpu.core_type = #tpu.core_type<tc>, window_params = [{transform_indices = @transform_0, window_bounds = array<i64: 64, 128>}, {pipeline_mode = #tpu.pipeline_mode<synchronous>, transform_indices = @transform_1, window_bounds = array<i64: 3, 128, 240>}, {pipeline_mode = #tpu.pipeline_mode<synchronous>, transform_indices = @transform_2, window_bounds = array<i64: 1, 240>}, {pipeline_mode = #tpu.pipeline_mode<synchronous>, transform_indices = @transform_3, window_bounds = array<i64: 3, 240, 224>}, {pipeline_mode = #tpu.pipeline_mode<synchronous>, transform_indices = @transform_4, window_bounds = array<i64: 1, 224>}, {pipeline_mode = #tpu.pipeline_mode<synchronous>, transform_indices = @transform_5, window_bounds = array<i64: 3, 208, 88>}, {pipeline_mode = #tpu.pipeline_mode<synchronous>, transform_indices = @transform_6, window_bounds = array<i64: 1, 88>}, {pipeline_mode = #tpu.pipeline_mode<synchronous>, transform_indices = @transform_7, window_bounds = array<i64: 3, 88, 72>}, {pipeline_mode = #tpu.pipeline_mode<synchronous>, transform_indices = @transform_8, window_bounds = array<i64: 1, 72>}, {pipeline_mode = #tpu.pipeline_mode<synchronous>, transform_indices = @transform_9, window_bounds = array<i64: 4, 56, 32>}, {pipeline_mode = #tpu.pipeline_mode<synchronous>, transform_indices = @transform_10, window_bounds = array<i64: 1, 32>}, {pipeline_mode = #tpu.pipeline_mode<synchronous>, transform_indices = @transform_11, window_bounds = array<i64: 32, 10>}, {pipeline_mode = #tpu.pipeline_mode<synchronous>, transform_indices = @transform_12, window_bounds = array<i64: 1, 10>}, {transform_indices = @transform_13, window_bounds = array<i64: 1, 2, 10>}]} {
    %c0 = arith.constant 0 : index
    %c0_0 = arith.constant 0 : index
    %0 = vector.load %arg1[%c0, %c0_0] : memref<64x128xf32, #tpu.memory_space<vmem>>, vector<64x128xf32>
    %1 = vector.extract_strided_slice %0 {offsets = [0, 0], sizes = [62, 128], strides = [1, 1]} : vector<64x128xf32> to vector<62x128xf32>
    %c0_1 = arith.constant 0 : index
    %c0_2 = arith.constant 0 : index
    %c0_3 = arith.constant 0 : index
    %2 = vector.load %arg2[%c0_1, %c0_2, %c0_3] : memref<3x128x240xf32, #tpu.memory_space<vmem>>, vector<1x128x240xf32>
    %3 = vector.shape_cast %2 : vector<1x128x240xf32> to vector<128x240xf32>
    %cst = arith.constant dense<0.000000e+00> : vector<62x240xf32>
    %4 = tpu.matmul %1, %3, %cst {dimension_numbers = #tpu.dot_dimension_numbers<[1], [0], [0], [1], [0, 0, 1, 1], [], []>} : vector<62x128xf32>, vector<128x240xf32>, vector<62x240xf32> -> vector<62x240xf32>
    %5 = vector.extract_strided_slice %0 {offsets = [1, 0], sizes = [62, 128], strides = [1, 1]} : vector<64x128xf32> to vector<62x128xf32>
    %c1 = arith.constant 1 : index
    %c0_4 = arith.constant 0 : index
    %c0_5 = arith.constant 0 : index
    %6 = vector.load %arg2[%c1, %c0_4, %c0_5] : memref<3x128x240xf32, #tpu.memory_space<vmem>>, vector<1x128x240xf32>
    %7 = vector.shape_cast %6 : vector<1x128x240xf32> to vector<128x240xf32>
    %cst_6 = arith.constant dense<0.000000e+00> : vector<62x240xf32>
    %8 = tpu.matmul %5, %7, %cst_6 {dimension_numbers = #tpu.dot_dimension_numbers<[1], [0], [0], [1], [0, 0, 1, 1], [], []>} : vector<62x128xf32>, vector<128x240xf32>, vector<62x240xf32> -> vector<62x240xf32>
    %9 = vector.extract_strided_slice %0 {offsets = [2, 0], sizes = [62, 128], strides = [1, 1]} : vector<64x128xf32> to vector<62x128xf32>
    %c2 = arith.constant 2 : index
    %c0_7 = arith.constant 0 : index
    %c0_8 = arith.constant 0 : index
    %10 = vector.load %arg2[%c2, %c0_7, %c0_8] : memref<3x128x240xf32, #tpu.memory_space<vmem>>, vector<1x128x240xf32>
    %11 = vector.shape_cast %10 : vector<1x128x240xf32> to vector<128x240xf32>
    %cst_9 = arith.constant dense<0.000000e+00> : vector<62x240xf32>
    %12 = tpu.matmul %9, %11, %cst_9 {dimension_numbers = #tpu.dot_dimension_numbers<[1], [0], [0], [1], [0, 0, 1, 1], [], []>} : vector<62x128xf32>, vector<128x240xf32>, vector<62x240xf32> -> vector<62x240xf32>
    %13 = arith.addf %4, %8 : vector<62x240xf32>
    %14 = arith.addf %13, %12 : vector<62x240xf32>
    %c0_10 = arith.constant 0 : index
    %c0_11 = arith.constant 0 : index
    %15 = vector.load %arg3[%c0_10, %c0_11] : memref<1x240xf32, #tpu.memory_space<vmem>>, vector<1x240xf32>
    %16 = vector.broadcast %15 : vector<1x240xf32> to vector<62x240xf32>
    %17 = arith.addf %14, %16 : vector<62x240xf32>
    %18 = vector.extract_strided_slice %17 {offsets = [0, 0], sizes = [60, 240], strides = [1, 1]} : vector<62x240xf32> to vector<60x240xf32>
    %c0_12 = arith.constant 0 : index
    %c0_13 = arith.constant 0 : index
    %c0_14 = arith.constant 0 : index
    %19 = vector.load %arg4[%c0_12, %c0_13, %c0_14] : memref<3x240x224xf32, #tpu.memory_space<vmem>>, vector<1x240x224xf32>
    %20 = vector.shape_cast %19 : vector<1x240x224xf32> to vector<240x224xf32>
    %cst_15 = arith.constant dense<0.000000e+00> : vector<60x224xf32>
    %21 = tpu.matmul %18, %20, %cst_15 {dimension_numbers = #tpu.dot_dimension_numbers<[1], [0], [0], [1], [0, 0, 1, 1], [], []>} : vector<60x240xf32>, vector<240x224xf32>, vector<60x224xf32> -> vector<60x224xf32>
    %22 = vector.extract_strided_slice %17 {offsets = [1, 0], sizes = [60, 240], strides = [1, 1]} : vector<62x240xf32> to vector<60x240xf32>
    %c1_16 = arith.constant 1 : index
    %c0_17 = arith.constant 0 : index
    %c0_18 = arith.constant 0 : index
    %23 = vector.load %arg4[%c1_16, %c0_17, %c0_18] : memref<3x240x224xf32, #tpu.memory_space<vmem>>, vector<1x240x224xf32>
    %24 = vector.shape_cast %23 : vector<1x240x224xf32> to vector<240x224xf32>
    %cst_19 = arith.constant dense<0.000000e+00> : vector<60x224xf32>
    %25 = tpu.matmul %22, %24, %cst_19 {dimension_numbers = #tpu.dot_dimension_numbers<[1], [0], [0], [1], [0, 0, 1, 1], [], []>} : vector<60x240xf32>, vector<240x224xf32>, vector<60x224xf32> -> vector<60x224xf32>
    %26 = vector.extract_strided_slice %17 {offsets = [2, 0], sizes = [60, 240], strides = [1, 1]} : vector<62x240xf32> to vector<60x240xf32>
    %c2_20 = arith.constant 2 : index
    %c0_21 = arith.constant 0 : index
    %c0_22 = arith.constant 0 : index
    %27 = vector.load %arg4[%c2_20, %c0_21, %c0_22] : memref<3x240x224xf32, #tpu.memory_space<vmem>>, vector<1x240x224xf32>
    %28 = vector.shape_cast %27 : vector<1x240x224xf32> to vector<240x224xf32>
    %cst_23 = arith.constant dense<0.000000e+00> : vector<60x224xf32>
    %29 = tpu.matmul %26, %28, %cst_23 {dimension_numbers = #tpu.dot_dimension_numbers<[1], [0], [0], [1], [0, 0, 1, 1], [], []>} : vector<60x240xf32>, vector<240x224xf32>, vector<60x224xf32> -> vector<60x224xf32>
    %30 = arith.addf %21, %25 : vector<60x224xf32>
    %31 = arith.addf %30, %29 : vector<60x224xf32>
    %c0_24 = arith.constant 0 : index
    %c0_25 = arith.constant 0 : index
    %32 = vector.load %arg5[%c0_24, %c0_25] : memref<1x224xf32, #tpu.memory_space<vmem>>, vector<1x224xf32>
    %33 = vector.broadcast %32 : vector<1x224xf32> to vector<60x224xf32>
    %34 = arith.addf %31, %33 : vector<60x224xf32>
    %35 = vector.extract_strided_slice %34 {offsets = [0, 0], sizes = [58, 224], strides = [1, 1]} : vector<60x224xf32> to vector<58x224xf32>
    %36 = vector.extract_strided_slice %34 {offsets = [1, 0], sizes = [58, 224], strides = [1, 1]} : vector<60x224xf32> to vector<58x224xf32>
    %37 = arith.maximumf %35, %36 : vector<58x224xf32>
    %38 = vector.extract_strided_slice %34 {offsets = [2, 0], sizes = [58, 224], strides = [1, 1]} : vector<60x224xf32> to vector<58x224xf32>
    %39 = arith.maximumf %37, %38 : vector<58x224xf32>
    %40 = vector.extract_strided_slice %39 {offsets = [0, 0], sizes = [58, 208], strides = [1, 1]} : vector<58x224xf32> to vector<58x208xf32>
    %41 = vector.extract_strided_slice %39 {offsets = [0, 8], sizes = [58, 208], strides = [1, 1]} : vector<58x224xf32> to vector<58x208xf32>
    %42 = arith.maximumf %40, %41 : vector<58x208xf32>
    %43 = vector.extract_strided_slice %39 {offsets = [0, 16], sizes = [58, 208], strides = [1, 1]} : vector<58x224xf32> to vector<58x208xf32>
    %44 = arith.maximumf %42, %43 : vector<58x208xf32>
    %45 = vector.extract_strided_slice %44 {offsets = [0, 0], sizes = [54, 208], strides = [1, 1]} : vector<58x208xf32> to vector<54x208xf32>
    %c0_26 = arith.constant 0 : index
    %c0_27 = arith.constant 0 : index
    %c0_28 = arith.constant 0 : index
    %46 = vector.load %arg6[%c0_26, %c0_27, %c0_28] : memref<3x208x88xf32, #tpu.memory_space<vmem>>, vector<1x208x88xf32>
    %47 = vector.shape_cast %46 : vector<1x208x88xf32> to vector<208x88xf32>
    %cst_29 = arith.constant dense<0.000000e+00> : vector<54x88xf32>
    %48 = tpu.matmul %45, %47, %cst_29 {dimension_numbers = #tpu.dot_dimension_numbers<[1], [0], [0], [1], [0, 0, 1, 1], [], []>} : vector<54x208xf32>, vector<208x88xf32>, vector<54x88xf32> -> vector<54x88xf32>
    %49 = vector.extract_strided_slice %44 {offsets = [2, 0], sizes = [54, 208], strides = [1, 1]} : vector<58x208xf32> to vector<54x208xf32>
    %c1_30 = arith.constant 1 : index
    %c0_31 = arith.constant 0 : index
    %c0_32 = arith.constant 0 : index
    %50 = vector.load %arg6[%c1_30, %c0_31, %c0_32] : memref<3x208x88xf32, #tpu.memory_space<vmem>>, vector<1x208x88xf32>
    %51 = vector.shape_cast %50 : vector<1x208x88xf32> to vector<208x88xf32>
    %cst_33 = arith.constant dense<0.000000e+00> : vector<54x88xf32>
    %52 = tpu.matmul %49, %51, %cst_33 {dimension_numbers = #tpu.dot_dimension_numbers<[1], [0], [0], [1], [0, 0, 1, 1], [], []>} : vector<54x208xf32>, vector<208x88xf32>, vector<54x88xf32> -> vector<54x88xf32>
    %53 = vector.extract_strided_slice %44 {offsets = [4, 0], sizes = [54, 208], strides = [1, 1]} : vector<58x208xf32> to vector<54x208xf32>
    %c2_34 = arith.constant 2 : index
    %c0_35 = arith.constant 0 : index
    %c0_36 = arith.constant 0 : index
    %54 = vector.load %arg6[%c2_34, %c0_35, %c0_36] : memref<3x208x88xf32, #tpu.memory_space<vmem>>, vector<1x208x88xf32>
    %55 = vector.shape_cast %54 : vector<1x208x88xf32> to vector<208x88xf32>
    %cst_37 = arith.constant dense<0.000000e+00> : vector<54x88xf32>
    %56 = tpu.matmul %53, %55, %cst_37 {dimension_numbers = #tpu.dot_dimension_numbers<[1], [0], [0], [1], [0, 0, 1, 1], [], []>} : vector<54x208xf32>, vector<208x88xf32>, vector<54x88xf32> -> vector<54x88xf32>
    %57 = arith.addf %48, %52 : vector<54x88xf32>
    %58 = arith.addf %57, %56 : vector<54x88xf32>
    %c0_38 = arith.constant 0 : index
    %c0_39 = arith.constant 0 : index
    %59 = vector.load %arg7[%c0_38, %c0_39] : memref<1x88xf32, #tpu.memory_space<vmem>>, vector<1x88xf32>
    %60 = vector.broadcast %59 : vector<1x88xf32> to vector<54x88xf32>
    %61 = arith.addf %58, %60 : vector<54x88xf32>
    %62 = vector.extract_strided_slice %61 {offsets = [0, 0], sizes = [50, 88], strides = [1, 1]} : vector<54x88xf32> to vector<50x88xf32>
    %c0_40 = arith.constant 0 : index
    %c0_41 = arith.constant 0 : index
    %c0_42 = arith.constant 0 : index
    %63 = vector.load %arg8[%c0_40, %c0_41, %c0_42] : memref<3x88x72xf32, #tpu.memory_space<vmem>>, vector<1x88x72xf32>
    %64 = vector.shape_cast %63 : vector<1x88x72xf32> to vector<88x72xf32>
    %cst_43 = arith.constant dense<0.000000e+00> : vector<50x72xf32>
    %65 = tpu.matmul %62, %64, %cst_43 {dimension_numbers = #tpu.dot_dimension_numbers<[1], [0], [0], [1], [0, 0, 1, 1], [], []>} : vector<50x88xf32>, vector<88x72xf32>, vector<50x72xf32> -> vector<50x72xf32>
    %66 = vector.extract_strided_slice %61 {offsets = [2, 0], sizes = [50, 88], strides = [1, 1]} : vector<54x88xf32> to vector<50x88xf32>
    %c1_44 = arith.constant 1 : index
    %c0_45 = arith.constant 0 : index
    %c0_46 = arith.constant 0 : index
    %67 = vector.load %arg8[%c1_44, %c0_45, %c0_46] : memref<3x88x72xf32, #tpu.memory_space<vmem>>, vector<1x88x72xf32>
    %68 = vector.shape_cast %67 : vector<1x88x72xf32> to vector<88x72xf32>
    %cst_47 = arith.constant dense<0.000000e+00> : vector<50x72xf32>
    %69 = tpu.matmul %66, %68, %cst_47 {dimension_numbers = #tpu.dot_dimension_numbers<[1], [0], [0], [1], [0, 0, 1, 1], [], []>} : vector<50x88xf32>, vector<88x72xf32>, vector<50x72xf32> -> vector<50x72xf32>
    %70 = vector.extract_strided_slice %61 {offsets = [4, 0], sizes = [50, 88], strides = [1, 1]} : vector<54x88xf32> to vector<50x88xf32>
    %c2_48 = arith.constant 2 : index
    %c0_49 = arith.constant 0 : index
    %c0_50 = arith.constant 0 : index
    %71 = vector.load %arg8[%c2_48, %c0_49, %c0_50] : memref<3x88x72xf32, #tpu.memory_space<vmem>>, vector<1x88x72xf32>
    %72 = vector.shape_cast %71 : vector<1x88x72xf32> to vector<88x72xf32>
    %cst_51 = arith.constant dense<0.000000e+00> : vector<50x72xf32>
    %73 = tpu.matmul %70, %72, %cst_51 {dimension_numbers = #tpu.dot_dimension_numbers<[1], [0], [0], [1], [0, 0, 1, 1], [], []>} : vector<50x88xf32>, vector<88x72xf32>, vector<50x72xf32> -> vector<50x72xf32>
    %74 = arith.addf %65, %69 : vector<50x72xf32>
    %75 = arith.addf %74, %73 : vector<50x72xf32>
    %c0_52 = arith.constant 0 : index
    %c0_53 = arith.constant 0 : index
    %76 = vector.load %arg9[%c0_52, %c0_53] : memref<1x72xf32, #tpu.memory_space<vmem>>, vector<1x72xf32>
    %77 = vector.broadcast %76 : vector<1x72xf32> to vector<50x72xf32>
    %78 = arith.addf %75, %77 : vector<50x72xf32>
    %79 = vector.extract_strided_slice %78 {offsets = [0, 0], sizes = [46, 72], strides = [1, 1]} : vector<50x72xf32> to vector<46x72xf32>
    %80 = vector.extract_strided_slice %78 {offsets = [2, 0], sizes = [46, 72], strides = [1, 1]} : vector<50x72xf32> to vector<46x72xf32>
    %81 = arith.maximumf %79, %80 : vector<46x72xf32>
    %82 = vector.extract_strided_slice %78 {offsets = [4, 0], sizes = [46, 72], strides = [1, 1]} : vector<50x72xf32> to vector<46x72xf32>
    %83 = arith.maximumf %81, %82 : vector<46x72xf32>
    %84 = vector.extract_strided_slice %83 {offsets = [0, 0], sizes = [46, 56], strides = [1, 1]} : vector<46x72xf32> to vector<46x56xf32>
    %85 = vector.extract_strided_slice %83 {offsets = [0, 8], sizes = [46, 56], strides = [1, 1]} : vector<46x72xf32> to vector<46x56xf32>
    %86 = arith.maximumf %84, %85 : vector<46x56xf32>
    %87 = vector.extract_strided_slice %83 {offsets = [0, 16], sizes = [46, 56], strides = [1, 1]} : vector<46x72xf32> to vector<46x56xf32>
    %88 = arith.maximumf %86, %87 : vector<46x56xf32>
    %89 = vector.extract_strided_slice %88 {offsets = [0, 0], sizes = [34, 56], strides = [1, 1]} : vector<46x56xf32> to vector<34x56xf32>
    %c0_54 = arith.constant 0 : index
    %c0_55 = arith.constant 0 : index
    %c0_56 = arith.constant 0 : index
    %90 = vector.load %arg10[%c0_54, %c0_55, %c0_56] : memref<4x56x32xf32, #tpu.memory_space<vmem>>, vector<1x56x32xf32>
    %91 = vector.shape_cast %90 : vector<1x56x32xf32> to vector<56x32xf32>
    %cst_57 = arith.constant dense<0.000000e+00> : vector<34x32xf32>
    %92 = tpu.matmul %89, %91, %cst_57 {dimension_numbers = #tpu.dot_dimension_numbers<[1], [0], [0], [1], [0, 0, 1, 1], [], []>} : vector<34x56xf32>, vector<56x32xf32>, vector<34x32xf32> -> vector<34x32xf32>
    %93 = vector.extract_strided_slice %88 {offsets = [4, 0], sizes = [34, 56], strides = [1, 1]} : vector<46x56xf32> to vector<34x56xf32>
    %c1_58 = arith.constant 1 : index
    %c0_59 = arith.constant 0 : index
    %c0_60 = arith.constant 0 : index
    %94 = vector.load %arg10[%c1_58, %c0_59, %c0_60] : memref<4x56x32xf32, #tpu.memory_space<vmem>>, vector<1x56x32xf32>
    %95 = vector.shape_cast %94 : vector<1x56x32xf32> to vector<56x32xf32>
    %cst_61 = arith.constant dense<0.000000e+00> : vector<34x32xf32>
    %96 = tpu.matmul %93, %95, %cst_61 {dimension_numbers = #tpu.dot_dimension_numbers<[1], [0], [0], [1], [0, 0, 1, 1], [], []>} : vector<34x56xf32>, vector<56x32xf32>, vector<34x32xf32> -> vector<34x32xf32>
    %97 = vector.extract_strided_slice %88 {offsets = [8, 0], sizes = [34, 56], strides = [1, 1]} : vector<46x56xf32> to vector<34x56xf32>
    %c2_62 = arith.constant 2 : index
    %c0_63 = arith.constant 0 : index
    %c0_64 = arith.constant 0 : index
    %98 = vector.load %arg10[%c2_62, %c0_63, %c0_64] : memref<4x56x32xf32, #tpu.memory_space<vmem>>, vector<1x56x32xf32>
    %99 = vector.shape_cast %98 : vector<1x56x32xf32> to vector<56x32xf32>
    %cst_65 = arith.constant dense<0.000000e+00> : vector<34x32xf32>
    %100 = tpu.matmul %97, %99, %cst_65 {dimension_numbers = #tpu.dot_dimension_numbers<[1], [0], [0], [1], [0, 0, 1, 1], [], []>} : vector<34x56xf32>, vector<56x32xf32>, vector<34x32xf32> -> vector<34x32xf32>
    %101 = vector.extract_strided_slice %88 {offsets = [12, 0], sizes = [34, 56], strides = [1, 1]} : vector<46x56xf32> to vector<34x56xf32>
    %c3 = arith.constant 3 : index
    %c0_66 = arith.constant 0 : index
    %c0_67 = arith.constant 0 : index
    %102 = vector.load %arg10[%c3, %c0_66, %c0_67] : memref<4x56x32xf32, #tpu.memory_space<vmem>>, vector<1x56x32xf32>
    %103 = vector.shape_cast %102 : vector<1x56x32xf32> to vector<56x32xf32>
    %cst_68 = arith.constant dense<0.000000e+00> : vector<34x32xf32>
    %104 = tpu.matmul %101, %103, %cst_68 {dimension_numbers = #tpu.dot_dimension_numbers<[1], [0], [0], [1], [0, 0, 1, 1], [], []>} : vector<34x56xf32>, vector<56x32xf32>, vector<34x32xf32> -> vector<34x32xf32>
    %105 = arith.addf %92, %96 : vector<34x32xf32>
    %106 = arith.addf %100, %104 : vector<34x32xf32>
    %107 = arith.addf %105, %106 : vector<34x32xf32>
    %c0_69 = arith.constant 0 : index
    %c0_70 = arith.constant 0 : index
    %108 = vector.load %arg11[%c0_69, %c0_70] : memref<1x32xf32, #tpu.memory_space<vmem>>, vector<1x32xf32>
    %109 = vector.broadcast %108 : vector<1x32xf32> to vector<34x32xf32>
    %110 = arith.addf %107, %109 : vector<34x32xf32>
    %111 = vector.extract_strided_slice %110 {offsets = [0, 0], sizes = [1, 32], strides = [1, 1]} : vector<34x32xf32> to vector<1x32xf32>
    %112 = vector.extract_strided_slice %110 {offsets = [32, 0], sizes = [1, 32], strides = [1, 1]} : vector<34x32xf32> to vector<1x32xf32>
    %113 = tpu.concatenate %111, %112 in 0 : vector<1x32xf32>, vector<1x32xf32> -> vector<2x32xf32>
    %cst_71 = arith.constant 0.000000e+00 : f32
    %114 = vector.broadcast %cst_71 : f32 to vector<2x32xf32>
    %115 = arith.maximumf %113, %114 : vector<2x32xf32>
    %c0_72 = arith.constant 0 : index
    %c0_73 = arith.constant 0 : index
    %116 = vector.load %arg12[%c0_72, %c0_73] : memref<32x10xf32, #tpu.memory_space<vmem>>, vector<32x10xf32>
    %cst_74 = arith.constant dense<0.000000e+00> : vector<2x10xf32>
    %117 = tpu.matmul %115, %116, %cst_74 {dimension_numbers = #tpu.dot_dimension_numbers<[1], [0], [0], [1], [0, 0, 1, 1], [], []>} : vector<2x32xf32>, vector<32x10xf32>, vector<2x10xf32> -> vector<2x10xf32>
    %c0_75 = arith.constant 0 : index
    %c0_76 = arith.constant 0 : index
    %118 = vector.load %arg13[%c0_75, %c0_76] : memref<1x10xf32, #tpu.memory_space<vmem>>, vector<1x10xf32>
    %119 = vector.broadcast %118 : vector<1x10xf32> to vector<2x10xf32>
    %120 = arith.addf %117, %119 : vector<2x10xf32>
    %c0_77 = arith.constant 0 : index
    %c0_78 = arith.constant 0 : index
    %c0_79 = arith.constant 0 : index
    %121 = vector.load %arg14[%c0_77, %c0_78, %c0_79] : memref<1x2x10xf32, #tpu.memory_space<vmem>>, vector<1x2x10xf32>
    %122 = vector.shape_cast %121 : vector<1x2x10xf32> to vector<2x10xf32>
    %123 = vector.shape_cast %120 : vector<2x10xf32> to vector<1x2x10xf32>
    tpu.vector_store %arg14[%c0_77, %c0_78, %c0_79], %123 {strides = array<i32>} : memref<1x2x10xf32, #tpu.memory_space<vmem>>, vector<1x2x10xf32>,
    return
  }
  func.func @transform_0(%arg0: i32) -> (i32, i32) {
    %c0_i32 = arith.constant 0 : i32
    %c0_i32_0 = arith.constant 0 : i32
    return %arg0, %c0_i32 : i32, i32
  }
  func.func @transform_1(%arg0: i32) -> (i32, i32, i32) {
    %c0_i32 = arith.constant 0 : i32
    %c0_i32_0 = arith.constant 0 : i32
    %c0_i32_1 = arith.constant 0 : i32
    %c0_i32_2 = arith.constant 0 : i32
    return %c0_i32, %c0_i32_0, %c0_i32_1 : i32, i32, i32
  }
  func.func @transform_2(%arg0: i32) -> (i32, i32) {
    %c0_i32 = arith.constant 0 : i32
    %c0_i32_0 = arith.constant 0 : i32
    %c0_i32_1 = arith.constant 0 : i32
    return %c0_i32, %c0_i32_0 : i32, i32
  }
  func.func @transform_3(%arg0: i32) -> (i32, i32, i32) {
    %c0_i32 = arith.constant 0 : i32
    %c0_i32_0 = arith.constant 0 : i32
    %c0_i32_1 = arith.constant 0 : i32
    %c0_i32_2 = arith.constant 0 : i32
    return %c0_i32, %c0_i32_0, %c0_i32_1 : i32, i32, i32
  }
  func.func @transform_4(%arg0: i32) -> (i32, i32) {
    %c0_i32 = arith.constant 0 : i32
    %c0_i32_0 = arith.constant 0 : i32
    %c0_i32_1 = arith.constant 0 : i32
    return %c0_i32, %c0_i32_0 : i32, i32
  }
  func.func @transform_5(%arg0: i32) -> (i32, i32, i32) {
    %c0_i32 = arith.constant 0 : i32
    %c0_i32_0 = arith.constant 0 : i32
    %c0_i32_1 = arith.constant 0 : i32
    %c0_i32_2 = arith.constant 0 : i32
    return %c0_i32, %c0_i32_0, %c0_i32_1 : i32, i32, i32
  }
  func.func @transform_6(%arg0: i32) -> (i32, i32) {
    %c0_i32 = arith.constant 0 : i32
    %c0_i32_0 = arith.constant 0 : i32
    %c0_i32_1 = arith.constant 0 : i32
    return %c0_i32, %c0_i32_0 : i32, i32
  }
  func.func @transform_7(%arg0: i32) -> (i32, i32, i32) {
    %c0_i32 = arith.constant 0 : i32
    %c0_i32_0 = arith.constant 0 : i32
    %c0_i32_1 = arith.constant 0 : i32
    %c0_i32_2 = arith.constant 0 : i32
    return %c0_i32, %c0_i32_0, %c0_i32_1 : i32, i32, i32
  }
  func.func @transform_8(%arg0: i32) -> (i32, i32) {
    %c0_i32 = arith.constant 0 : i32
    %c0_i32_0 = arith.constant 0 : i32
    %c0_i32_1 = arith.constant 0 : i32
    return %c0_i32, %c0_i32_0 : i32, i32
  }
  func.func @transform_9(%arg0: i32) -> (i32, i32, i32) {
    %c0_i32 = arith.constant 0 : i32
    %c0_i32_0 = arith.constant 0 : i32
    %c0_i32_1 = arith.constant 0 : i32
    %c0_i32_2 = arith.constant 0 : i32
    return %c0_i32, %c0_i32_0, %c0_i32_1 : i32, i32, i32
  }
  func.func @transform_10(%arg0: i32) -> (i32, i32) {
    %c0_i32 = arith.constant 0 : i32
    %c0_i32_0 = arith.constant 0 : i32
    %c0_i32_1 = arith.constant 0 : i32
    return %c0_i32, %c0_i32_0 : i32, i32
  }
  func.func @transform_11(%arg0: i32) -> (i32, i32) {
    %c0_i32 = arith.constant 0 : i32
    %c0_i32_0 = arith.constant 0 : i32
    %c0_i32_1 = arith.constant 0 : i32
    return %c0_i32, %c0_i32_0 : i32, i32
  }
  func.func @transform_12(%arg0: i32) -> (i32, i32) {
    %c0_i32 = arith.constant 0 : i32
    %c0_i32_0 = arith.constant 0 : i32
    %c0_i32_1 = arith.constant 0 : i32
    return %c0_i32, %c0_i32_0 : i32, i32
  }
  func.func @transform_13(%arg0: i32) -> (i32, i32, i32) {
    %c0_i32 = arith.constant 0 : i32
    %c0_i32_0 = arith.constant 0 : i32
    %c0_i32_1 = arith.constant 0 : i32
    return %arg0, %c0_i32, %c0_i32_0 : i32, i32, i32
  }
}

</mosaic_0001>

<llo_original>
// kernel: conv_neural_net_forward.1
$region0: #{conv_neural_net_forward.1}
  #allocation0 [shape = 'u32[]', space=smem, size = 0x4, offset = 0x4, fixed_abs, tag = 'smem constant byte address 0x4 - core index']
  #allocation1 [shape = 'u32[144,128]{1,0:T(1,128)}', space=vmem, size = 0x12000, scoped, tag = 'internal scratch']
  %s0 = inlined_call_operand.vmem [shape: f32[128,128], index: 0, kind: input, shape index: {}]
  %s1 = inlined_call_operand.vmem [shape: f32[3,128,240], index: 1, kind: input, shape index: {}]
  %s2 = inlined_call_operand.vmem [shape: f32[1,240], index: 2, kind: input, shape index: {}]
  %s3 = inlined_call_operand.vmem [shape: f32[3,240,224], index: 3, kind: input, shape index: {}]
  %s4 = inlined_call_operand.vmem [shape: f32[1,224], index: 4, kind: input, shape index: {}]
  %s5 = inlined_call_operand.vmem [shape: f32[3,208,88], index: 5, kind: input, shape index: {}]
  %s6 = inlined_call_operand.vmem [shape: f32[1,88], index: 6, kind: input, shape index: {}]
  %s7 = inlined_call_operand.vmem [shape: f32[3,88,72], index: 7, kind: input, shape index: {}]
  %s8 = inlined_call_operand.vmem [shape: f32[1,72], index: 8, kind: input, shape index: {}]
  %s9 = inlined_call_operand.vmem [shape: f32[4,56,32], index: 9, kind: input, shape index: {}]
  %s10 = inlined_call_operand.vmem [shape: f32[1,32], index: 10, kind: input, shape index: {}]
  %s11 = inlined_call_operand.vmem [shape: f32[32,10], index: 11, kind: input, shape index: {}]
  %s12 = inlined_call_operand.vmem [shape: f32[1,10], index: 12, kind: input, shape index: {}]
  %s13 = inlined_call_operand.hbm [shape: f32[2,2,10], index: 13, kind: output, shape index: {}]
  %s14 = sld [smem:[#allocation0]]
  $region85: #{conv_neural_net_forward.1} parent=0
    _
  %s16 = ssub.s32 1, %s14
  %s17 = scalar_select 0, %s16, %s14
  $region1: #{conv_neural_net_forward.1} parent=0
    #allocation2 [shape = 'u8[2048]{0}', space=vmem, size = 0x800, scoped, tag = 'output window, operand 0']
    #allocation3 [shape = 's32[2]{0}', space=sflag, size = 0x8, scoped, tag = 'scoped memory for conv_neural_net_forward.1']
    %18 = vsyncpa [#allocation3], 0
    %s19 = scalar_lea.sflag [#allocation3], 1
    %20 = vsyncpa %s19, 0
    loop: start=0, step=1, limit=4
    $region2: #{conv_neural_net_forward.1} parent=1 // loop_pre_header
      _
    $region3: #{conv_neural_net_forward.1} parent=1 // loop_header
      %s22 = sphi 0, %s26
      %p23 = scmp.ge.s32.totalorder %s22, 4
      %s32 = sphi 0, %s34
      %s35 = sphi 0, %s32
      %s36 = sphi 0, %s35
      %s52 = sphi 0, %s36
      %s56 = sphi 0, %s56
      %s58 = sphi 0, %s56
      %s59 = sphi 0, %s58
      %s73 = sphi 0, %s59
      %s77 = sphi 0, %s77
      %s79 = sphi 0, %s77
      %s80 = sphi 0, %s79
      %s94 = sphi 0, %s80
      %s98 = sphi 0, %s98
      %s100 = sphi 0, %s98
      %s101 = sphi 0, %s100
      %s115 = sphi 0, %s101
      %s119 = sphi 0, %s119
      %s121 = sphi 0, %s119
      %s122 = sphi 0, %s121
      %s136 = sphi 0, %s122
      %s140 = sphi 0, %s140
      %s142 = sphi 0, %s140
      %s143 = sphi 0, %s142
      %s157 = sphi 0, %s143
      %s161 = sphi 0, %s161
      %s163 = sphi 0, %s161
      %s164 = sphi 0, %s163
      %s178 = sphi 0, %s164
      %s182 = sphi 0, %s182
      %s184 = sphi 0, %s182
      %s185 = sphi 0, %s184
      %s199 = sphi 0, %s185
      %s203 = sphi 0, %s203
      %s205 = sphi 0, %s203
      %s206 = sphi 0, %s205
      %s220 = sphi 0, %s206
      %s224 = sphi 0, %s224
      %s226 = sphi 0, %s224
      %s227 = sphi 0, %s226
      %s241 = sphi 0, %s227
      %s245 = sphi 0, %s245
      %s247 = sphi 0, %s245
      %s248 = sphi 0, %s247
      %s262 = sphi 0, %s248
      %s266 = sphi 0, %s266
      %s268 = sphi 0, %s266
      %s269 = sphi 0, %s268
      %s283 = sphi 0, %s269
      %s287 = sphi 0, %s287
      %s289 = sphi 0, %s287
      %s290 = sphi 0, %s289
      %s304 = sphi 0, %s290
      %s310 = sphi 0, %s312
      %s313 = sphi 0, %s310
      %s314 = sphi 0, %s313
      %s330 = sphi 0, %s314
    $region4: #{conv_neural_net_forward.1} parent=1 // loop_header_branch
      %25 = sbr.rel (%p23) target = $region8
    $region5: #{conv_neural_net_forward.1} parent=1 // loop_body
      %s27 = ssub.s32 %s22, 1
      %s28 = ssub.s32 %s22, 2
      %s29 = sadd.s32 %s22, 1
      %s30 = ssub.s32 %s22, %s29
      %p31 = scmp.eq.s32.totalorder %s30, 0
      %s33 = sadd.s32 %s32, 1
      %s34 = scalar_select %p31, %s32, %s33
      %p37 = pneg %p31
      %p38 = scmp.eq.s32.totalorder %s22, 1
      %p39 = por %p37, %p38
      %p40 = scmp.ne.s32.totalorder %s32, %s35
      %p41 = scmp.eq.s32.totalorder %s22, 0
      %p42 = por %p40, %p41
      %p43 = scmp.ne.s32.totalorder %s32, %s35
      %p44 = scmp.eq.s32.totalorder %s27, 1
      %p45 = por %p43, %p44
      %p46 = scmp.ne.s32.totalorder %s35, %s36
      %p47 = scmp.eq.s32.totalorder %s27, 0
      %p48 = por %p46, %p47
      %p49 = scmp.ne.s32.totalorder %s35, %s36
      %p50 = scmp.eq.s32.totalorder %s28, 1
      %p51 = por %p49, %p50
      %p53 = scmp.ne.s32.totalorder %s36, %s52
      %p54 = scmp.eq.s32.totalorder %s28, 0
      %p55 = por %p53, %p54
      %s57 = sadd.s32 %s56, 1
      %p60 = scmp.eq.s32.totalorder %s22, 1
      %p61 = scmp.ne.s32.totalorder %s56, %s58
      %p62 = scmp.eq.s32.totalorder %s22, 0
      %p63 = por %p61, %p62
      %p64 = scmp.ne.s32.totalorder %s56, %s58
      %p65 = scmp.eq.s32.totalorder %s27, 1
      %p66 = por %p64, %p65
      %p67 = scmp.ne.s32.totalorder %s58, %s59
      %p68 = scmp.eq.s32.totalorder %s27, 0
      %p69 = por %p67, %p68
      %p70 = scmp.ne.s32.totalorder %s58, %s59
      %p71 = scmp.eq.s32.totalorder %s28, 1
      %p72 = por %p70, %p71
      %p74 = scmp.ne.s32.totalorder %s59, %s73
      %p75 = scmp.eq.s32.totalorder %s28, 0
      %p76 = por %p74, %p75
      %s78 = sadd.s32 %s77, 1
      %p81 = scmp.eq.s32.totalorder %s22, 1
      %p82 = scmp.ne.s32.totalorder %s77, %s79
      %p83 = scmp.eq.s32.totalorder %s22, 0
      %p84 = por %p82, %p83
      %p85 = scmp.ne.s32.totalorder %s77, %s79
      %p86 = scmp.eq.s32.totalorder %s27, 1
      %p87 = por %p85, %p86
      %p88 = scmp.ne.s32.totalorder %s79, %s80
      %p89 = scmp.eq.s32.totalorder %s27, 0
      %p90 = por %p88, %p89
      %p91 = scmp.ne.s32.totalorder %s79, %s80
      %p92 = scmp.eq.s32.totalorder %s28, 1
      %p93 = por %p91, %p92
      %p95 = scmp.ne.s32.totalorder %s80, %s94
      %p96 = scmp.eq.s32.totalorder %s28, 0
      %p97 = por %p95, %p96
      %s99 = sadd.s32 %s98, 1
      %p102 = scmp.eq.s32.totalorder %s22, 1
      %p103 = scmp.ne.s32.totalorder %s98, %s100
      %p104 = scmp.eq.s32.totalorder %s22, 0
      %p105 = por %p103, %p104
      %p106 = scmp.ne.s32.totalorder %s98, %s100
      %p107 = scmp.eq.s32.totalorder %s27, 1
      %p108 = por %p106, %p107
      %p109 = scmp.ne.s32.totalorder %s100, %s101
      %p110 = scmp.eq.s32.totalorder %s27, 0
      %p111 = por %p109, %p110
      %p112 = scmp.ne.s32.totalorder %s100, %s101
      %p113 = scmp.eq.s32.totalorder %s28, 1
      %p114 = por %p112, %p113
      %p116 = scmp.ne.s32.totalorder %s101, %s115
      %p117 = scmp.eq.s32.totalorder %s28, 0
      %p118 = por %p116, %p117
      %s120 = sadd.s32 %s119, 1
      %p123 = scmp.eq.s32.totalorder %s22, 1
      %p124 = scmp.ne.s32.totalorder %s119, %s121
      %p125 = scmp.eq.s32.totalorder %s22, 0
      %p126 = por %p124, %p125
      %p127 = scmp.ne.s32.totalorder %s119, %s121
      %p128 = scmp.eq.s32.totalorder %s27, 1
      %p129 = por %p127, %p128
      %p130 = scmp.ne.s32.totalorder %s121, %s122
      %p131 = scmp.eq.s32.totalorder %s27, 0
      %p132 = por %p130, %p131
      %p133 = scmp.ne.s32.totalorder %s121, %s122
      %p134 = scmp.eq.s32.totalorder %s28, 1
      %p135 = por %p133, %p134
      %p137 = scmp.ne.s32.totalorder %s122, %s136
      %p138 = scmp.eq.s32.totalorder %s28, 0
      %p139 = por %p137, %p138
      %s141 = sadd.s32 %s140, 1
      %p144 = scmp.eq.s32.totalorder %s22, 1
      %p145 = scmp.ne.s32.totalorder %s140, %s142
      %p146 = scmp.eq.s32.totalorder %s22, 0
      %p147 = por %p145, %p146
      %p148 = scmp.ne.s32.totalorder %s140, %s142
      %p149 = scmp.eq.s32.totalorder %s27, 1
      %p150 = por %p148, %p149
      %p151 = scmp.ne.s32.totalorder %s142, %s143
      %p152 = scmp.eq.s32.totalorder %s27, 0
      %p153 = por %p151, %p152
      %p154 = scmp.ne.s32.totalorder %s142, %s143
      %p155 = scmp.eq.s32.totalorder %s28, 1
      %p156 = por %p154, %p155
      %p158 = scmp.ne.s32.totalorder %s143, %s157
      %p159 = scmp.eq.s32.totalorder %s28, 0
      %p160 = por %p158, %p159
      %s162 = sadd.s32 %s161, 1
      %p165 = scmp.eq.s32.totalorder %s22, 1
      %p166 = scmp.ne.s32.totalorder %s161, %s163
      %p167 = scmp.eq.s32.totalorder %s22, 0
      %p168 = por %p166, %p167
      %p169 = scmp.ne.s32.totalorder %s161, %s163
      %p170 = scmp.eq.s32.totalorder %s27, 1
      %p171 = por %p169, %p170
      %p172 = scmp.ne.s32.totalorder %s163, %s164
      %p173 = scmp.eq.s32.totalorder %s27, 0
      %p174 = por %p172, %p173
      %p175 = scmp.ne.s32.totalorder %s163, %s164
      %p176 = scmp.eq.s32.totalorder %s28, 1
      %p177 = por %p175, %p176
      %p179 = scmp.ne.s32.totalorder %s164, %s178
      %p180 = scmp.eq.s32.totalorder %s28, 0
      %p181 = por %p179, %p180
      %s183 = sadd.s32 %s182, 1
      %p186 = scmp.eq.s32.totalorder %s22, 1
      %p187 = scmp.ne.s32.totalorder %s182, %s184
      %p188 = scmp.eq.s32.totalorder %s22, 0
      %p189 = por %p187, %p188
      %p190 = scmp.ne.s32.totalorder %s182, %s184
      %p191 = scmp.eq.s32.totalorder %s27, 1
      %p192 = por %p190, %p191
      %p193 = scmp.ne.s32.totalorder %s184, %s185
      %p194 = scmp.eq.s32.totalorder %s27, 0
      %p195 = por %p193, %p194
      %p196 = scmp.ne.s32.totalorder %s184, %s185
      %p197 = scmp.eq.s32.totalorder %s28, 1
      %p198 = por %p196, %p197
      %p200 = scmp.ne.s32.totalorder %s185, %s199
      %p201 = scmp.eq.s32.totalorder %s28, 0
      %p202 = por %p200, %p201
      %s204 = sadd.s32 %s203, 1
      %p207 = scmp.eq.s32.totalorder %s22, 1
      %p208 = scmp.ne.s32.totalorder %s203, %s205
      %p209 = scmp.eq.s32.totalorder %s22, 0
      %p210 = por %p208, %p209
      %p211 = scmp.ne.s32.totalorder %s203, %s205
      %p212 = scmp.eq.s32.totalorder %s27, 1
      %p213 = por %p211, %p212
      %p214 = scmp.ne.s32.totalorder %s205, %s206
      %p215 = scmp.eq.s32.totalorder %s27, 0
      %p216 = por %p214, %p215
      %p217 = scmp.ne.s32.totalorder %s205, %s206
      %p218 = scmp.eq.s32.totalorder %s28, 1
      %p219 = por %p217, %p218
      %p221 = scmp.ne.s32.totalorder %s206, %s220
      %p222 = scmp.eq.s32.totalorder %s28, 0
      %p223 = por %p221, %p222
      %s225 = sadd.s32 %s224, 1
      %p228 = scmp.eq.s32.totalorder %s22, 1
      %p229 = scmp.ne.s32.totalorder %s224, %s226
      %p230 = scmp.eq.s32.totalorder %s22, 0
      %p231 = por %p229, %p230
      %p232 = scmp.ne.s32.totalorder %s224, %s226
      %p233 = scmp.eq.s32.totalorder %s27, 1
      %p234 = por %p232, %p233
      %p235 = scmp.ne.s32.totalorder %s226, %s227
      %p236 = scmp.eq.s32.totalorder %s27, 0
      %p237 = por %p235, %p236
      %p238 = scmp.ne.s32.totalorder %s226, %s227
      %p239 = scmp.eq.s32.totalorder %s28, 1
      %p240 = por %p238, %p239
      %p242 = scmp.ne.s32.totalorder %s227, %s241
      %p243 = scmp.eq.s32.totalorder %s28, 0
      %p244 = por %p242, %p243
      %s246 = sadd.s32 %s245, 1
      %p249 = scmp.eq.s32.totalorder %s22, 1
      %p250 = scmp.ne.s32.totalorder %s245, %s247
      %p251 = scmp.eq.s32.totalorder %s22, 0
      %p252 = por %p250, %p251
      %p253 = scmp.ne.s32.totalorder %s245, %s247
      %p254 = scmp.eq.s32.totalorder %s27, 1
      %p255 = por %p253, %p254
      %p256 = scmp.ne.s32.totalorder %s247, %s248
      %p257 = scmp.eq.s32.totalorder %s27, 0
      %p258 = por %p256, %p257
      %p259 = scmp.ne.s32.totalorder %s247, %s248
      %p260 = scmp.eq.s32.totalorder %s28, 1
      %p261 = por %p259, %p260
      %p263 = scmp.ne.s32.totalorder %s248, %s262
      %p264 = scmp.eq.s32.totalorder %s28, 0
      %p265 = por %p263, %p264
      %s267 = sadd.s32 %s266, 1
      %p270 = scmp.eq.s32.totalorder %s22, 1
      %p271 = scmp.ne.s32.totalorder %s266, %s268
      %p272 = scmp.eq.s32.totalorder %s22, 0
      %p273 = por %p271, %p272
      %p274 = scmp.ne.s32.totalorder %s266, %s268
      %p275 = scmp.eq.s32.totalorder %s27, 1
      %p276 = por %p274, %p275
      %p277 = scmp.ne.s32.totalorder %s268, %s269
      %p278 = scmp.eq.s32.totalorder %s27, 0
      %p279 = por %p277, %p278
      %p280 = scmp.ne.s32.totalorder %s268, %s269
      %p281 = scmp.eq.s32.totalorder %s28, 1
      %p282 = por %p280, %p281
      %p284 = scmp.ne.s32.totalorder %s269, %s283
      %p285 = scmp.eq.s32.totalorder %s28, 0
      %p286 = por %p284, %p285
      %s288 = sadd.s32 %s287, 1
      %p291 = scmp.eq.s32.totalorder %s22, 1
      %p292 = scmp.ne.s32.totalorder %s287, %s289
      %p293 = scmp.eq.s32.totalorder %s22, 0
      %p294 = por %p292, %p293
      %p295 = scmp.ne.s32.totalorder %s287, %s289
      %p296 = scmp.eq.s32.totalorder %s27, 1
      %p297 = por %p295, %p296
      %p298 = scmp.ne.s32.totalorder %s289, %s290
      %p299 = scmp.eq.s32.totalorder %s27, 0
      %p300 = por %p298, %p299
      %p301 = scmp.ne.s32.totalorder %s289, %s290
      %p302 = scmp.eq.s32.totalorder %s28, 1
      %p303 = por %p301, %p302
      %p305 = scmp.ne.s32.totalorder %s290, %s304
      %p306 = scmp.eq.s32.totalorder %s28, 0
      %p307 = por %p305, %p306
      %s308 = ssub.s32 %s22, %s29
      %p309 = scmp.eq.s32.totalorder %s308, 0
      %s311 = sadd.s32 %s310, 1
      %s312 = scalar_select %p309, %s310, %s311
      %p315 = pneg %p309
      %p316 = scmp.eq.s32.totalorder %s22, 1
      %p317 = por %p315, %p316
      %p318 = scmp.ne.s32.totalorder %s310, %s313
      %p319 = scmp.eq.s32.totalorder %s22, 0
      %p320 = por %p318, %p319
      %p321 = scmp.ne.s32.totalorder %s310, %s313
      %p322 = scmp.eq.s32.totalorder %s27, 1
      %p323 = por %p321, %p322
      %p324 = scmp.ne.s32.totalorder %s313, %s314
      %p325 = scmp.eq.s32.totalorder %s27, 0
      %p326 = por %p324, %p325
      %p327 = scmp.ne.s32.totalorder %s313, %s314
      %p328 = scmp.eq.s32.totalorder %s28, 1
      %p329 = por %p327, %p328
      %p331 = scmp.ne.s32.totalorder %s314, %s330
      %p332 = scmp.eq.s32.totalorder %s28, 0
      %p333 = por %p331, %p332
      %p334 = scmp.le.s32.totalorder 1, %s22
      %p335 = scmp.lt.s32.totalorder %s22, 3
      %p336 = pnand %p334, %p335
      %p337 = pneg %p336
      // Predicated region
      $region9: #{conv_neural_net_forward.1} parent=5 // pred_check
        _
      $region10: #{conv_neural_net_forward.1} parent=5 // pred_check_branch
        %339 = sbr.rel (%p336) target = $region12
      $region11: #{conv_neural_net_forward.1} parent=5 // pred_region
        %s340 = ssub.s32 %s22, 1
        // Predicated region
        $region13: #{conv_neural_net_forward.1} parent=11 // pred_check
          %p341 = pneg %p69
        $region14: #{conv_neural_net_forward.1} parent=11 // pred_check_branch
          %343 = sbr.rel (%p341) target = $region16
        $region15: #{conv_neural_net_forward.1} parent=11 // pred_region
          _
        $region16: #{conv_neural_net_forward.1} parent=11 // pred_fallthru
          _
        // Predicated region
        $region17: #{conv_neural_net_forward.1} parent=11 // pred_check
          %p344 = pneg %p90
        $region18: #{conv_neural_net_forward.1} parent=11 // pred_check_branch
          %346 = sbr.rel (%p344) target = $region20
        $region19: #{conv_neural_net_forward.1} parent=11 // pred_region
          _
        $region20: #{conv_neural_net_forward.1} parent=11 // pred_fallthru
          _
        // Predicated region
        $region21: #{conv_neural_net_forward.1} parent=11 // pred_check
          %p347 = pneg %p111
        $region22: #{conv_neural_net_forward.1} parent=11 // pred_check_branch
          %349 = sbr.rel (%p347) target = $region24
        $region23: #{conv_neural_net_forward.1} parent=11 // pred_region
          _
        $region24: #{conv_neural_net_forward.1} parent=11 // pred_fallthru
          _
        // Predicated region
        $region25: #{conv_neural_net_forward.1} parent=11 // pred_check
          %p350 = pneg %p132
        $region26: #{conv_neural_net_forward.1} parent=11 // pred_check_branch
          %352 = sbr.rel (%p350) target = $region28
        $region27: #{conv_neural_net_forward.1} parent=11 // pred_region
          _
        $region28: #{conv_neural_net_forward.1} parent=11 // pred_fallthru
          _
        // Predicated region
        $region29: #{conv_neural_net_forward.1} parent=11 // pred_check
          %p353 = pneg %p153
        $region30: #{conv_neural_net_forward.1} parent=11 // pred_check_branch
          %355 = sbr.rel (%p353) target = $region32
        $region31: #{conv_neural_net_forward.1} parent=11 // pred_region
          _
        $region32: #{conv_neural_net_forward.1} parent=11 // pred_fallthru
          _
        // Predicated region
        $region33: #{conv_neural_net_forward.1} parent=11 // pred_check
          %p356 = pneg %p174
        $region34: #{conv_neural_net_forward.1} parent=11 // pred_check_branch
          %358 = sbr.rel (%p356) target = $region36
        $region35: #{conv_neural_net_forward.1} parent=11 // pred_region
          _
        $region36: #{conv_neural_net_forward.1} parent=11 // pred_fallthru
          _
        // Predicated region
        $region37: #{conv_neural_net_forward.1} parent=11 // pred_check
          %p359 = pneg %p195
        $region38: #{conv_neural_net_forward.1} parent=11 // pred_check_branch
          %361 = sbr.rel (%p359) target = $region40
        $region39: #{conv_neural_net_forward.1} parent=11 // pred_region
          _
        $region40: #{conv_neural_net_forward.1} parent=11 // pred_fallthru
          _
        // Predicated region
        $region41: #{conv_neural_net_forward.1} parent=11 // pred_check
          %p362 = pneg %p216
        $region42: #{conv_neural_net_forward.1} parent=11 // pred_check_branch
          %364 = sbr.rel (%p362) target = $region44
        $region43: #{conv_neural_net_forward.1} parent=11 // pred_region
          _
        $region44: #{conv_neural_net_forward.1} parent=11 // pred_fallthru
          _
        // Predicated region
        $region45: #{conv_neural_net_forward.1} parent=11 // pred_check
          %p365 = pneg %p237
        $region46: #{conv_neural_net_forward.1} parent=11 // pred_check_branch
          %367 = sbr.rel (%p365) target = $region48
        $region47: #{conv_neural_net_forward.1} parent=11 // pred_region
          _
        $region48: #{conv_neural_net_forward.1} parent=11 // pred_fallthru
          _
        // Predicated region
        $region49: #{conv_neural_net_forward.1} parent=11 // pred_check
          %p368 = pneg %p258
        $region50: #{conv_neural_net_forward.1} parent=11 // pred_check_branch
          %370 = sbr.rel (%p368) target = $region52
        $region51: #{conv_neural_net_forward.1} parent=11 // pred_region
          _
        $region52: #{conv_neural_net_forward.1} parent=11 // pred_fallthru
          _
        // Predicated region
        $region53: #{conv_neural_net_forward.1} parent=11 // pred_check
          %p371 = pneg %p279
        $region54: #{conv_neural_net_forward.1} parent=11 // pred_check_branch
          %373 = sbr.rel (%p371) target = $region56
        $region55: #{conv_neural_net_forward.1} parent=11 // pred_region
          _
        $region56: #{conv_neural_net_forward.1} parent=11 // pred_fallthru
          _
        // Predicated region
        $region57: #{conv_neural_net_forward.1} parent=11 // pred_check
          %p374 = pneg %p300
        $region58: #{conv_neural_net_forward.1} parent=11 // pred_check_branch
          %376 = sbr.rel (%p374) target = $region60
        $region59: #{conv_neural_net_forward.1} parent=11 // pred_region
          _
        $region60: #{conv_neural_net_forward.1} parent=11 // pred_fallthru
          _
      $region12: #{conv_neural_net_forward.1} parent=5 // pred_fallthru
        _
      %p377 = scmp.lt.s32.totalorder %s22, 2
      // Predicated region
      $region61: #{conv_neural_net_forward.1} parent=5 // pred_check
        %p378 = pneg %p377
      $region62: #{conv_neural_net_forward.1} parent=5 // pred_check_branch
        %380 = sbr.rel (%p378) target = $region64
      $region63: #{conv_neural_net_forward.1} parent=5 // pred_region
        // Predicated region
        $region65: #{conv_neural_net_forward.1} parent=63 // pred_check
          %p381 = pneg %p42
        $region66: #{conv_neural_net_forward.1} parent=63 // pred_check_branch
          %383 = sbr.rel (%p381) target = $region68
        $region67: #{conv_neural_net_forward.1} parent=63 // pred_region
          %s384 = smul.u32 8, %s22
          %p385 = scmp.lt.s32.totalorder %s384, 15
          %s386 = scalar_select %p385, %s384, 15
          %s387 = smul.addr %s386, 8
          %s388 = scalar_lea.vmem %s0, %s387
          %s389 = smul.u32 8, %s22
        $region68: #{conv_neural_net_forward.1} parent=63 // pred_fallthru
          _
      $region64: #{conv_neural_net_forward.1} parent=5 // pred_fallthru
        _
      %p390 = scmp.le.s32.totalorder 1, %s22
      %p391 = scmp.lt.s32.totalorder %s22, 3
      %p392 = pnand %p390, %p391
      %p393 = pneg %p392
      // Predicated region
      $region69: #{conv_neural_net_forward.1} parent=5 // pred_check
        _
      $region70: #{conv_neural_net_forward.1} parent=5 // pred_check_branch
        %395 = sbr.rel (%p392) target = $region72
      $region71: #{conv_neural_net_forward.1} parent=5 // pred_region
        %s396 = ssub.s32 %s22, 1
        %s397 = smul.u32 8, %s27
        %p398 = scmp.lt.s32.totalorder %s397, 15
        %s399 = scalar_select %p398, %s397, 15
        %s400 = smul.addr %s399, 8
        %s401 = scalar_lea.vmem %s0, %s400
        %p402 = pneg %p48
        %p403 = pneg %p45
        %p404 = pneg %p69
        %p405 = pneg %p66
        %p406 = pneg %p90
        %p407 = pneg %p87
        %p408 = pneg %p111
        %p409 = pneg %p108
        %p410 = pneg %p132
        %p411 = pneg %p129
        %p412 = pneg %p153
        %p413 = pneg %p150
        %p414 = pneg %p174
        %p415 = pneg %p171
        %p416 = pneg %p195
        %p417 = pneg %p192
        %p418 = pneg %p216
        %p419 = pneg %p213
        %p420 = pneg %p237
        %p421 = pneg %p234
        %p422 = pneg %p258
        %p423 = pneg %p255
        %p424 = pneg %p279
        %p425 = pneg %p276
        %p426 = pneg %p300
        %p427 = pneg %p297
        %p428 = pneg %p326
        %p429 = pneg %p323
        %s430 = sand.u32 %s313, 1
        %s431 = scalar_lea.sflag [#allocation3], %s430
        %s432 = sand.u32 %s313, 1
        %s433 = smul.addr %s432, 2
        %s434 = scalar_lea.vmem [#allocation2], %s433
        %s435 = smul.u32 8, %s27
        %p436 = scmp.lt.s32.totalorder %s435, 15
        %s437 = scalar_select %p436, %s435, 15
        %s438 = smul.addr %s437, 8
        %s439 = scalar_lea.vmem %s0, %s438
        %s440 = smul.u32 8, %s27
        %v441 = vld [vmem:[%s439] sm:$0xff]
        %v442 = vld [vmem:[%s439 + $0x8] sm:$0xff]
        %v443 = vld [vmem:[%s439 + $0x10] sm:$0xff]
        %v444 = vld [vmem:[%s439 + $0x18] sm:$0xff]
        %v445 = vld [vmem:[%s439 + $0x20] sm:$0xff]
        %v446 = vld [vmem:[%s439 + $0x28] sm:$0xff]
        %v447 = vld [vmem:[%s439 + $0x30] sm:$0xff]
        %v448 = vld [vmem:[%s439 + $0x38] sm:$0xff]
        %v449 = vld [vmem:[%s1] sm:$0xff]
        %v450 = vld [vmem:[%s1 + $0x8] sm:$0xff]
        %v451 = vld [vmem:[%s1 + $0x10] sm:$0xff]
        %v452 = vld [vmem:[%s1 + $0x18] sm:$0xff]
        %v453 = vld [vmem:[%s1 + $0x20] sm:$0xff]
        %v454 = vld [vmem:[%s1 + $0x28] sm:$0xff]
        %v455 = vld [vmem:[%s1 + $0x30] sm:$0xff]
        %v456 = vld [vmem:[%s1 + $0x38] sm:$0xff]
        %v457 = vld [vmem:[%s1 + $0x40] sm:$0xff]
        %v458 = vld [vmem:[%s1 + $0x48] sm:$0xff]
        %v459 = vld [vmem:[%s1 + $0x50] sm:$0xff]
        %v460 = vld [vmem:[%s1 + $0x58] sm:$0xff]
        %v461 = vld [vmem:[%s1 + $0x60] sm:$0xff]
        %v462 = vld [vmem:[%s1 + $0x68] sm:$0xff]
        %v463 = vld [vmem:[%s1 + $0x70] sm:$0xff]
        %v464 = vld [vmem:[%s1 + $0x78] sm:$0xff]
        %v465 = vld [vmem:[%s1 + $0x80] sm:$0xff]
        %v466 = vld [vmem:[%s1 + $0x88] sm:$0xff]
        %v467 = vld [vmem:[%s1 + $0x90] sm:$0xff]
        %v468 = vld [vmem:[%s1 + $0x98] sm:$0xff]
        %v469 = vld [vmem:[%s1 + $0xa0] sm:$0xff]
        %v470 = vld [vmem:[%s1 + $0xa8] sm:$0xff]
        %v471 = vld [vmem:[%s1 + $0xb0] sm:$0xff]
        %v472 = vld [vmem:[%s1 + $0xb8] sm:$0xff]
        %v473 = vld [vmem:[%s1 + $0xc0] sm:$0xff]
        %v474 = vld [vmem:[%s1 + $0xc8] sm:$0xff]
        %v475 = vld [vmem:[%s1 + $0xd0] sm:$0xff]
        %v476 = vld [vmem:[%s1 + $0xd8] sm:$0xff]
        %v477 = vld [vmem:[%s1 + $0xe0] sm:$0xff]
        %v478 = vld [vmem:[%s1 + $0xe8] sm:$0xff]
        %v479 = vld [vmem:[%s1 + $0xf0] sm:$0xff]
        %v480 = vld [vmem:[%s1 + $0xf8] sm:$0xff]
        %s481 = scalar_lea.vmem %s1, 256
        %v482 = vld [vmem:[%s481] sm:$0xff]
        %v483 = vld [vmem:[%s481 + $0x8] sm:$0xff]
        %v484 = vld [vmem:[%s481 + $0x10] sm:$0xff]
        %v485 = vld [vmem:[%s481 + $0x18] sm:$0xff]
        %v486 = vld [vmem:[%s481 + $0x20] sm:$0xff]
        %v487 = vld [vmem:[%s481 + $0x28] sm:$0xff]
        %v488 = vld [vmem:[%s481 + $0x30] sm:$0xff]
        %v489 = vld [vmem:[%s481 + $0x38] sm:$0xff]
        %v490 = vld [vmem:[%s481 + $0x40] sm:$0xff]
        %v491 = vld [vmem:[%s481 + $0x48] sm:$0xff]
        %v492 = vld [vmem:[%s481 + $0x50] sm:$0xff]
        %v493 = vld [vmem:[%s481 + $0x58] sm:$0xff]
        %v494 = vld [vmem:[%s481 + $0x60] sm:$0xff]
        %v495 = vld [vmem:[%s481 + $0x68] sm:$0xff]
        %v496 = vld [vmem:[%s481 + $0x70] sm:$0xff]
        %v497 = vld [vmem:[%s481 + $0x78] sm:$0xff]
        %v498 = vld [vmem:[%s481 + $0x80] sm:$0xff]
        %v499 = vld [vmem:[%s481 + $0x88] sm:$0xff]
        %v500 = vld [vmem:[%s481 + $0x90] sm:$0xff]
        %v501 = vld [vmem:[%s481 + $0x98] sm:$0xff]
        %v502 = vld [vmem:[%s481 + $0xa0] sm:$0xff]
        %v503 = vld [vmem:[%s481 + $0xa8] sm:$0xff]
        %v504 = vld [vmem:[%s481 + $0xb0] sm:$0xff]
        %v505 = vld [vmem:[%s481 + $0xb8] sm:$0xff]
        %v506 = vld [vmem:[%s481 + $0xc0] sm:$0xff]
        %v507 = vld [vmem:[%s481 + $0xc8] sm:$0xff]
        %v508 = vld [vmem:[%s481 + $0xd0] sm:$0xff]
        %v509 = vld [vmem:[%s481 + $0xd8] sm:$0xff]
        %v510 = vld [vmem:[%s481 + $0xe0] sm:$0xff]
        %v511 = vld [vmem:[%s481 + $0xe8] sm:$0xff]
        %v512 = vld [vmem:[%s481 + $0xf0] sm:$0xff]
        %v513 = vld [vmem:[%s481 + $0xf8] sm:$0xff]
        %vm522 = vcmask 1046528
        %v523 = vrot.slane %v441, 1
        %v524 = vrot.slane %v442, 1
        %v525 = vsel %vm522, %v523, %v524
        %v526 = vrot.slane %v443, 1
        %v527 = vsel %vm522, %v524, %v526
        %v528 = vrot.slane %v444, 1
        %v529 = vsel %vm522, %v526, %v528
        %v530 = vrot.slane %v445, 1
        %v531 = vsel %vm522, %v528, %v530
        %v532 = vrot.slane %v446, 1
        %v533 = vsel %vm522, %v530, %v532
        %v534 = vrot.slane %v447, 1
        %v535 = vsel %vm522, %v532, %v534
        %v536 = vrot.slane %v448, 1
        %v537 = vsel %vm522, %v534, %v536
        %546 = vmatprep.subr.mxu0 %v483
        %547 = vmatpush1.msra.mxu0 %v482
        %548 = vmatprep.subr.mxu0 %v485
        %549 = vmatpush1.msra.mxu0 %v484
        %550 = vmatprep.subr.mxu0 %v487
        %551 = vmatpush1.msra.mxu0 %v486
        %552 = vmatprep.subr.mxu0 %v489
        %553 = vmatpush1.msra.mxu0 %v488
        %554 = vmatprep.subr.mxu0 %v491
        %555 = vmatpush1.msra.mxu0 %v490
        %556 = vmatprep.subr.mxu0 %v493
        %557 = vmatpush1.msra.mxu0 %v492
        %558 = vmatprep.subr.mxu0 %v495
        %559 = vmatpush1.msra.mxu0 %v494
        %560 = vmatprep.subr.mxu0 %v497
        %561 = vmatpush1.msra.mxu0 %v496
        %562 = vmatprep.subr.mxu0 %v499
        %563 = vmatpush1.msra.mxu0 %v498
        %564 = vmatprep.subr.mxu0 %v501
        %565 = vmatpush1.msra.mxu0 %v500
        %566 = vmatprep.subr.mxu0 %v503
        %567 = vmatpush1.msra.mxu0 %v502
        %568 = vmatprep.subr.mxu0 %v505
        %569 = vmatpush1.msra.mxu0 %v504
        %570 = vmatprep.subr.mxu0 %v507
        %571 = vmatpush1.msra.mxu0 %v506
        %572 = vmatprep.subr.mxu0 %v509
        %573 = vmatpush1.msra.mxu0 %v508
        %574 = vmatprep.subr.mxu0 %v511
        %575 = vmatpush1.msra.mxu0 %v510
        %576 = vmatprep.subr.mxu0 %v513
        %577 = vmatpush1.msra.mxu0 %v512
        %578 = vmatprep.subr.mxu0 0.0
        %579 = vmatpush1.msra.mxu0 0.0
        %580 = vmatprep.subr.mxu0 0.0
        %581 = vmatpush1.msra.mxu0 0.0
        %582 = vmatprep.subr.mxu0 0.0
        %583 = vmatpush1.msra.mxu0 0.0
        %584 = vmatprep.subr.mxu0 0.0
        %585 = vmatpush1.msra.mxu0 0.0
        %586 = vmatprep.subr.mxu0 0.0
        %587 = vmatpush1.msra.mxu0 0.0
        %588 = vmatprep.subr.mxu0 0.0
        %589 = vmatpush1.msra.mxu0 0.0
        %590 = vmatprep.subr.mxu0 0.0
        %591 = vmatpush1.msra.mxu0 0.0
        %592 = vmatprep.subr.mxu0 0.0
        %593 = vmatpush1.msra.mxu0 0.0
        %594 = vmatprep.subr.mxu0 0.0
        %595 = vmatpush1.msra.mxu0 0.0
        %596 = vmatprep.subr.mxu0 0.0
        %597 = vmatpush1.msra.mxu0 0.0
        %598 = vmatprep.subr.mxu0 0.0
        %599 = vmatpush1.msra.mxu0 0.0
        %600 = vmatprep.subr.mxu0 0.0
        %601 = vmatpush1.msra.mxu0 0.0
        %602 = vmatprep.subr.mxu0 0.0
        %603 = vmatpush1.msra.mxu0 0.0
        %604 = vmatprep.subr.mxu0 0.0
        %605 = vmatpush1.msra.mxu0 0.0
        %606 = vmatprep.subr.mxu0 0.0
        %607 = vmatpush1.msra.mxu0 0.0
        %608 = vmatprep.subr.mxu0 0.0
        %609 = vmatpush1.msra.mxu0 0.0
        %610 = vmatprep.mubr.f32.mxu0 0.0
        %611 = vmatmul.mubr.f32.gmra.mrb[0].mxu0 %v525
        %v612 = vpop.f32.mrb[0].mxu0
        %v613 = vadd.f32 0.0, %v612
        %v614 = vpop.f32.mrb[0].mxu0
        %v615 = vadd.f32 0.0, %v614
        %616 = vmatprep.mubr.f32.mxu0 0.0
        %617 = vmatmul.mubr.f32.gmra.mrb[0].mxu0 %v527
        %v618 = vpop.f32.mrb[0].mxu0
        %v619 = vadd.f32 0.0, %v618
        %v620 = vpop.f32.mrb[0].mxu0
        %v621 = vadd.f32 0.0, %v620
        %622 = vmatprep.mubr.f32.mxu0 0.0
        %623 = vmatmul.mubr.f32.gmra.mrb[0].mxu0 %v529
        %v624 = vpop.f32.mrb[0].mxu0
        %v625 = vadd.f32 0.0, %v624
        %v626 = vpop.f32.mrb[0].mxu0
        %v627 = vadd.f32 0.0, %v626
        %628 = vmatprep.mubr.f32.mxu0 0.0
        %629 = vmatmul.mubr.f32.gmra.mrb[0].mxu0 %v531
        %v630 = vpop.f32.mrb[0].mxu0
        %v631 = vadd.f32 0.0, %v630
        %v632 = vpop.f32.mrb[0].mxu0
        %v633 = vadd.f32 0.0, %v632
        %634 = vmatprep.mubr.f32.mxu0 0.0
        %635 = vmatmul.mubr.f32.gmra.mrb[0].mxu0 %v533
        %v636 = vpop.f32.mrb[0].mxu0
        %v637 = vadd.f32 0.0, %v636
        %v638 = vpop.f32.mrb[0].mxu0
        %v639 = vadd.f32 0.0, %v638
        %640 = vmatprep.mubr.f32.mxu0 0.0
        %641 = vmatmul.mubr.f32.gmra.mrb[0].mxu0 %v535
        %v642 = vpop.f32.mrb[0].mxu0
        %v643 = vadd.f32 0.0, %v642
        %v644 = vpop.f32.mrb[0].mxu0
        %v645 = vadd.f32 0.0, %v644
        %646 = vmatprep.mubr.f32.mxu0 0.0
        %647 = vmatmul.mubr.f32.gmra.mrb[0].mxu0 %v537
        %v648 = vpop.f32.mrb[0].mxu0
        %v649 = vadd.f32 0.0, %v648
        %v650 = vpop.f32.mrb[0].mxu0
        %v651 = vadd.f32 0.0, %v650
        %652 = vmatprep.mubr.f32.mxu0 0.0
        %653 = vmatmul.mubr.f32.gmra.mrb[0].mxu0 %v536
        %v654 = vpop.f32.mrb[0].mxu0
        %v655 = vadd.f32 0.0, %v654
        %v656 = vpop.f32.mrb[0].mxu0
        %v657 = vadd.f32 0.0, %v656
        %658 = vdwg.mxu0
        %s659 = scalar_lea.vmem %s1, 512
        %v660 = vld [vmem:[%s659] sm:$0xff]
        %v661 = vld [vmem:[%s659 + $0x8] sm:$0xff]
        %v662 = vld [vmem:[%s659 + $0x10] sm:$0xff]
        %v663 = vld [vmem:[%s659 + $0x18] sm:$0xff]
        %v664 = vld [vmem:[%s659 + $0x20] sm:$0xff]
        %v665 = vld [vmem:[%s659 + $0x28] sm:$0xff]
        %v666 = vld [vmem:[%s659 + $0x30] sm:$0xff]
        %v667 = vld [vmem:[%s659 + $0x38] sm:$0xff]
        %v668 = vld [vmem:[%s659 + $0x40] sm:$0xff]
        %v669 = vld [vmem:[%s659 + $0x48] sm:$0xff]
        %v670 = vld [vmem:[%s659 + $0x50] sm:$0xff]
        %v671 = vld [vmem:[%s659 + $0x58] sm:$0xff]
        %v672 = vld [vmem:[%s659 + $0x60] sm:$0xff]
        %v673 = vld [vmem:[%s659 + $0x68] sm:$0xff]
        %v674 = vld [vmem:[%s659 + $0x70] sm:$0xff]
        %v675 = vld [vmem:[%s659 + $0x78] sm:$0xff]
        %v676 = vld [vmem:[%s659 + $0x80] sm:$0xff]
        %v677 = vld [vmem:[%s659 + $0x88] sm:$0xff]
        %v678 = vld [vmem:[%s659 + $0x90] sm:$0xff]
        %v679 = vld [vmem:[%s659 + $0x98] sm:$0xff]
        %v680 = vld [vmem:[%s659 + $0xa0] sm:$0xff]
        %v681 = vld [vmem:[%s659 + $0xa8] sm:$0xff]
        %v682 = vld [vmem:[%s659 + $0xb0] sm:$0xff]
        %v683 = vld [vmem:[%s659 + $0xb8] sm:$0xff]
        %v684 = vld [vmem:[%s659 + $0xc0] sm:$0xff]
        %v685 = vld [vmem:[%s659 + $0xc8] sm:$0xff]
        %v686 = vld [vmem:[%s659 + $0xd0] sm:$0xff]
        %v687 = vld [vmem:[%s659 + $0xd8] sm:$0xff]
        %v688 = vld [vmem:[%s659 + $0xe0] sm:$0xff]
        %v689 = vld [vmem:[%s659 + $0xe8] sm:$0xff]
        %v690 = vld [vmem:[%s659 + $0xf0] sm:$0xff]
        %v691 = vld [vmem:[%s659 + $0xf8] sm:$0xff]
        %vm692 = vcmask 1045504
        %v693 = vrot.slane %v441, 2
        %v694 = vrot.slane %v442, 2
        %v695 = vsel %vm692, %v693, %v694
        %v696 = vrot.slane %v443, 2
        %v697 = vsel %vm692, %v694, %v696
        %v698 = vrot.slane %v444, 2
        %v699 = vsel %vm692, %v696, %v698
        %v700 = vrot.slane %v445, 2
        %v701 = vsel %vm692, %v698, %v700
        %v702 = vrot.slane %v446, 2
        %v703 = vsel %vm692, %v700, %v702
        %v704 = vrot.slane %v447, 2
        %v705 = vsel %vm692, %v702, %v704
        %v706 = vrot.slane %v448, 2
        %v707 = vsel %vm692, %v704, %v706
        %716 = vmatprep.subr.mxu0 %v661
        %717 = vmatpush1.msra.mxu0 %v660
        %718 = vmatprep.subr.mxu0 %v663
        %719 = vmatpush1.msra.mxu0 %v662
        %720 = vmatprep.subr.mxu0 %v665
        %721 = vmatpush1.msra.mxu0 %v664
        %722 = vmatprep.subr.mxu0 %v667
        %723 = vmatpush1.msra.mxu0 %v666
        %724 = vmatprep.subr.mxu0 %v669
        %725 = vmatpush1.msra.mxu0 %v668
        %726 = vmatprep.subr.mxu0 %v671
        %727 = vmatpush1.msra.mxu0 %v670
        %728 = vmatprep.subr.mxu0 %v673
        %729 = vmatpush1.msra.mxu0 %v672
        %730 = vmatprep.subr.mxu0 %v675
        %731 = vmatpush1.msra.mxu0 %v674
        %732 = vmatprep.subr.mxu0 %v677
        %733 = vmatpush1.msra.mxu0 %v676
        %734 = vmatprep.subr.mxu0 %v679
        %735 = vmatpush1.msra.mxu0 %v678
        %736 = vmatprep.subr.mxu0 %v681
        %737 = vmatpush1.msra.mxu0 %v680
        %738 = vmatprep.subr.mxu0 %v683
        %739 = vmatpush1.msra.mxu0 %v682
        %740 = vmatprep.subr.mxu0 %v685
        %741 = vmatpush1.msra.mxu0 %v684
        %742 = vmatprep.subr.mxu0 %v687
        %743 = vmatpush1.msra.mxu0 %v686
        %744 = vmatprep.subr.mxu0 %v689
        %745 = vmatpush1.msra.mxu0 %v688
        %746 = vmatprep.subr.mxu0 %v691
        %747 = vmatpush1.msra.mxu0 %v690
        %748 = vmatprep.subr.mxu0 0.0
        %749 = vmatpush1.msra.mxu0 0.0
        %750 = vmatprep.subr.mxu0 0.0
        %751 = vmatpush1.msra.mxu0 0.0
        %752 = vmatprep.subr.mxu0 0.0
        %753 = vmatpush1.msra.mxu0 0.0
        %754 = vmatprep.subr.mxu0 0.0
        %755 = vmatpush1.msra.mxu0 0.0
        %756 = vmatprep.subr.mxu0 0.0
        %757 = vmatpush1.msra.mxu0 0.0
        %758 = vmatprep.subr.mxu0 0.0
        %759 = vmatpush1.msra.mxu0 0.0
        %760 = vmatprep.subr.mxu0 0.0
        %761 = vmatpush1.msra.mxu0 0.0
        %762 = vmatprep.subr.mxu0 0.0
        %763 = vmatpush1.msra.mxu0 0.0
        %764 = vmatprep.subr.mxu0 0.0
        %765 = vmatpush1.msra.mxu0 0.0
        %766 = vmatprep.subr.mxu0 0.0
        %767 = vmatpush1.msra.mxu0 0.0
        %768 = vmatprep.subr.mxu0 0.0
        %769 = vmatpush1.msra.mxu0 0.0
        %770 = vmatprep.subr.mxu0 0.0
        %771 = vmatpush1.msra.mxu0 0.0
        %772 = vmatprep.subr.mxu0 0.0
        %773 = vmatpush1.msra.mxu0 0.0
        %774 = vmatprep.subr.mxu0 0.0
        %775 = vmatpush1.msra.mxu0 0.0
        %776 = vmatprep.subr.mxu0 0.0
        %777 = vmatpush1.msra.mxu0 0.0
        %778 = vmatprep.subr.mxu0 0.0
        %779 = vmatpush1.msra.mxu0 0.0
        %780 = vmatprep.mubr.f32.mxu0 0.0
        %781 = vmatmul.mubr.f32.gmra.mrb[0].mxu0 %v695
        %v782 = vpop.f32.mrb[0].mxu0
        %v783 = vadd.f32 0.0, %v782
        %v784 = vpop.f32.mrb[0].mxu0
        %v785 = vadd.f32 0.0, %v784
        %786 = vmatprep.mubr.f32.mxu0 0.0
        %787 = vmatmul.mubr.f32.gmra.mrb[0].mxu0 %v697
        %v788 = vpop.f32.mrb[0].mxu0
        %v789 = vadd.f32 0.0, %v788
        %v790 = vpop.f32.mrb[0].mxu0
        %v791 = vadd.f32 0.0, %v790
        %792 = vmatprep.mubr.f32.mxu0 0.0
        %793 = vmatmul.mubr.f32.gmra.mrb[0].mxu0 %v699
        %v794 = vpop.f32.mrb[0].mxu0
        %v795 = vadd.f32 0.0, %v794
        %v796 = vpop.f32.mrb[0].mxu0
        %v797 = vadd.f32 0.0, %v796
        %798 = vmatprep.mubr.f32.mxu0 0.0
        %799 = vmatmul.mubr.f32.gmra.mrb[0].mxu0 %v701
        %v800 = vpop.f32.mrb[0].mxu0
        %v801 = vadd.f32 0.0, %v800
        %v802 = vpop.f32.mrb[0].mxu0
        %v803 = vadd.f32 0.0, %v802
        %804 = vmatprep.mubr.f32.mxu0 0.0
        %805 = vmatmul.mubr.f32.gmra.mrb[0].mxu0 %v703
        %v806 = vpop.f32.mrb[0].mxu0
        %v807 = vadd.f32 0.0, %v806
        %v808 = vpop.f32.mrb[0].mxu0
        %v809 = vadd.f32 0.0, %v808
        %810 = vmatprep.mubr.f32.mxu0 0.0
        %811 = vmatmul.mubr.f32.gmra.mrb[0].mxu0 %v705
        %v812 = vpop.f32.mrb[0].mxu0
        %v813 = vadd.f32 0.0, %v812
        %v814 = vpop.f32.mrb[0].mxu0
        %v815 = vadd.f32 0.0, %v814
        %816 = vmatprep.mubr.f32.mxu0 0.0
        %817 = vmatmul.mubr.f32.gmra.mrb[0].mxu0 %v707
        %v818 = vpop.f32.mrb[0].mxu0
        %v819 = vadd.f32 0.0, %v818
        %v820 = vpop.f32.mrb[0].mxu0
        %v821 = vadd.f32 0.0, %v820
        %822 = vmatprep.mubr.f32.mxu0 0.0
        %823 = vmatmul.mubr.f32.gmra.mrb[0].mxu0 %v706
        %v824 = vpop.f32.mrb[0].mxu0
        %v825 = vadd.f32 0.0, %v824
        %v826 = vpop.f32.mrb[0].mxu0
        %v827 = vadd.f32 0.0, %v826
        %828 = vdwg.mxu0
        %829 = vmatprep.subr.mxu0 %v450
        %830 = vmatpush1.msra.mxu0 %v449
        %831 = vmatprep.subr.mxu0 %v452
        %832 = vmatpush1.msra.mxu0 %v451
        %833 = vmatprep.subr.mxu0 %v454
        %834 = vmatpush1.msra.mxu0 %v453
        %835 = vmatprep.subr.mxu0 %v456
        %836 = vmatpush1.msra.mxu0 %v455
        %837 = vmatprep.subr.mxu0 %v458
        %838 = vmatpush1.msra.mxu0 %v457
        %839 = vmatprep.subr.mxu0 %v460
        %840 = vmatpush1.msra.mxu0 %v459
        %841 = vmatprep.subr.mxu0 %v462
        %842 = vmatpush1.msra.mxu0 %v461
        %843 = vmatprep.subr.mxu0 %v464
        %844 = vmatpush1.msra.mxu0 %v463
        %845 = vmatprep.subr.mxu0 %v466
        %846 = vmatpush1.msra.mxu0 %v465
        %847 = vmatprep.subr.mxu0 %v468
        %848 = vmatpush1.msra.mxu0 %v467
        %849 = vmatprep.subr.mxu0 %v470
        %850 = vmatpush1.msra.mxu0 %v469
        %851 = vmatprep.subr.mxu0 %v472
        %852 = vmatpush1.msra.mxu0 %v471
        %853 = vmatprep.subr.mxu0 %v474
        %854 = vmatpush1.msra.mxu0 %v473
        %855 = vmatprep.subr.mxu0 %v476
        %856 = vmatpush1.msra.mxu0 %v475
        %857 = vmatprep.subr.mxu0 %v478
        %858 = vmatpush1.msra.mxu0 %v477
        %859 = vmatprep.subr.mxu0 %v480
        %860 = vmatpush1.msra.mxu0 %v479
        %861 = vmatprep.subr.mxu0 0.0
        %862 = vmatpush1.msra.mxu0 0.0
        %863 = vmatprep.subr.mxu0 0.0
        %864 = vmatpush1.msra.mxu0 0.0
        %865 = vmatprep.subr.mxu0 0.0
        %866 = vmatpush1.msra.mxu0 0.0
        %867 = vmatprep.subr.mxu0 0.0
        %868 = vmatpush1.msra.mxu0 0.0
        %869 = vmatprep.subr.mxu0 0.0
        %870 = vmatpush1.msra.mxu0 0.0
        %871 = vmatprep.subr.mxu0 0.0
        %872 = vmatpush1.msra.mxu0 0.0
        %873 = vmatprep.subr.mxu0 0.0
        %874 = vmatpush1.msra.mxu0 0.0
        %875 = vmatprep.subr.mxu0 0.0
        %876 = vmatpush1.msra.mxu0 0.0
        %877 = vmatprep.subr.mxu0 0.0
        %878 = vmatpush1.msra.mxu0 0.0
        %879 = vmatprep.subr.mxu0 0.0
        %880 = vmatpush1.msra.mxu0 0.0
        %881 = vmatprep.subr.mxu0 0.0
        %882 = vmatpush1.msra.mxu0 0.0
        %883 = vmatprep.subr.mxu0 0.0
        %884 = vmatpush1.msra.mxu0 0.0
        %885 = vmatprep.subr.mxu0 0.0
        %886 = vmatpush1.msra.mxu0 0.0
        %887 = vmatprep.subr.mxu0 0.0
        %888 = vmatpush1.msra.mxu0 0.0
        %889 = vmatprep.subr.mxu0 0.0
        %890 = vmatpush1.msra.mxu0 0.0
        %891 = vmatprep.subr.mxu0 0.0
        %892 = vmatpush1.msra.mxu0 0.0
        %893 = vmatprep.mubr.f32.mxu0 0.0
        %894 = vmatmul.mubr.f32.gmra.mrb[0].mxu0 %v441
        %v895 = vpop.f32.mrb[0].mxu0
        %v896 = vadd.f32 %v613, %v895
        %v897 = vpop.f32.mrb[0].mxu0
        %v898 = vadd.f32 %v615, %v897
        %899 = vmatprep.mubr.f32.mxu0 0.0
        %900 = vmatmul.mubr.f32.gmra.mrb[0].mxu0 %v442
        %v901 = vpop.f32.mrb[0].mxu0
        %v902 = vadd.f32 %v619, %v901
        %v903 = vpop.f32.mrb[0].mxu0
        %v904 = vadd.f32 %v621, %v903
        %905 = vmatprep.mubr.f32.mxu0 0.0
        %906 = vmatmul.mubr.f32.gmra.mrb[0].mxu0 %v443
        %v907 = vpop.f32.mrb[0].mxu0
        %v908 = vadd.f32 %v625, %v907
        %v909 = vpop.f32.mrb[0].mxu0
        %v910 = vadd.f32 %v627, %v909
        %911 = vmatprep.mubr.f32.mxu0 0.0
        %912 = vmatmul.mubr.f32.gmra.mrb[0].mxu0 %v444
        %v913 = vpop.f32.mrb[0].mxu0
        %v914 = vadd.f32 %v631, %v913
        %v915 = vpop.f32.mrb[0].mxu0
        %v916 = vadd.f32 %v633, %v915
        %917 = vmatprep.mubr.f32.mxu0 0.0
        %918 = vmatmul.mubr.f32.gmra.mrb[0].mxu0 %v445
        %v919 = vpop.f32.mrb[0].mxu0
        %v920 = vadd.f32 %v637, %v919
        %v921 = vpop.f32.mrb[0].mxu0
        %v922 = vadd.f32 %v639, %v921
        %923 = vmatprep.mubr.f32.mxu0 0.0
        %924 = vmatmul.mubr.f32.gmra.mrb[0].mxu0 %v446
        %v925 = vpop.f32.mrb[0].mxu0
        %v926 = vadd.f32 %v643, %v925
        %v927 = vpop.f32.mrb[0].mxu0
        %v928 = vadd.f32 %v645, %v927
        %929 = vmatprep.mubr.f32.mxu0 0.0
        %930 = vmatmul.mubr.f32.gmra.mrb[0].mxu0 %v447
        %v931 = vpop.f32.mrb[0].mxu0
        %v932 = vadd.f32 %v649, %v931
        %v933 = vpop.f32.mrb[0].mxu0
        %v934 = vadd.f32 %v651, %v933
        %935 = vmatprep.mubr.f32.mxu0 0.0
        %936 = vmatmul.mubr.f32.gmra.mrb[0].mxu0 %v448
        %v937 = vpop.f32.mrb[0].mxu0
        %v938 = vadd.f32 %v655, %v937
        %v939 = vpop.f32.mrb[0].mxu0
        %v940 = vadd.f32 %v657, %v939
        %941 = vdwg.mxu0
        %v942 = vadd.f32 %v896, %v783
        %v943 = vadd.f32 %v898, %v785
        %v944 = vadd.f32 %v902, %v789
        %v945 = vadd.f32 %v904, %v791
        %v946 = vadd.f32 %v908, %v795
        %v947 = vadd.f32 %v910, %v797
        %v948 = vadd.f32 %v914, %v801
        %v949 = vadd.f32 %v916, %v803
        %v950 = vadd.f32 %v920, %v807
        %v951 = vadd.f32 %v922, %v809
        %v952 = vadd.f32 %v926, %v813
        %v953 = vadd.f32 %v928, %v815
        %v954 = vadd.f32 %v932, %v819
        %v955 = vadd.f32 %v934, %v821
        %v956 = vadd.f32 %v938, %v825
        %v957 = vadd.f32 %v940, %v827
        %v958 = vld [vmem:[%s2] sm:$0x3]
        %v960 = vlaneseq
        %v961 = vshrl.u32 %v960, 7
        %v962 = vsub.s32 0, %v961
        %v963 = vrot.slane %v958, %v962
        %v964 = vlaneseq
        %v965 = vshrl.u32 %v964, 7
        %v966 = vsub.s32 1, %v965
        %v967 = vrot.slane %v958, %v966
        %v970 = vadd.f32 %v942, %v963
        %v971 = vadd.f32 %v943, %v967
        %v972 = vadd.f32 %v944, %v963
        %v973 = vadd.f32 %v945, %v967
        %v974 = vadd.f32 %v946, %v963
        %v975 = vadd.f32 %v947, %v967
        %v976 = vadd.f32 %v948, %v963
        %v977 = vadd.f32 %v949, %v967
        %v978 = vadd.f32 %v950, %v963
        %v979 = vadd.f32 %v951, %v967
        %v980 = vadd.f32 %v952, %v963
        %v981 = vadd.f32 %v953, %v967
        %v982 = vadd.f32 %v954, %v963
        %v983 = vadd.f32 %v955, %v967
        %v984 = vadd.f32 %v956, %v963
        %v985 = vadd.f32 %v957, %v967
        %v986 = vld [vmem:[%s3] sm:$0xff]
        %v987 = vld [vmem:[%s3 + $0x8] sm:$0xff]
        %v988 = vld [vmem:[%s3 + $0x10] sm:$0xff]
        %v989 = vld [vmem:[%s3 + $0x18] sm:$0xff]
        %v990 = vld [vmem:[%s3 + $0x20] sm:$0xff]
        %v991 = vld [vmem:[%s3 + $0x28] sm:$0xff]
        %v992 = vld [vmem:[%s3 + $0x30] sm:$0xff]
        %v993 = vld [vmem:[%s3 + $0x38] sm:$0xff]
        %v994 = vld [vmem:[%s3 + $0x40] sm:$0xff]
        %v995 = vld [vmem:[%s3 + $0x48] sm:$0xff]
        %v996 = vld [vmem:[%s3 + $0x50] sm:$0xff]
        %v997 = vld [vmem:[%s3 + $0x58] sm:$0xff]
        %v998 = vld [vmem:[%s3 + $0x60] sm:$0xff]
        %v999 = vld [vmem:[%s3 + $0x68] sm:$0xff]
        %v1000 = vld [vmem:[%s3 + $0x70] sm:$0xff]
        %v1001 = vld [vmem:[%s3 + $0x78] sm:$0xff]
        %v1002 = vld [vmem:[%s3 + $0x80] sm:$0xff]
        %v1003 = vld [vmem:[%s3 + $0x88] sm:$0xff]
        %v1004 = vld [vmem:[%s3 + $0x90] sm:$0xff]
        %v1005 = vld [vmem:[%s3 + $0x98] sm:$0xff]
        %v1006 = vld [vmem:[%s3 + $0xa0] sm:$0xff]
        %v1007 = vld [vmem:[%s3 + $0xa8] sm:$0xff]
        %v1008 = vld [vmem:[%s3 + $0xb0] sm:$0xff]
        %v1009 = vld [vmem:[%s3 + $0xb8] sm:$0xff]
        %v1010 = vld [vmem:[%s3 + $0xc0] sm:$0xff]
        %v1011 = vld [vmem:[%s3 + $0xc8] sm:$0xff]
        %v1012 = vld [vmem:[%s3 + $0xd0] sm:$0xff]
        %v1013 = vld [vmem:[%s3 + $0xd8] sm:$0xff]
        %v1014 = vld [vmem:[%s3 + $0xe0] sm:$0xff]
        %v1015 = vld [vmem:[%s3 + $0xe8] sm:$0xff]
        %v1016 = vld [vmem:[%s3 + $0xf0] sm:$0xff]
        %v1017 = vld [vmem:[%s3 + $0xf8] sm:$0xff]
        %v1018 = vld [vmem:[%s3 + $0x100] sm:$0xff]
        %v1019 = vld [vmem:[%s3 + $0x108] sm:$0xff]
        %v1020 = vld [vmem:[%s3 + $0x110] sm:$0xff]
        %v1021 = vld [vmem:[%s3 + $0x118] sm:$0xff]
        %v1022 = vld [vmem:[%s3 + $0x120] sm:$0xff]
        %v1023 = vld [vmem:[%s3 + $0x128] sm:$0xff]
        %v1024 = vld [vmem:[%s3 + $0x130] sm:$0xff]
        %v1025 = vld [vmem:[%s3 + $0x138] sm:$0xff]
        %v1026 = vld [vmem:[%s3 + $0x140] sm:$0xff]
        %v1027 = vld [vmem:[%s3 + $0x148] sm:$0xff]
        %v1028 = vld [vmem:[%s3 + $0x150] sm:$0xff]
        %v1029 = vld [vmem:[%s3 + $0x158] sm:$0xff]
        %v1030 = vld [vmem:[%s3 + $0x160] sm:$0xff]
        %v1031 = vld [vmem:[%s3 + $0x168] sm:$0xff]
        %v1032 = vld [vmem:[%s3 + $0x170] sm:$0xff]
        %v1033 = vld [vmem:[%s3 + $0x178] sm:$0xff]
        %v1034 = vld [vmem:[%s3 + $0x180] sm:$0xff]
        %v1035 = vld [vmem:[%s3 + $0x188] sm:$0xff]
        %v1036 = vld [vmem:[%s3 + $0x190] sm:$0xff]
        %v1037 = vld [vmem:[%s3 + $0x198] sm:$0xff]
        %v1038 = vld [vmem:[%s3 + $0x1a0] sm:$0xff]
        %v1039 = vld [vmem:[%s3 + $0x1a8] sm:$0xff]
        %v1040 = vld [vmem:[%s3 + $0x1b0] sm:$0xff]
        %v1041 = vld [vmem:[%s3 + $0x1b8] sm:$0xff]
        %v1042 = vld [vmem:[%s3 + $0x1c0] sm:$0xff]
        %v1043 = vld [vmem:[%s3 + $0x1c8] sm:$0xff]
        %v1044 = vld [vmem:[%s3 + $0x1d0] sm:$0xff]
        %v1045 = vld [vmem:[%s3 + $0x1d8] sm:$0xff]
        %s1046 = scalar_lea.vmem %s3, 480
        %v1047 = vld [vmem:[%s1046] sm:$0xff]
        %v1048 = vld [vmem:[%s1046 + $0x8] sm:$0xff]
        %v1049 = vld [vmem:[%s1046 + $0x10] sm:$0xff]
        %v1050 = vld [vmem:[%s1046 + $0x18] sm:$0xff]
        %v1051 = vld [vmem:[%s1046 + $0x20] sm:$0xff]
        %v1052 = vld [vmem:[%s1046 + $0x28] sm:$0xff]
        %v1053 = vld [vmem:[%s1046 + $0x30] sm:$0xff]
        %v1054 = vld [vmem:[%s1046 + $0x38] sm:$0xff]
        %v1055 = vld [vmem:[%s1046 + $0x40] sm:$0xff]
        %v1056 = vld [vmem:[%s1046 + $0x48] sm:$0xff]
        %v1057 = vld [vmem:[%s1046 + $0x50] sm:$0xff]
        %v1058 = vld [vmem:[%s1046 + $0x58] sm:$0xff]
        %v1059 = vld [vmem:[%s1046 + $0x60] sm:$0xff]
        %v1060 = vld [vmem:[%s1046 + $0x68] sm:$0xff]
        %v1061 = vld [vmem:[%s1046 + $0x70] sm:$0xff]
        %v1062 = vld [vmem:[%s1046 + $0x78] sm:$0xff]
        %v1063 = vld [vmem:[%s1046 + $0x80] sm:$0xff]
        %v1064 = vld [vmem:[%s1046 + $0x88] sm:$0xff]
        %v1065 = vld [vmem:[%s1046 + $0x90] sm:$0xff]
        %v1066 = vld [vmem:[%s1046 + $0x98] sm:$0xff]
        %v1067 = vld [vmem:[%s1046 + $0xa0] sm:$0xff]
        %v1068 = vld [vmem:[%s1046 + $0xa8] sm:$0xff]
        %v1069 = vld [vmem:[%s1046 + $0xb0] sm:$0xff]
        %v1070 = vld [vmem:[%s1046 + $0xb8] sm:$0xff]
        %v1071 = vld [vmem:[%s1046 + $0xc0] sm:$0xff]
        %v1072 = vld [vmem:[%s1046 + $0xc8] sm:$0xff]
        %v1073 = vld [vmem:[%s1046 + $0xd0] sm:$0xff]
        %v1074 = vld [vmem:[%s1046 + $0xd8] sm:$0xff]
        %v1075 = vld [vmem:[%s1046 + $0xe0] sm:$0xff]
        %v1076 = vld [vmem:[%s1046 + $0xe8] sm:$0xff]
        %v1077 = vld [vmem:[%s1046 + $0xf0] sm:$0xff]
        %v1078 = vld [vmem:[%s1046 + $0xf8] sm:$0xff]
        %v1079 = vld [vmem:[%s1046 + $0x100] sm:$0xff]
        %v1080 = vld [vmem:[%s1046 + $0x108] sm:$0xff]
        %v1081 = vld [vmem:[%s1046 + $0x110] sm:$0xff]
        %v1082 = vld [vmem:[%s1046 + $0x118] sm:$0xff]
        %v1083 = vld [vmem:[%s1046 + $0x120] sm:$0xff]
        %v1084 = vld [vmem:[%s1046 + $0x128] sm:$0xff]
        %v1085 = vld [vmem:[%s1046 + $0x130] sm:$0xff]
        %v1086 = vld [vmem:[%s1046 + $0x138] sm:$0xff]
        %v1087 = vld [vmem:[%s1046 + $0x140] sm:$0xff]
        %v1088 = vld [vmem:[%s1046 + $0x148] sm:$0xff]
        %v1089 = vld [vmem:[%s1046 + $0x150] sm:$0xff]
        %v1090 = vld [vmem:[%s1046 + $0x158] sm:$0xff]
        %v1091 = vld [vmem:[%s1046 + $0x160] sm:$0xff]
        %v1092 = vld [vmem:[%s1046 + $0x168] sm:$0xff]
        %v1093 = vld [vmem:[%s1046 + $0x170] sm:$0xff]
        %v1094 = vld [vmem:[%s1046 + $0x178] sm:$0xff]
        %v1095 = vld [vmem:[%s1046 + $0x180] sm:$0xff]
        %v1096 = vld [vmem:[%s1046 + $0x188] sm:$0xff]
        %v1097 = vld [vmem:[%s1046 + $0x190] sm:$0xff]
        %v1098 = vld [vmem:[%s1046 + $0x198] sm:$0xff]
        %v1099 = vld [vmem:[%s1046 + $0x1a0] sm:$0xff]
        %v1100 = vld [vmem:[%s1046 + $0x1a8] sm:$0xff]
        %v1101 = vld [vmem:[%s1046 + $0x1b0] sm:$0xff]
        %v1102 = vld [vmem:[%s1046 + $0x1b8] sm:$0xff]
        %v1103 = vld [vmem:[%s1046 + $0x1c0] sm:$0xff]
        %v1104 = vld [vmem:[%s1046 + $0x1c8] sm:$0xff]
        %v1105 = vld [vmem:[%s1046 + $0x1d0] sm:$0xff]
        %v1106 = vld [vmem:[%s1046 + $0x1d8] sm:$0xff]
        %v1123 = vrot.slane %v970, 1
        %v1124 = vrot.slane %v972, 1
        %v1125 = vsel %vm522, %v1123, %v1124
        %v1126 = vrot.slane %v971, 1
        %v1127 = vrot.slane %v973, 1
        %v1128 = vsel %vm522, %v1126, %v1127
        %v1129 = vrot.slane %v974, 1
        %v1130 = vsel %vm522, %v1124, %v1129
        %v1131 = vrot.slane %v975, 1
        %v1132 = vsel %vm522, %v1127, %v1131
        %v1133 = vrot.slane %v976, 1
        %v1134 = vsel %vm522, %v1129, %v1133
        %v1135 = vrot.slane %v977, 1
        %v1136 = vsel %vm522, %v1131, %v1135
        %v1137 = vrot.slane %v978, 1
        %v1138 = vsel %vm522, %v1133, %v1137
        %v1139 = vrot.slane %v979, 1
        %v1140 = vsel %vm522, %v1135, %v1139
        %v1141 = vrot.slane %v980, 1
        %v1142 = vsel %vm522, %v1137, %v1141
        %v1143 = vrot.slane %v981, 1
        %v1144 = vsel %vm522, %v1139, %v1143
        %v1145 = vrot.slane %v982, 1
        %v1146 = vsel %vm522, %v1141, %v1145
        %v1147 = vrot.slane %v983, 1
        %v1148 = vsel %vm522, %v1143, %v1147
        %v1149 = vrot.slane %v984, 1
        %v1150 = vsel %vm522, %v1145, %v1149
        %v1151 = vrot.slane %v985, 1
        %v1152 = vsel %vm522, %v1147, %v1151
        %vm1161 = vcmask 916480
        %v1162 = vsel %vm1161, %v1128, 0
        %v1164 = vsel %vm1161, %v1132, 0
        %v1166 = vsel %vm1161, %v1136, 0
        %v1168 = vsel %vm1161, %v1140, 0
        %v1170 = vsel %vm1161, %v1144, 0
        %v1172 = vsel %vm1161, %v1148, 0
        %v1174 = vsel %vm1161, %v1152, 0
        %v1176 = vsel %vm1161, %v1151, 0
        %1178 = vmatprep.subr.mxu0 %v1048
        %1179 = vmatpush1.msra.mxu0 %v1047
        %1180 = vmatprep.subr.mxu0 %v1050
        %1181 = vmatpush1.msra.mxu0 %v1049
        %1182 = vmatprep.subr.mxu0 %v1052
        %1183 = vmatpush1.msra.mxu0 %v1051
        %1184 = vmatprep.subr.mxu0 %v1054
        %1185 = vmatpush1.msra.mxu0 %v1053
        %1186 = vmatprep.subr.mxu0 %v1056
        %1187 = vmatpush1.msra.mxu0 %v1055
        %1188 = vmatprep.subr.mxu0 %v1058
        %1189 = vmatpush1.msra.mxu0 %v1057
        %1190 = vmatprep.subr.mxu0 %v1060
        %1191 = vmatpush1.msra.mxu0 %v1059
        %1192 = vmatprep.subr.mxu0 %v1062
        %1193 = vmatpush1.msra.mxu0 %v1061
        %1194 = vmatprep.subr.mxu0 %v1064
        %1195 = vmatpush1.msra.mxu0 %v1063
        %1196 = vmatprep.subr.mxu0 %v1066
        %1197 = vmatpush1.msra.mxu0 %v1065
        %1198 = vmatprep.subr.mxu0 %v1068
        %1199 = vmatpush1.msra.mxu0 %v1067
        %1200 = vmatprep.subr.mxu0 %v1070
        %1201 = vmatpush1.msra.mxu0 %v1069
        %1202 = vmatprep.subr.mxu0 %v1072
        %1203 = vmatpush1.msra.mxu0 %v1071
        %1204 = vmatprep.subr.mxu0 %v1074
        %1205 = vmatpush1.msra.mxu0 %v1073
        %1206 = vmatprep.subr.mxu0 %v1076
        %1207 = vmatpush1.msra.mxu0 %v1075
        %1208 = vmatprep.subr.mxu0 %v1078
        %1209 = vmatpush1.msra.mxu0 %v1077
        %1210 = vmatprep.subr.mxu0 %v1080
        %1211 = vmatpush1.msra.mxu0 %v1079
        %1212 = vmatprep.subr.mxu0 %v1082
        %1213 = vmatpush1.msra.mxu0 %v1081
        %1214 = vmatprep.subr.mxu0 %v1084
        %1215 = vmatpush1.msra.mxu0 %v1083
        %1216 = vmatprep.subr.mxu0 %v1086
        %1217 = vmatpush1.msra.mxu0 %v1085
        %1218 = vmatprep.subr.mxu0 %v1088
        %1219 = vmatpush1.msra.mxu0 %v1087
        %1220 = vmatprep.subr.mxu0 %v1090
        %1221 = vmatpush1.msra.mxu0 %v1089
        %1222 = vmatprep.subr.mxu0 %v1092
        %1223 = vmatpush1.msra.mxu0 %v1091
        %1224 = vmatprep.subr.mxu0 %v1094
        %1225 = vmatpush1.msra.mxu0 %v1093
        %1226 = vmatprep.subr.mxu0 %v1096
        %1227 = vmatpush1.msra.mxu0 %v1095
        %1228 = vmatprep.subr.mxu0 %v1098
        %1229 = vmatpush1.msra.mxu0 %v1097
        %1230 = vmatprep.subr.mxu0 %v1100
        %1231 = vmatpush1.msra.mxu0 %v1099
        %1232 = vmatprep.subr.mxu0 %v1102
        %1233 = vmatpush1.msra.mxu0 %v1101
        %1234 = vmatprep.subr.mxu0 %v1104
        %1235 = vmatpush1.msra.mxu0 %v1103
        %1236 = vmatprep.subr.mxu0 %v1106
        %1237 = vmatpush1.msra.mxu0 %v1105
        %1238 = vmatprep.subr.mxu0 0.0
        %1239 = vmatpush1.msra.mxu0 0.0
        %1240 = vmatprep.subr.mxu0 0.0
        %1241 = vmatpush1.msra.mxu0 0.0
        %1242 = vmatprep.mubr.f32.mxu0 %v1162
        %1243 = vmatmul.mubr.f32.gmra.mrb[0].mxu0 %v1125
        %v1244 = vpop.f32.mrb[0].mxu0
        %v1245 = vadd.f32 0.0, %v1244
        %v1246 = vpop.f32.mrb[0].mxu0
        %v1247 = vadd.f32 0.0, %v1246
        %1248 = vmatprep.mubr.f32.mxu0 %v1164
        %1249 = vmatmul.mubr.f32.gmra.mrb[0].mxu0 %v1130
        %v1250 = vpop.f32.mrb[0].mxu0
        %v1251 = vadd.f32 0.0, %v1250
        %v1252 = vpop.f32.mrb[0].mxu0
        %v1253 = vadd.f32 0.0, %v1252
        %1254 = vmatprep.mubr.f32.mxu0 %v1166
        %1255 = vmatmul.mubr.f32.gmra.mrb[0].mxu0 %v1134
        %v1256 = vpop.f32.mrb[0].mxu0
        %v1257 = vadd.f32 0.0, %v1256
        %v1258 = vpop.f32.mrb[0].mxu0
        %v1259 = vadd.f32 0.0, %v1258
        %1260 = vmatprep.mubr.f32.mxu0 %v1168
        %1261 = vmatmul.mubr.f32.gmra.mrb[0].mxu0 %v1138
        %v1262 = vpop.f32.mrb[0].mxu0
        %v1263 = vadd.f32 0.0, %v1262
        %v1264 = vpop.f32.mrb[0].mxu0
        %v1265 = vadd.f32 0.0, %v1264
        %1266 = vmatprep.mubr.f32.mxu0 %v1170
        %1267 = vmatmul.mubr.f32.gmra.mrb[0].mxu0 %v1142
        %v1268 = vpop.f32.mrb[0].mxu0
        %v1269 = vadd.f32 0.0, %v1268
        %v1270 = vpop.f32.mrb[0].mxu0
        %v1271 = vadd.f32 0.0, %v1270
        %1272 = vmatprep.mubr.f32.mxu0 %v1172
        %1273 = vmatmul.mubr.f32.gmra.mrb[0].mxu0 %v1146
        %v1274 = vpop.f32.mrb[0].mxu0
        %v1275 = vadd.f32 0.0, %v1274
        %v1276 = vpop.f32.mrb[0].mxu0
        %v1277 = vadd.f32 0.0, %v1276
        %1278 = vmatprep.mubr.f32.mxu0 %v1174
        %1279 = vmatmul.mubr.f32.gmra.mrb[0].mxu0 %v1150
        %v1280 = vpop.f32.mrb[0].mxu0
        %v1281 = vadd.f32 0.0, %v1280
        %v1282 = vpop.f32.mrb[0].mxu0
        %v1283 = vadd.f32 0.0, %v1282
        %1284 = vmatprep.mubr.f32.mxu0 %v1176
        %1285 = vmatmul.mubr.f32.gmra.mrb[0].mxu0 %v1149
        %v1286 = vpop.f32.mrb[0].mxu0
        %v1287 = vadd.f32 0.0, %v1286
        %v1288 = vpop.f32.mrb[0].mxu0
        %v1289 = vadd.f32 0.0, %v1288
        %1290 = vdwg.mxu0
        %s1291 = scalar_lea.vmem %s3, 960
        %v1292 = vld [vmem:[%s1291] sm:$0xff]
        %v1293 = vld [vmem:[%s1291 + $0x8] sm:$0xff]
        %v1294 = vld [vmem:[%s1291 + $0x10] sm:$0xff]
        %v1295 = vld [vmem:[%s1291 + $0x18] sm:$0xff]
        %v1296 = vld [vmem:[%s1291 + $0x20] sm:$0xff]
        %v1297 = vld [vmem:[%s1291 + $0x28] sm:$0xff]
        %v1298 = vld [vmem:[%s1291 + $0x30] sm:$0xff]
        %v1299 = vld [vmem:[%s1291 + $0x38] sm:$0xff]
        %v1300 = vld [vmem:[%s1291 + $0x40] sm:$0xff]
        %v1301 = vld [vmem:[%s1291 + $0x48] sm:$0xff]
        %v1302 = vld [vmem:[%s1291 + $0x50] sm:$0xff]
        %v1303 = vld [vmem:[%s1291 + $0x58] sm:$0xff]
        %v1304 = vld [vmem:[%s1291 + $0x60] sm:$0xff]
        %v1305 = vld [vmem:[%s1291 + $0x68] sm:$0xff]
        %v1306 = vld [vmem:[%s1291 + $0x70] sm:$0xff]
        %v1307 = vld [vmem:[%s1291 + $0x78] sm:$0xff]
        %v1308 = vld [vmem:[%s1291 + $0x80] sm:$0xff]
        %v1309 = vld [vmem:[%s1291 + $0x88] sm:$0xff]
        %v1310 = vld [vmem:[%s1291 + $0x90] sm:$0xff]
        %v1311 = vld [vmem:[%s1291 + $0x98] sm:$0xff]
        %v1312 = vld [vmem:[%s1291 + $0xa0] sm:$0xff]
        %v1313 = vld [vmem:[%s1291 + $0xa8] sm:$0xff]
        %v1314 = vld [vmem:[%s1291 + $0xb0] sm:$0xff]
        %v1315 = vld [vmem:[%s1291 + $0xb8] sm:$0xff]
        %v1316 = vld [vmem:[%s1291 + $0xc0] sm:$0xff]
        %v1317 = vld [vmem:[%s1291 + $0xc8] sm:$0xff]
        %v1318 = vld [vmem:[%s1291 + $0xd0] sm:$0xff]
        %v1319 = vld [vmem:[%s1291 + $0xd8] sm:$0xff]
        %v1320 = vld [vmem:[%s1291 + $0xe0] sm:$0xff]
        %v1321 = vld [vmem:[%s1291 + $0xe8] sm:$0xff]
        %v1322 = vld [vmem:[%s1291 + $0xf0] sm:$0xff]
        %v1323 = vld [vmem:[%s1291 + $0xf8] sm:$0xff]
        %v1324 = vld [vmem:[%s1291 + $0x100] sm:$0xff]
        %v1325 = vld [vmem:[%s1291 + $0x108] sm:$0xff]
        %v1326 = vld [vmem:[%s1291 + $0x110] sm:$0xff]
        %v1327 = vld [vmem:[%s1291 + $0x118] sm:$0xff]
        %v1328 = vld [vmem:[%s1291 + $0x120] sm:$0xff]
        %v1329 = vld [vmem:[%s1291 + $0x128] sm:$0xff]
        %v1330 = vld [vmem:[%s1291 + $0x130] sm:$0xff]
        %v1331 = vld [vmem:[%s1291 + $0x138] sm:$0xff]
        %v1332 = vld [vmem:[%s1291 + $0x140] sm:$0xff]
        %v1333 = vld [vmem:[%s1291 + $0x148] sm:$0xff]
        %v1334 = vld [vmem:[%s1291 + $0x150] sm:$0xff]
        %v1335 = vld [vmem:[%s1291 + $0x158] sm:$0xff]
        %v1336 = vld [vmem:[%s1291 + $0x160] sm:$0xff]
        %v1337 = vld [vmem:[%s1291 + $0x168] sm:$0xff]
        %v1338 = vld [vmem:[%s1291 + $0x170] sm:$0xff]
        %v1339 = vld [vmem:[%s1291 + $0x178] sm:$0xff]
        %v1340 = vld [vmem:[%s1291 + $0x180] sm:$0xff]
        %v1341 = vld [vmem:[%s1291 + $0x188] sm:$0xff]
        %v1342 = vld [vmem:[%s1291 + $0x190] sm:$0xff]
        %v1343 = vld [vmem:[%s1291 + $0x198] sm:$0xff]
        %v1344 = vld [vmem:[%s1291 + $0x1a0] sm:$0xff]
        %v1345 = vld [vmem:[%s1291 + $0x1a8] sm:$0xff]
        %v1346 = vld [vmem:[%s1291 + $0x1b0] sm:$0xff]
        %v1347 = vld [vmem:[%s1291 + $0x1b8] sm:$0xff]
        %v1348 = vld [vmem:[%s1291 + $0x1c0] sm:$0xff]
        %v1349 = vld [vmem:[%s1291 + $0x1c8] sm:$0xff]
        %v1350 = vld [vmem:[%s1291 + $0x1d0] sm:$0xff]
        %v1351 = vld [vmem:[%s1291 + $0x1d8] sm:$0xff]
        %v1352 = vrot.slane %v970, 2
        %v1353 = vrot.slane %v972, 2
        %v1354 = vsel %vm692, %v1352, %v1353
        %v1355 = vrot.slane %v971, 2
        %v1356 = vrot.slane %v973, 2
        %v1357 = vsel %vm692, %v1355, %v1356
        %v1358 = vrot.slane %v974, 2
        %v1359 = vsel %vm692, %v1353, %v1358
        %v1360 = vrot.slane %v975, 2
        %v1361 = vsel %vm692, %v1356, %v1360
        %v1362 = vrot.slane %v976, 2
        %v1363 = vsel %vm692, %v1358, %v1362
        %v1364 = vrot.slane %v977, 2
        %v1365 = vsel %vm692, %v1360, %v1364
        %v1366 = vrot.slane %v978, 2
        %v1367 = vsel %vm692, %v1362, %v1366
        %v1368 = vrot.slane %v979, 2
        %v1369 = vsel %vm692, %v1364, %v1368
        %v1370 = vrot.slane %v980, 2
        %v1371 = vsel %vm692, %v1366, %v1370
        %v1372 = vrot.slane %v981, 2
        %v1373 = vsel %vm692, %v1368, %v1372
        %v1374 = vrot.slane %v982, 2
        %v1375 = vsel %vm692, %v1370, %v1374
        %v1376 = vrot.slane %v983, 2
        %v1377 = vsel %vm692, %v1372, %v1376
        %v1378 = vrot.slane %v984, 2
        %v1379 = vsel %vm692, %v1374, %v1378
        %v1380 = vrot.slane %v985, 2
        %v1381 = vsel %vm692, %v1376, %v1380
        %v1390 = vsel %vm1161, %v1357, 0
        %v1392 = vsel %vm1161, %v1361, 0
        %v1394 = vsel %vm1161, %v1365, 0
        %v1396 = vsel %vm1161, %v1369, 0
        %v1398 = vsel %vm1161, %v1373, 0
        %v1400 = vsel %vm1161, %v1377, 0
        %v1402 = vsel %vm1161, %v1381, 0
        %v1404 = vsel %vm1161, %v1380, 0
        %1406 = vmatprep.subr.mxu0 %v1293
        %1407 = vmatpush1.msra.mxu0 %v1292
        %1408 = vmatprep.subr.mxu0 %v1295
        %1409 = vmatpush1.msra.mxu0 %v1294
        %1410 = vmatprep.subr.mxu0 %v1297
        %1411 = vmatpush1.msra.mxu0 %v1296
        %1412 = vmatprep.subr.mxu0 %v1299
        %1413 = vmatpush1.msra.mxu0 %v1298
        %1414 = vmatprep.subr.mxu0 %v1301
        %1415 = vmatpush1.msra.mxu0 %v1300
        %1416 = vmatprep.subr.mxu0 %v1303
        %1417 = vmatpush1.msra.mxu0 %v1302
        %1418 = vmatprep.subr.mxu0 %v1305
        %1419 = vmatpush1.msra.mxu0 %v1304
        %1420 = vmatprep.subr.mxu0 %v1307
        %1421 = vmatpush1.msra.mxu0 %v1306
        %1422 = vmatprep.subr.mxu0 %v1309
        %1423 = vmatpush1.msra.mxu0 %v1308
        %1424 = vmatprep.subr.mxu0 %v1311
        %1425 = vmatpush1.msra.mxu0 %v1310
        %1426 = vmatprep.subr.mxu0 %v1313
        %1427 = vmatpush1.msra.mxu0 %v1312
        %1428 = vmatprep.subr.mxu0 %v1315
        %1429 = vmatpush1.msra.mxu0 %v1314
        %1430 = vmatprep.subr.mxu0 %v1317
        %1431 = vmatpush1.msra.mxu0 %v1316
        %1432 = vmatprep.subr.mxu0 %v1319
        %1433 = vmatpush1.msra.mxu0 %v1318
        %1434 = vmatprep.subr.mxu0 %v1321
        %1435 = vmatpush1.msra.mxu0 %v1320
        %1436 = vmatprep.subr.mxu0 %v1323
        %1437 = vmatpush1.msra.mxu0 %v1322
        %1438 = vmatprep.subr.mxu0 %v1325
        %1439 = vmatpush1.msra.mxu0 %v1324
        %1440 = vmatprep.subr.mxu0 %v1327
        %1441 = vmatpush1.msra.mxu0 %v1326
        %1442 = vmatprep.subr.mxu0 %v1329
        %1443 = vmatpush1.msra.mxu0 %v1328
        %1444 = vmatprep.subr.mxu0 %v1331
        %1445 = vmatpush1.msra.mxu0 %v1330
        %1446 = vmatprep.subr.mxu0 %v1333
        %1447 = vmatpush1.msra.mxu0 %v1332
        %1448 = vmatprep.subr.mxu0 %v1335
        %1449 = vmatpush1.msra.mxu0 %v1334
        %1450 = vmatprep.subr.mxu0 %v1337
        %1451 = vmatpush1.msra.mxu0 %v1336
        %1452 = vmatprep.subr.mxu0 %v1339
        %1453 = vmatpush1.msra.mxu0 %v1338
        %1454 = vmatprep.subr.mxu0 %v1341
        %1455 = vmatpush1.msra.mxu0 %v1340
        %1456 = vmatprep.subr.mxu0 %v1343
        %1457 = vmatpush1.msra.mxu0 %v1342
        %1458 = vmatprep.subr.mxu0 %v1345
        %1459 = vmatpush1.msra.mxu0 %v1344
        %1460 = vmatprep.subr.mxu0 %v1347
        %1461 = vmatpush1.msra.mxu0 %v1346
        %1462 = vmatprep.subr.mxu0 %v1349
        %1463 = vmatpush1.msra.mxu0 %v1348
        %1464 = vmatprep.subr.mxu0 %v1351
        %1465 = vmatpush1.msra.mxu0 %v1350
        %1466 = vmatprep.subr.mxu0 0.0
        %1467 = vmatpush1.msra.mxu0 0.0
        %1468 = vmatprep.subr.mxu0 0.0
        %1469 = vmatpush1.msra.mxu0 0.0
        %1470 = vmatprep.mubr.f32.mxu0 %v1390
        %1471 = vmatmul.mubr.f32.gmra.mrb[0].mxu0 %v1354
        %v1472 = vpop.f32.mrb[0].mxu0
        %v1473 = vadd.f32 0.0, %v1472
        %v1474 = vpop.f32.mrb[0].mxu0
        %v1475 = vadd.f32 0.0, %v1474
        %1476 = vmatprep.mubr.f32.mxu0 %v1392
        %1477 = vmatmul.mubr.f32.gmra.mrb[0].mxu0 %v1359
        %v1478 = vpop.f32.mrb[0].mxu0
        %v1479 = vadd.f32 0.0, %v1478
        %v1480 = vpop.f32.mrb[0].mxu0
        %v1481 = vadd.f32 0.0, %v1480
        %1482 = vmatprep.mubr.f32.mxu0 %v1394
        %1483 = vmatmul.mubr.f32.gmra.mrb[0].mxu0 %v1363
        %v1484 = vpop.f32.mrb[0].mxu0
        %v1485 = vadd.f32 0.0, %v1484
        %v1486 = vpop.f32.mrb[0].mxu0
        %v1487 = vadd.f32 0.0, %v1486
        %1488 = vmatprep.mubr.f32.mxu0 %v1396
        %1489 = vmatmul.mubr.f32.gmra.mrb[0].mxu0 %v1367
        %v1490 = vpop.f32.mrb[0].mxu0
        %v1491 = vadd.f32 0.0, %v1490
        %v1492 = vpop.f32.mrb[0].mxu0
        %v1493 = vadd.f32 0.0, %v1492
        %1494 = vmatprep.mubr.f32.mxu0 %v1398
        %1495 = vmatmul.mubr.f32.gmra.mrb[0].mxu0 %v1371
        %v1496 = vpop.f32.mrb[0].mxu0
        %v1497 = vadd.f32 0.0, %v1496
        %v1498 = vpop.f32.mrb[0].mxu0
        %v1499 = vadd.f32 0.0, %v1498
        %1500 = vmatprep.mubr.f32.mxu0 %v1400
        %1501 = vmatmul.mubr.f32.gmra.mrb[0].mxu0 %v1375
        %v1502 = vpop.f32.mrb[0].mxu0
        %v1503 = vadd.f32 0.0, %v1502
        %v1504 = vpop.f32.mrb[0].mxu0
        %v1505 = vadd.f32 0.0, %v1504
        %1506 = vmatprep.mubr.f32.mxu0 %v1402
        %1507 = vmatmul.mubr.f32.gmra.mrb[0].mxu0 %v1379
        %v1508 = vpop.f32.mrb[0].mxu0
        %v1509 = vadd.f32 0.0, %v1508
        %v1510 = vpop.f32.mrb[0].mxu0
        %v1511 = vadd.f32 0.0, %v1510
        %1512 = vmatprep.mubr.f32.mxu0 %v1404
        %1513 = vmatmul.mubr.f32.gmra.mrb[0].mxu0 %v1378
        %v1514 = vpop.f32.mrb[0].mxu0
        %v1515 = vadd.f32 0.0, %v1514
        %v1516 = vpop.f32.mrb[0].mxu0
        %v1517 = vadd.f32 0.0, %v1516
        %1518 = vdwg.mxu0
        %v1519 = vsel %vm1161, %v971, 0
        %v1521 = vsel %vm1161, %v973, 0
        %v1523 = vsel %vm1161, %v975, 0
        %v1525 = vsel %vm1161, %v977, 0
        %v1527 = vsel %vm1161, %v979, 0
        %v1529 = vsel %vm1161, %v981, 0
        %v1531 = vsel %vm1161, %v983, 0
        %v1533 = vsel %vm1161, %v985, 0
        %1535 = vmatprep.subr.mxu0 %v987
        %1536 = vmatpush1.msra.mxu0 %v986
        %1537 = vmatprep.subr.mxu0 %v989
        %1538 = vmatpush1.msra.mxu0 %v988
        %1539 = vmatprep.subr.mxu0 %v991
        %1540 = vmatpush1.msra.mxu0 %v990
        %1541 = vmatprep.subr.mxu0 %v993
        %1542 = vmatpush1.msra.mxu0 %v992
        %1543 = vmatprep.subr.mxu0 %v995
        %1544 = vmatpush1.msra.mxu0 %v994
        %1545 = vmatprep.subr.mxu0 %v997
        %1546 = vmatpush1.msra.mxu0 %v996
        %1547 = vmatprep.subr.mxu0 %v999
        %1548 = vmatpush1.msra.mxu0 %v998
        %1549 = vmatprep.subr.mxu0 %v1001
        %1550 = vmatpush1.msra.mxu0 %v1000
        %1551 = vmatprep.subr.mxu0 %v1003
        %1552 = vmatpush1.msra.mxu0 %v1002
        %1553 = vmatprep.subr.mxu0 %v1005
        %1554 = vmatpush1.msra.mxu0 %v1004
        %1555 = vmatprep.subr.mxu0 %v1007
        %1556 = vmatpush1.msra.mxu0 %v1006
        %1557 = vmatprep.subr.mxu0 %v1009
        %1558 = vmatpush1.msra.mxu0 %v1008
        %1559 = vmatprep.subr.mxu0 %v1011
        %1560 = vmatpush1.msra.mxu0 %v1010
        %1561 = vmatprep.subr.mxu0 %v1013
        %1562 = vmatpush1.msra.mxu0 %v1012
        %1563 = vmatprep.subr.mxu0 %v1015
        %1564 = vmatpush1.msra.mxu0 %v1014
        %1565 = vmatprep.subr.mxu0 %v1017
        %1566 = vmatpush1.msra.mxu0 %v1016
        %1567 = vmatprep.subr.mxu0 %v1019
        %1568 = vmatpush1.msra.mxu0 %v1018
        %1569 = vmatprep.subr.mxu0 %v1021
        %1570 = vmatpush1.msra.mxu0 %v1020
        %1571 = vmatprep.subr.mxu0 %v1023
        %1572 = vmatpush1.msra.mxu0 %v1022
        %1573 = vmatprep.subr.mxu0 %v1025
        %1574 = vmatpush1.msra.mxu0 %v1024
        %1575 = vmatprep.subr.mxu0 %v1027
        %1576 = vmatpush1.msra.mxu0 %v1026
        %1577 = vmatprep.subr.mxu0 %v1029
        %1578 = vmatpush1.msra.mxu0 %v1028
        %1579 = vmatprep.subr.mxu0 %v1031
        %1580 = vmatpush1.msra.mxu0 %v1030
        %1581 = vmatprep.subr.mxu0 %v1033
        %1582 = vmatpush1.msra.mxu0 %v1032
        %1583 = vmatprep.subr.mxu0 %v1035
        %1584 = vmatpush1.msra.mxu0 %v1034
        %1585 = vmatprep.subr.mxu0 %v1037
        %1586 = vmatpush1.msra.mxu0 %v1036
        %1587 = vmatprep.subr.mxu0 %v1039
        %1588 = vmatpush1.msra.mxu0 %v1038
        %1589 = vmatprep.subr.mxu0 %v1041
        %1590 = vmatpush1.msra.mxu0 %v1040
        %1591 = vmatprep.subr.mxu0 %v1043
        %1592 = vmatpush1.msra.mxu0 %v1042
        %1593 = vmatprep.subr.mxu0 %v1045
        %1594 = vmatpush1.msra.mxu0 %v1044
        %1595 = vmatprep.subr.mxu0 0.0
        %1596 = vmatpush1.msra.mxu0 0.0
        %1597 = vmatprep.subr.mxu0 0.0
        %1598 = vmatpush1.msra.mxu0 0.0
        %1599 = vmatprep.mubr.f32.mxu0 %v1519
        %1600 = vmatmul.mubr.f32.gmra.mrb[0].mxu0 %v970
        %v1601 = vpop.f32.mrb[0].mxu0
        %v1602 = vadd.f32 %v1245, %v1601
        %v1603 = vpop.f32.mrb[0].mxu0
        %v1604 = vadd.f32 %v1247, %v1603
        %1605 = vmatprep.mubr.f32.mxu0 %v1521
        %1606 = vmatmul.mubr.f32.gmra.mrb[0].mxu0 %v972
        %v1607 = vpop.f32.mrb[0].mxu0
        %v1608 = vadd.f32 %v1251, %v1607
        %v1609 = vpop.f32.mrb[0].mxu0
        %v1610 = vadd.f32 %v1253, %v1609
        %1611 = vmatprep.mubr.f32.mxu0 %v1523
        %1612 = vmatmul.mubr.f32.gmra.mrb[0].mxu0 %v974
        %v1613 = vpop.f32.mrb[0].mxu0
        %v1614 = vadd.f32 %v1257, %v1613
        %v1615 = vpop.f32.mrb[0].mxu0
        %v1616 = vadd.f32 %v1259, %v1615
        %1617 = vmatprep.mubr.f32.mxu0 %v1525
        %1618 = vmatmul.mubr.f32.gmra.mrb[0].mxu0 %v976
        %v1619 = vpop.f32.mrb[0].mxu0
        %v1620 = vadd.f32 %v1263, %v1619
        %v1621 = vpop.f32.mrb[0].mxu0
        %v1622 = vadd.f32 %v1265, %v1621
        %1623 = vmatprep.mubr.f32.mxu0 %v1527
        %1624 = vmatmul.mubr.f32.gmra.mrb[0].mxu0 %v978
        %v1625 = vpop.f32.mrb[0].mxu0
        %v1626 = vadd.f32 %v1269, %v1625
        %v1627 = vpop.f32.mrb[0].mxu0
        %v1628 = vadd.f32 %v1271, %v1627
        %1629 = vmatprep.mubr.f32.mxu0 %v1529
        %1630 = vmatmul.mubr.f32.gmra.mrb[0].mxu0 %v980
        %v1631 = vpop.f32.mrb[0].mxu0
        %v1632 = vadd.f32 %v1275, %v1631
        %v1633 = vpop.f32.mrb[0].mxu0
        %v1634 = vadd.f32 %v1277, %v1633
        %1635 = vmatprep.mubr.f32.mxu0 %v1531
        %1636 = vmatmul.mubr.f32.gmra.mrb[0].mxu0 %v982
        %v1637 = vpop.f32.mrb[0].mxu0
        %v1638 = vadd.f32 %v1281, %v1637
        %v1639 = vpop.f32.mrb[0].mxu0
        %v1640 = vadd.f32 %v1283, %v1639
        %1641 = vmatprep.mubr.f32.mxu0 %v1533
        %1642 = vmatmul.mubr.f32.gmra.mrb[0].mxu0 %v984
        %v1643 = vpop.f32.mrb[0].mxu0
        %v1644 = vadd.f32 %v1287, %v1643
        %v1645 = vpop.f32.mrb[0].mxu0
        %v1646 = vadd.f32 %v1289, %v1645
        %1647 = vdwg.mxu0
        %v1648 = vadd.f32 %v1602, %v1473
        %v1649 = vadd.f32 %v1604, %v1475
        %v1650 = vadd.f32 %v1608, %v1479
        %v1651 = vadd.f32 %v1610, %v1481
        %v1652 = vadd.f32 %v1614, %v1485
        %v1653 = vadd.f32 %v1616, %v1487
        %v1654 = vadd.f32 %v1620, %v1491
        %v1655 = vadd.f32 %v1622, %v1493
        %v1656 = vadd.f32 %v1626, %v1497
        %v1657 = vadd.f32 %v1628, %v1499
        %v1658 = vadd.f32 %v1632, %v1503
        %v1659 = vadd.f32 %v1634, %v1505
        %v1660 = vadd.f32 %v1638, %v1509
        %v1661 = vadd.f32 %v1640, %v1511
        %v1662 = vadd.f32 %v1644, %v1515
        %v1663 = vadd.f32 %v1646, %v1517
        %v1664 = vld [vmem:[%s4] sm:$0x3]
        %v1666 = vlaneseq
        %v1667 = vshrl.u32 %v1666, 7
        %v1668 = vsub.s32 0, %v1667
        %v1669 = vrot.slane %v1664, %v1668
        %v1670 = vlaneseq
        %v1671 = vshrl.u32 %v1670, 7
        %v1672 = vsub.s32 1, %v1671
        %v1673 = vrot.slane %v1664, %v1672
        %v1676 = vadd.f32 %v1648, %v1669
        %v1677 = vadd.f32 %v1649, %v1673
        %v1678 = vadd.f32 %v1650, %v1669
        %v1679 = vadd.f32 %v1651, %v1673
        %v1680 = vadd.f32 %v1652, %v1669
        %v1681 = vadd.f32 %v1653, %v1673
        %v1682 = vadd.f32 %v1654, %v1669
        %v1683 = vadd.f32 %v1655, %v1673
        %v1684 = vadd.f32 %v1656, %v1669
        %v1685 = vadd.f32 %v1657, %v1673
        %v1686 = vadd.f32 %v1658, %v1669
        %v1687 = vadd.f32 %v1659, %v1673
        %v1688 = vadd.f32 %v1660, %v1669
        %v1689 = vadd.f32 %v1661, %v1673
        %v1690 = vadd.f32 %v1662, %v1669
        %v1691 = vadd.f32 %v1663, %v1673
        %v1708 = vrot.slane %v1676, 1
        %v1709 = vrot.slane %v1678, 1
        %v1710 = vsel %vm522, %v1708, %v1709
        %v1711 = vrot.slane %v1677, 1
        %v1712 = vrot.slane %v1679, 1
        %v1713 = vsel %vm522, %v1711, %v1712
        %v1714 = vrot.slane %v1680, 1
        %v1715 = vsel %vm522, %v1709, %v1714
        %v1716 = vrot.slane %v1681, 1
        %v1717 = vsel %vm522, %v1712, %v1716
        %v1718 = vrot.slane %v1682, 1
        %v1719 = vsel %vm522, %v1714, %v1718
        %v1720 = vrot.slane %v1683, 1
        %v1721 = vsel %vm522, %v1716, %v1720
        %v1722 = vrot.slane %v1684, 1
        %v1723 = vsel %vm522, %v1718, %v1722
        %v1724 = vrot.slane %v1685, 1
        %v1725 = vsel %vm522, %v1720, %v1724
        %v1726 = vrot.slane %v1686, 1
        %v1727 = vsel %vm522, %v1722, %v1726
        %v1728 = vrot.slane %v1687, 1
        %v1729 = vsel %vm522, %v1724, %v1728
        %v1730 = vrot.slane %v1688, 1
        %v1731 = vsel %vm522, %v1726, %v1730
        %v1732 = vrot.slane %v1689, 1
        %v1733 = vsel %vm522, %v1728, %v1732
        %v1734 = vrot.slane %v1690, 1
        %v1735 = vsel %vm522, %v1730, %v1734
        %v1736 = vrot.slane %v1691, 1
        %v1737 = vsel %vm522, %v1732, %v1736
        %v1754 = vmax.f32 %v1676, %v1710
        %v1755 = vmax.f32 %v1677, %v1713
        %v1756 = vmax.f32 %v1678, %v1715
        %v1757 = vmax.f32 %v1679, %v1717
        %v1758 = vmax.f32 %v1680, %v1719
        %v1759 = vmax.f32 %v1681, %v1721
        %v1760 = vmax.f32 %v1682, %v1723
        %v1761 = vmax.f32 %v1683, %v1725
        %v1762 = vmax.f32 %v1684, %v1727
        %v1763 = vmax.f32 %v1685, %v1729
        %v1764 = vmax.f32 %v1686, %v1731
        %v1765 = vmax.f32 %v1687, %v1733
        %v1766 = vmax.f32 %v1688, %v1735
        %v1767 = vmax.f32 %v1689, %v1737
        %v1768 = vmax.f32 %v1690, %v1734
        %v1769 = vmax.f32 %v1691, %v1736
        %v1770 = vrot.slane %v1676, 2
        %v1771 = vrot.slane %v1678, 2
        %v1772 = vsel %vm692, %v1770, %v1771
        %v1773 = vrot.slane %v1677, 2
        %v1774 = vrot.slane %v1679, 2
        %v1775 = vsel %vm692, %v1773, %v1774
        %v1776 = vrot.slane %v1680, 2
        %v1777 = vsel %vm692, %v1771, %v1776
        %v1778 = vrot.slane %v1681, 2
        %v1779 = vsel %vm692, %v1774, %v1778
        %v1780 = vrot.slane %v1682, 2
        %v1781 = vsel %vm692, %v1776, %v1780
        %v1782 = vrot.slane %v1683, 2
        %v1783 = vsel %vm692, %v1778, %v1782
        %v1784 = vrot.slane %v1684, 2
        %v1785 = vsel %vm692, %v1780, %v1784
        %v1786 = vrot.slane %v1685, 2
        %v1787 = vsel %vm692, %v1782, %v1786
        %v1788 = vrot.slane %v1686, 2
        %v1789 = vsel %vm692, %v1784, %v1788
        %v1790 = vrot.slane %v1687, 2
        %v1791 = vsel %vm692, %v1786, %v1790
        %v1792 = vrot.slane %v1688, 2
        %v1793 = vsel %vm692, %v1788, %v1792
        %v1794 = vrot.slane %v1689, 2
        %v1795 = vsel %vm692, %v1790, %v1794
        %v1796 = vrot.slane %v1690, 2
        %v1797 = vsel %vm692, %v1792, %v1796
        %v1798 = vrot.slane %v1691, 2
        %v1799 = vsel %vm692, %v1794, %v1798
        %v1816 = vmax.f32 %v1754, %v1772
        %v1817 = vmax.f32 %v1755, %v1775
        %v1818 = vmax.f32 %v1756, %v1777
        %v1819 = vmax.f32 %v1757, %v1779
        %v1820 = vmax.f32 %v1758, %v1781
        %v1821 = vmax.f32 %v1759, %v1783
        %v1822 = vmax.f32 %v1760, %v1785
        %v1823 = vmax.f32 %v1761, %v1787
        %v1824 = vmax.f32 %v1762, %v1789
        %v1825 = vmax.f32 %v1763, %v1791
        %v1826 = vmax.f32 %v1764, %v1793
        %v1827 = vmax.f32 %v1765, %v1795
        %v1828 = vmax.f32 %v1766, %v1797
        %v1829 = vmax.f32 %v1767, %v1799
        %v1830 = vmax.f32 %v1768, %v1796
        %v1831 = vmax.f32 %v1769, %v1798
        %1848 = vrot.lane.b32.xlu0 %v1816, 120
        %v1849 = vpop.permute.xlu0 %1848
        %1850 = vrot.lane.b32.xlu0 %v1817, 120
        %v1851 = vpop.permute.xlu0 %1850
        %1852 = vrot.lane.b32.xlu0 %v1818, 120
        %v1853 = vpop.permute.xlu0 %1852
        %1854 = vrot.lane.b32.xlu0 %v1819, 120
        %v1855 = vpop.permute.xlu0 %1854
        %1856 = vrot.lane.b32.xlu0 %v1820, 120
        %v1857 = vpop.permute.xlu0 %1856
        %1858 = vrot.lane.b32.xlu0 %v1821, 120
        %v1859 = vpop.permute.xlu0 %1858
        %1860 = vrot.lane.b32.xlu0 %v1822, 120
        %v1861 = vpop.permute.xlu0 %1860
        %1862 = vrot.lane.b32.xlu0 %v1823, 120
        %v1863 = vpop.permute.xlu0 %1862
        %1864 = vrot.lane.b32.xlu0 %v1824, 120
        %v1865 = vpop.permute.xlu0 %1864
        %1866 = vrot.lane.b32.xlu0 %v1825, 120
        %v1867 = vpop.permute.xlu0 %1866
        %1868 = vrot.lane.b32.xlu0 %v1826, 120
        %v1869 = vpop.permute.xlu0 %1868
        %1870 = vrot.lane.b32.xlu0 %v1827, 120
        %v1871 = vpop.permute.xlu0 %1870
        %1872 = vrot.lane.b32.xlu0 %v1828, 120
        %v1873 = vpop.permute.xlu0 %1872
        %1874 = vrot.lane.b32.xlu0 %v1829, 120
        %v1875 = vpop.permute.xlu0 %1874
        %1876 = vrot.lane.b32.xlu0 %v1830, 120
        %v1877 = vpop.permute.xlu0 %1876
        %1878 = vrot.lane.b32.xlu0 %v1831, 120
        %v1879 = vpop.permute.xlu0 %1878
        %vm1880 = vcmask 982016
        %v1881 = vsel %vm1880, %v1849, %v1851
        %v1882 = vsel %vm1880, %v1853, %v1855
        %v1883 = vsel %vm1880, %v1857, %v1859
        %v1884 = vsel %vm1880, %v1861, %v1863
        %v1885 = vsel %vm1880, %v1865, %v1867
        %v1886 = vsel %vm1880, %v1869, %v1871
        %v1887 = vsel %vm1880, %v1873, %v1875
        %v1888 = vsel %vm1880, %v1877, %v1879
        %v1905 = vmax.f32 %v1816, %v1881
        %v1906 = vmax.f32 %v1817, %v1851
        %v1907 = vmax.f32 %v1818, %v1882
        %v1908 = vmax.f32 %v1819, %v1855
        %v1909 = vmax.f32 %v1820, %v1883
        %v1910 = vmax.f32 %v1821, %v1859
        %v1911 = vmax.f32 %v1822, %v1884
        %v1912 = vmax.f32 %v1823, %v1863
        %v1913 = vmax.f32 %v1824, %v1885
        %v1914 = vmax.f32 %v1825, %v1867
        %v1915 = vmax.f32 %v1826, %v1886
        %v1916 = vmax.f32 %v1827, %v1871
        %v1917 = vmax.f32 %v1828, %v1887
        %v1918 = vmax.f32 %v1829, %v1875
        %v1919 = vmax.f32 %v1830, %v1888
        %v1920 = vmax.f32 %v1831, %v1879
        %1921 = vrot.lane.b32.xlu0 %v1816, 112
        %v1922 = vpop.permute.xlu0 %1921
        %1923 = vrot.lane.b32.xlu0 %v1817, 112
        %v1924 = vpop.permute.xlu0 %1923
        %1925 = vrot.lane.b32.xlu0 %v1818, 112
        %v1926 = vpop.permute.xlu0 %1925
        %1927 = vrot.lane.b32.xlu0 %v1819, 112
        %v1928 = vpop.permute.xlu0 %1927
        %1929 = vrot.lane.b32.xlu0 %v1820, 112
        %v1930 = vpop.permute.xlu0 %1929
        %1931 = vrot.lane.b32.xlu0 %v1821, 112
        %v1932 = vpop.permute.xlu0 %1931
        %1933 = vrot.lane.b32.xlu0 %v1822, 112
        %v1934 = vpop.permute.xlu0 %1933
        %1935 = vrot.lane.b32.xlu0 %v1823, 112
        %v1936 = vpop.permute.xlu0 %1935
        %1937 = vrot.lane.b32.xlu0 %v1824, 112
        %v1938 = vpop.permute.xlu0 %1937
        %1939 = vrot.lane.b32.xlu0 %v1825, 112
        %v1940 = vpop.permute.xlu0 %1939
        %1941 = vrot.lane.b32.xlu0 %v1826, 112
        %v1942 = vpop.permute.xlu0 %1941
        %1943 = vrot.lane.b32.xlu0 %v1827, 112
        %v1944 = vpop.permute.xlu0 %1943
        %1945 = vrot.lane.b32.xlu0 %v1828, 112
        %v1946 = vpop.permute.xlu0 %1945
        %1947 = vrot.lane.b32.xlu0 %v1829, 112
        %v1948 = vpop.permute.xlu0 %1947
        %1949 = vrot.lane.b32.xlu0 %v1830, 112
        %v1950 = vpop.permute.xlu0 %1949
        %1951 = vrot.lane.b32.xlu0 %v1831, 112
        %v1952 = vpop.permute.xlu0 %1951
        %v1953 = vsel %vm1161, %v1922, %v1924
        %v1954 = vsel %vm1161, %v1926, %v1928
        %v1955 = vsel %vm1161, %v1930, %v1932
        %v1956 = vsel %vm1161, %v1934, %v1936
        %v1957 = vsel %vm1161, %v1938, %v1940
        %v1958 = vsel %vm1161, %v1942, %v1944
        %v1959 = vsel %vm1161, %v1946, %v1948
        %v1960 = vsel %vm1161, %v1950, %v1952
        %v1977 = vmax.f32 %v1905, %v1953
        %v1978 = vmax.f32 %v1906, %v1924
        %v1979 = vmax.f32 %v1907, %v1954
        %v1980 = vmax.f32 %v1908, %v1928
        %v1981 = vmax.f32 %v1909, %v1955
        %v1982 = vmax.f32 %v1910, %v1932
        %v1983 = vmax.f32 %v1911, %v1956
        %v1984 = vmax.f32 %v1912, %v1936
        %v1985 = vmax.f32 %v1913, %v1957
        %v1986 = vmax.f32 %v1914, %v1940
        %v1987 = vmax.f32 %v1915, %v1958
        %v1988 = vmax.f32 %v1916, %v1944
        %v1989 = vmax.f32 %v1917, %v1959
        %v1990 = vmax.f32 %v1918, %v1948
        %v1991 = vmax.f32 %v1919, %v1960
        %v1992 = vmax.f32 %v1920, %v1952
        %v1993 = vld [vmem:[%s5] sm:$0xff]
        %v1994 = vld [vmem:[%s5 + $0x8] sm:$0xff]
        %v1995 = vld [vmem:[%s5 + $0x10] sm:$0xff]
        %v1996 = vld [vmem:[%s5 + $0x18] sm:$0xff]
        %v1997 = vld [vmem:[%s5 + $0x20] sm:$0xff]
        %v1998 = vld [vmem:[%s5 + $0x28] sm:$0xff]
        %v1999 = vld [vmem:[%s5 + $0x30] sm:$0xff]
        %v2000 = vld [vmem:[%s5 + $0x38] sm:$0xff]
        %v2001 = vld [vmem:[%s5 + $0x40] sm:$0xff]
        %v2002 = vld [vmem:[%s5 + $0x48] sm:$0xff]
        %v2003 = vld [vmem:[%s5 + $0x50] sm:$0xff]
        %v2004 = vld [vmem:[%s5 + $0x58] sm:$0xff]
        %v2005 = vld [vmem:[%s5 + $0x60] sm:$0xff]
        %v2006 = vld [vmem:[%s5 + $0x68] sm:$0xff]
        %v2007 = vld [vmem:[%s5 + $0x70] sm:$0xff]
        %v2008 = vld [vmem:[%s5 + $0x78] sm:$0xff]
        %v2009 = vld [vmem:[%s5 + $0x80] sm:$0xff]
        %v2010 = vld [vmem:[%s5 + $0x88] sm:$0xff]
        %v2011 = vld [vmem:[%s5 + $0x90] sm:$0xff]
        %v2012 = vld [vmem:[%s5 + $0x98] sm:$0xff]
        %v2013 = vld [vmem:[%s5 + $0xa0] sm:$0xff]
        %v2014 = vld [vmem:[%s5 + $0xa8] sm:$0xff]
        %v2015 = vld [vmem:[%s5 + $0xb0] sm:$0xff]
        %v2016 = vld [vmem:[%s5 + $0xb8] sm:$0xff]
        %v2017 = vld [vmem:[%s5 + $0xc0] sm:$0xff]
        %v2018 = vld [vmem:[%s5 + $0xc8] sm:$0xff]
        %s2019 = scalar_lea.vmem %s5, 208
        %v2020 = vld [vmem:[%s2019] sm:$0xff]
        %v2021 = vld [vmem:[%s2019 + $0x8] sm:$0xff]
        %v2022 = vld [vmem:[%s2019 + $0x10] sm:$0xff]
        %v2023 = vld [vmem:[%s2019 + $0x18] sm:$0xff]
        %v2024 = vld [vmem:[%s2019 + $0x20] sm:$0xff]
        %v2025 = vld [vmem:[%s2019 + $0x28] sm:$0xff]
        %v2026 = vld [vmem:[%s2019 + $0x30] sm:$0xff]
        %v2027 = vld [vmem:[%s2019 + $0x38] sm:$0xff]
        %v2028 = vld [vmem:[%s2019 + $0x40] sm:$0xff]
        %v2029 = vld [vmem:[%s2019 + $0x48] sm:$0xff]
        %v2030 = vld [vmem:[%s2019 + $0x50] sm:$0xff]
        %v2031 = vld [vmem:[%s2019 + $0x58] sm:$0xff]
        %v2032 = vld [vmem:[%s2019 + $0x60] sm:$0xff]
        %v2033 = vld [vmem:[%s2019 + $0x68] sm:$0xff]
        %v2034 = vld [vmem:[%s2019 + $0x70] sm:$0xff]
        %v2035 = vld [vmem:[%s2019 + $0x78] sm:$0xff]
        %v2036 = vld [vmem:[%s2019 + $0x80] sm:$0xff]
        %v2037 = vld [vmem:[%s2019 + $0x88] sm:$0xff]
        %v2038 = vld [vmem:[%s2019 + $0x90] sm:$0xff]
        %v2039 = vld [vmem:[%s2019 + $0x98] sm:$0xff]
        %v2040 = vld [vmem:[%s2019 + $0xa0] sm:$0xff]
        %v2041 = vld [vmem:[%s2019 + $0xa8] sm:$0xff]
        %v2042 = vld [vmem:[%s2019 + $0xb0] sm:$0xff]
        %v2043 = vld [vmem:[%s2019 + $0xb8] sm:$0xff]
        %v2044 = vld [vmem:[%s2019 + $0xc0] sm:$0xff]
        %v2045 = vld [vmem:[%s2019 + $0xc8] sm:$0xff]
        %v2060 = vrot.slane %v1977, 2
        %v2061 = vrot.slane %v1979, 2
        %v2062 = vsel %vm692, %v2060, %v2061
        %v2063 = vrot.slane %v1978, 2
        %v2064 = vrot.slane %v1980, 2
        %v2065 = vsel %vm692, %v2063, %v2064
        %v2066 = vrot.slane %v1981, 2
        %v2067 = vsel %vm692, %v2061, %v2066
        %v2068 = vrot.slane %v1982, 2
        %v2069 = vsel %vm692, %v2064, %v2068
        %v2070 = vrot.slane %v1983, 2
        %v2071 = vsel %vm692, %v2066, %v2070
        %v2072 = vrot.slane %v1984, 2
        %v2073 = vsel %vm692, %v2068, %v2072
        %v2074 = vrot.slane %v1985, 2
        %v2075 = vsel %vm692, %v2070, %v2074
        %v2076 = vrot.slane %v1986, 2
        %v2077 = vsel %vm692, %v2072, %v2076
        %v2078 = vrot.slane %v1987, 2
        %v2079 = vsel %vm692, %v2074, %v2078
        %v2080 = vrot.slane %v1988, 2
        %v2081 = vsel %vm692, %v2076, %v2080
        %v2082 = vrot.slane %v1989, 2
        %v2083 = vsel %vm692, %v2078, %v2082
        %v2084 = vrot.slane %v1990, 2
        %v2085 = vsel %vm692, %v2080, %v2084
        %vm2093 = vcmask 654336
        %v2094 = vsel %vm2093, %v2065, 0
        %v2096 = vsel %vm2093, %v2069, 0
        %v2098 = vsel %vm2093, %v2073, 0
        %v2100 = vsel %vm2093, %v2077, 0
        %v2102 = vsel %vm2093, %v2081, 0
        %v2104 = vsel %vm2093, %v2085, 0
        %v2106 = vsel %vm2093, %v2084, 0
        %2108 = vmatprep.subr.mxu0 0.0
        %2109 = vmatpush1.msra.mxu0 %v2020
        %2110 = vmatprep.subr.mxu0 0.0
        %2111 = vmatpush1.msra.mxu0 %v2021
        %2112 = vmatprep.subr.mxu0 0.0
        %2113 = vmatpush1.msra.mxu0 %v2022
        %2114 = vmatprep.subr.mxu0 0.0
        %2115 = vmatpush1.msra.mxu0 %v2023
        %2116 = vmatprep.subr.mxu0 0.0
        %2117 = vmatpush1.msra.mxu0 %v2024
        %2118 = vmatprep.subr.mxu0 0.0
        %2119 = vmatpush1.msra.mxu0 %v2025
        %2120 = vmatprep.subr.mxu0 0.0
        %2121 = vmatpush1.msra.mxu0 %v2026
        %2122 = vmatprep.subr.mxu0 0.0
        %2123 = vmatpush1.msra.mxu0 %v2027
        %2124 = vmatprep.subr.mxu0 0.0
        %2125 = vmatpush1.msra.mxu0 %v2028
        %2126 = vmatprep.subr.mxu0 0.0
        %2127 = vmatpush1.msra.mxu0 %v2029
        %2128 = vmatprep.subr.mxu0 0.0
        %2129 = vmatpush1.msra.mxu0 %v2030
        %2130 = vmatprep.subr.mxu0 0.0
        %2131 = vmatpush1.msra.mxu0 %v2031
        %2132 = vmatprep.subr.mxu0 0.0
        %2133 = vmatpush1.msra.mxu0 %v2032
        %2134 = vmatprep.subr.mxu0 0.0
        %2135 = vmatpush1.msra.mxu0 %v2033
        %2136 = vmatprep.subr.mxu0 0.0
        %2137 = vmatpush1.msra.mxu0 %v2034
        %2138 = vmatprep.subr.mxu0 0.0
        %2139 = vmatpush1.msra.mxu0 %v2035
        %2140 = vmatprep.subr.mxu0 0.0
        %2141 = vmatpush1.msra.mxu0 %v2036
        %2142 = vmatprep.subr.mxu0 0.0
        %2143 = vmatpush1.msra.mxu0 %v2037
        %2144 = vmatprep.subr.mxu0 0.0
        %2145 = vmatpush1.msra.mxu0 %v2038
        %2146 = vmatprep.subr.mxu0 0.0
        %2147 = vmatpush1.msra.mxu0 %v2039
        %2148 = vmatprep.subr.mxu0 0.0
        %2149 = vmatpush1.msra.mxu0 %v2040
        %2150 = vmatprep.subr.mxu0 0.0
        %2151 = vmatpush1.msra.mxu0 %v2041
        %2152 = vmatprep.subr.mxu0 0.0
        %2153 = vmatpush1.msra.mxu0 %v2042
        %2154 = vmatprep.subr.mxu0 0.0
        %2155 = vmatpush1.msra.mxu0 %v2043
        %2156 = vmatprep.subr.mxu0 0.0
        %2157 = vmatpush1.msra.mxu0 %v2044
        %2158 = vmatprep.subr.mxu0 0.0
        %2159 = vmatpush1.msra.mxu0 %v2045
        %2160 = vmatprep.subr.mxu0 0.0
        %2161 = vmatpush1.msra.mxu0 0.0
        %2162 = vmatprep.subr.mxu0 0.0
        %2163 = vmatpush1.msra.mxu0 0.0
        %2164 = vmatprep.subr.mxu0 0.0
        %2165 = vmatpush1.msra.mxu0 0.0
        %2166 = vmatprep.subr.mxu0 0.0
        %2167 = vmatpush1.msra.mxu0 0.0
        %2168 = vmatprep.subr.mxu0 0.0
        %2169 = vmatpush1.msra.mxu0 0.0
        %2170 = vmatprep.subr.mxu0 0.0
        %2171 = vmatpush1.msra.mxu0 0.0
        %2172 = vmatprep.mubr.f32.mxu0 %v2094
        %2173 = vmatmul.mubr.f32.gmra.mrb[0].mxu0 %v2062
        %v2174 = vpop.f32.mrb[0].mxu0
        %v2175 = vadd.f32 0.0, %v2174
        %v2176 = vpop.f32.mrb[0].mxu0
        %2177 = vmatprep.mubr.f32.mxu0 %v2096
        %2178 = vmatmul.mubr.f32.gmra.mrb[0].mxu0 %v2067
        %v2179 = vpop.f32.mrb[0].mxu0
        %v2180 = vadd.f32 0.0, %v2179
        %v2181 = vpop.f32.mrb[0].mxu0
        %2182 = vmatprep.mubr.f32.mxu0 %v2098
        %2183 = vmatmul.mubr.f32.gmra.mrb[0].mxu0 %v2071
        %v2184 = vpop.f32.mrb[0].mxu0
        %v2185 = vadd.f32 0.0, %v2184
        %v2186 = vpop.f32.mrb[0].mxu0
        %2187 = vmatprep.mubr.f32.mxu0 %v2100
        %2188 = vmatmul.mubr.f32.gmra.mrb[0].mxu0 %v2075
        %v2189 = vpop.f32.mrb[0].mxu0
        %v2190 = vadd.f32 0.0, %v2189
        %v2191 = vpop.f32.mrb[0].mxu0
        %2192 = vmatprep.mubr.f32.mxu0 %v2102
        %2193 = vmatmul.mubr.f32.gmra.mrb[0].mxu0 %v2079
        %v2194 = vpop.f32.mrb[0].mxu0
        %v2195 = vadd.f32 0.0, %v2194
        %v2196 = vpop.f32.mrb[0].mxu0
        %2197 = vmatprep.mubr.f32.mxu0 %v2104
        %2198 = vmatmul.mubr.f32.gmra.mrb[0].mxu0 %v2083
        %v2199 = vpop.f32.mrb[0].mxu0
        %v2200 = vadd.f32 0.0, %v2199
        %v2201 = vpop.f32.mrb[0].mxu0
        %2202 = vmatprep.mubr.f32.mxu0 %v2106
        %2203 = vmatmul.mubr.f32.gmra.mrb[0].mxu0 %v2082
        %v2204 = vpop.f32.mrb[0].mxu0
        %v2205 = vadd.f32 0.0, %v2204
        %v2206 = vpop.f32.mrb[0].mxu0
        %2207 = vdwg.mxu0
        %s2208 = scalar_lea.vmem %s5, 416
        %v2209 = vld [vmem:[%s2208] sm:$0xff]
        %v2210 = vld [vmem:[%s2208 + $0x8] sm:$0xff]
        %v2211 = vld [vmem:[%s2208 + $0x10] sm:$0xff]
        %v2212 = vld [vmem:[%s2208 + $0x18] sm:$0xff]
        %v2213 = vld [vmem:[%s2208 + $0x20] sm:$0xff]
        %v2214 = vld [vmem:[%s2208 + $0x28] sm:$0xff]
        %v2215 = vld [vmem:[%s2208 + $0x30] sm:$0xff]
        %v2216 = vld [vmem:[%s2208 + $0x38] sm:$0xff]
        %v2217 = vld [vmem:[%s2208 + $0x40] sm:$0xff]
        %v2218 = vld [vmem:[%s2208 + $0x48] sm:$0xff]
        %v2219 = vld [vmem:[%s2208 + $0x50] sm:$0xff]
        %v2220 = vld [vmem:[%s2208 + $0x58] sm:$0xff]
        %v2221 = vld [vmem:[%s2208 + $0x60] sm:$0xff]
        %v2222 = vld [vmem:[%s2208 + $0x68] sm:$0xff]
        %v2223 = vld [vmem:[%s2208 + $0x70] sm:$0xff]
        %v2224 = vld [vmem:[%s2208 + $0x78] sm:$0xff]
        %v2225 = vld [vmem:[%s2208 + $0x80] sm:$0xff]
        %v2226 = vld [vmem:[%s2208 + $0x88] sm:$0xff]
        %v2227 = vld [vmem:[%s2208 + $0x90] sm:$0xff]
        %v2228 = vld [vmem:[%s2208 + $0x98] sm:$0xff]
        %v2229 = vld [vmem:[%s2208 + $0xa0] sm:$0xff]
        %v2230 = vld [vmem:[%s2208 + $0xa8] sm:$0xff]
        %v2231 = vld [vmem:[%s2208 + $0xb0] sm:$0xff]
        %v2232 = vld [vmem:[%s2208 + $0xb8] sm:$0xff]
        %v2233 = vld [vmem:[%s2208 + $0xc0] sm:$0xff]
        %v2234 = vld [vmem:[%s2208 + $0xc8] sm:$0xff]
        %vm2237 = vcmask 1043456
        %v2238 = vrot.slane %v1977, 4
        %v2239 = vrot.slane %v1979, 4
        %v2240 = vsel %vm2237, %v2238, %v2239
        %v2241 = vrot.slane %v1978, 4
        %v2242 = vrot.slane %v1980, 4
        %v2243 = vsel %vm2237, %v2241, %v2242
        %v2244 = vrot.slane %v1981, 4
        %v2245 = vsel %vm2237, %v2239, %v2244
        %v2246 = vrot.slane %v1982, 4
        %v2247 = vsel %vm2237, %v2242, %v2246
        %v2248 = vrot.slane %v1983, 4
        %v2249 = vsel %vm2237, %v2244, %v2248
        %v2250 = vrot.slane %v1984, 4
        %v2251 = vsel %vm2237, %v2246, %v2250
        %v2252 = vrot.slane %v1985, 4
        %v2253 = vsel %vm2237, %v2248, %v2252
        %v2254 = vrot.slane %v1986, 4
        %v2255 = vsel %vm2237, %v2250, %v2254
        %v2256 = vrot.slane %v1987, 4
        %v2257 = vsel %vm2237, %v2252, %v2256
        %v2258 = vrot.slane %v1988, 4
        %v2259 = vsel %vm2237, %v2254, %v2258
        %v2260 = vrot.slane %v1989, 4
        %v2261 = vsel %vm2237, %v2256, %v2260
        %v2262 = vrot.slane %v1990, 4
        %v2263 = vsel %vm2237, %v2258, %v2262
        %v2264 = vrot.slane %v1991, 4
        %v2265 = vsel %vm2237, %v2260, %v2264
        %v2266 = vrot.slane %v1992, 4
        %v2267 = vsel %vm2237, %v2262, %v2266
        %v2275 = vsel %vm2093, %v2243, 0
        %v2277 = vsel %vm2093, %v2247, 0
        %v2279 = vsel %vm2093, %v2251, 0
        %v2281 = vsel %vm2093, %v2255, 0
        %v2283 = vsel %vm2093, %v2259, 0
        %v2285 = vsel %vm2093, %v2263, 0
        %v2287 = vsel %vm2093, %v2267, 0
        %2289 = vmatprep.subr.mxu0 0.0
        %2290 = vmatpush1.msra.mxu0 %v2209
        %2291 = vmatprep.subr.mxu0 0.0
        %2292 = vmatpush1.msra.mxu0 %v2210
        %2293 = vmatprep.subr.mxu0 0.0
        %2294 = vmatpush1.msra.mxu0 %v2211
        %2295 = vmatprep.subr.mxu0 0.0
        %2296 = vmatpush1.msra.mxu0 %v2212
        %2297 = vmatprep.subr.mxu0 0.0
        %2298 = vmatpush1.msra.mxu0 %v2213
        %2299 = vmatprep.subr.mxu0 0.0
        %2300 = vmatpush1.msra.mxu0 %v2214
        %2301 = vmatprep.subr.mxu0 0.0
        %2302 = vmatpush1.msra.mxu0 %v2215
        %2303 = vmatprep.subr.mxu0 0.0
        %2304 = vmatpush1.msra.mxu0 %v2216
        %2305 = vmatprep.subr.mxu0 0.0
        %2306 = vmatpush1.msra.mxu0 %v2217
        %2307 = vmatprep.subr.mxu0 0.0
        %2308 = vmatpush1.msra.mxu0 %v2218
        %2309 = vmatprep.subr.mxu0 0.0
        %2310 = vmatpush1.msra.mxu0 %v2219
        %2311 = vmatprep.subr.mxu0 0.0
        %2312 = vmatpush1.msra.mxu0 %v2220
        %2313 = vmatprep.subr.mxu0 0.0
        %2314 = vmatpush1.msra.mxu0 %v2221
        %2315 = vmatprep.subr.mxu0 0.0
        %2316 = vmatpush1.msra.mxu0 %v2222
        %2317 = vmatprep.subr.mxu0 0.0
        %2318 = vmatpush1.msra.mxu0 %v2223
        %2319 = vmatprep.subr.mxu0 0.0
        %2320 = vmatpush1.msra.mxu0 %v2224
        %2321 = vmatprep.subr.mxu0 0.0
        %2322 = vmatpush1.msra.mxu0 %v2225
        %2323 = vmatprep.subr.mxu0 0.0
        %2324 = vmatpush1.msra.mxu0 %v2226
        %2325 = vmatprep.subr.mxu0 0.0
        %2326 = vmatpush1.msra.mxu0 %v2227
        %2327 = vmatprep.subr.mxu0 0.0
        %2328 = vmatpush1.msra.mxu0 %v2228
        %2329 = vmatprep.subr.mxu0 0.0
        %2330 = vmatpush1.msra.mxu0 %v2229
        %2331 = vmatprep.subr.mxu0 0.0
        %2332 = vmatpush1.msra.mxu0 %v2230
        %2333 = vmatprep.subr.mxu0 0.0
        %2334 = vmatpush1.msra.mxu0 %v2231
        %2335 = vmatprep.subr.mxu0 0.0
        %2336 = vmatpush1.msra.mxu0 %v2232
        %2337 = vmatprep.subr.mxu0 0.0
        %2338 = vmatpush1.msra.mxu0 %v2233
        %2339 = vmatprep.subr.mxu0 0.0
        %2340 = vmatpush1.msra.mxu0 %v2234
        %2341 = vmatprep.subr.mxu0 0.0
        %2342 = vmatpush1.msra.mxu0 0.0
        %2343 = vmatprep.subr.mxu0 0.0
        %2344 = vmatpush1.msra.mxu0 0.0
        %2345 = vmatprep.subr.mxu0 0.0
        %2346 = vmatpush1.msra.mxu0 0.0
        %2347 = vmatprep.subr.mxu0 0.0
        %2348 = vmatpush1.msra.mxu0 0.0
        %2349 = vmatprep.subr.mxu0 0.0
        %2350 = vmatpush1.msra.mxu0 0.0
        %2351 = vmatprep.subr.mxu0 0.0
        %2352 = vmatpush1.msra.mxu0 0.0
        %2353 = vmatprep.mubr.f32.mxu0 %v2275
        %2354 = vmatmul.mubr.f32.gmra.mrb[0].mxu0 %v2240
        %v2355 = vpop.f32.mrb[0].mxu0
        %v2356 = vadd.f32 0.0, %v2355
        %v2357 = vpop.f32.mrb[0].mxu0
        %2358 = vmatprep.mubr.f32.mxu0 %v2277
        %2359 = vmatmul.mubr.f32.gmra.mrb[0].mxu0 %v2245
        %v2360 = vpop.f32.mrb[0].mxu0
        %v2361 = vadd.f32 0.0, %v2360
        %v2362 = vpop.f32.mrb[0].mxu0
        %2363 = vmatprep.mubr.f32.mxu0 %v2279
        %2364 = vmatmul.mubr.f32.gmra.mrb[0].mxu0 %v2249
        %v2365 = vpop.f32.mrb[0].mxu0
        %v2366 = vadd.f32 0.0, %v2365
        %v2367 = vpop.f32.mrb[0].mxu0
        %2368 = vmatprep.mubr.f32.mxu0 %v2281
        %2369 = vmatmul.mubr.f32.gmra.mrb[0].mxu0 %v2253
        %v2370 = vpop.f32.mrb[0].mxu0
        %v2371 = vadd.f32 0.0, %v2370
        %v2372 = vpop.f32.mrb[0].mxu0
        %2373 = vmatprep.mubr.f32.mxu0 %v2283
        %2374 = vmatmul.mubr.f32.gmra.mrb[0].mxu0 %v2257
        %v2375 = vpop.f32.mrb[0].mxu0
        %v2376 = vadd.f32 0.0, %v2375
        %v2377 = vpop.f32.mrb[0].mxu0
        %2378 = vmatprep.mubr.f32.mxu0 %v2285
        %2379 = vmatmul.mubr.f32.gmra.mrb[0].mxu0 %v2261
        %v2380 = vpop.f32.mrb[0].mxu0
        %v2381 = vadd.f32 0.0, %v2380
        %v2382 = vpop.f32.mrb[0].mxu0
        %2383 = vmatprep.mubr.f32.mxu0 %v2287
        %2384 = vmatmul.mubr.f32.gmra.mrb[0].mxu0 %v2265
        %v2385 = vpop.f32.mrb[0].mxu0
        %v2386 = vadd.f32 0.0, %v2385
        %v2387 = vpop.f32.mrb[0].mxu0
        %2388 = vdwg.mxu0
        %v2389 = vsel %vm2093, %v1978, 0
        %v2391 = vsel %vm2093, %v1980, 0
        %v2393 = vsel %vm2093, %v1982, 0
        %v2395 = vsel %vm2093, %v1984, 0
        %v2397 = vsel %vm2093, %v1986, 0
        %v2399 = vsel %vm2093, %v1988, 0
        %v2401 = vsel %vm2093, %v1990, 0
        %2403 = vmatprep.subr.mxu0 0.0
        %2404 = vmatpush1.msra.mxu0 %v1993
        %2405 = vmatprep.subr.mxu0 0.0
        %2406 = vmatpush1.msra.mxu0 %v1994
        %2407 = vmatprep.subr.mxu0 0.0
        %2408 = vmatpush1.msra.mxu0 %v1995
        %2409 = vmatprep.subr.mxu0 0.0
        %2410 = vmatpush1.msra.mxu0 %v1996
        %2411 = vmatprep.subr.mxu0 0.0
        %2412 = vmatpush1.msra.mxu0 %v1997
        %2413 = vmatprep.subr.mxu0 0.0
        %2414 = vmatpush1.msra.mxu0 %v1998
        %2415 = vmatprep.subr.mxu0 0.0
        %2416 = vmatpush1.msra.mxu0 %v1999
        %2417 = vmatprep.subr.mxu0 0.0
        %2418 = vmatpush1.msra.mxu0 %v2000
        %2419 = vmatprep.subr.mxu0 0.0
        %2420 = vmatpush1.msra.mxu0 %v2001
        %2421 = vmatprep.subr.mxu0 0.0
        %2422 = vmatpush1.msra.mxu0 %v2002
        %2423 = vmatprep.subr.mxu0 0.0
        %2424 = vmatpush1.msra.mxu0 %v2003
        %2425 = vmatprep.subr.mxu0 0.0
        %2426 = vmatpush1.msra.mxu0 %v2004
        %2427 = vmatprep.subr.mxu0 0.0
        %2428 = vmatpush1.msra.mxu0 %v2005
        %2429 = vmatprep.subr.mxu0 0.0
        %2430 = vmatpush1.msra.mxu0 %v2006
        %2431 = vmatprep.subr.mxu0 0.0
        %2432 = vmatpush1.msra.mxu0 %v2007
        %2433 = vmatprep.subr.mxu0 0.0
        %2434 = vmatpush1.msra.mxu0 %v2008
        %2435 = vmatprep.subr.mxu0 0.0
        %2436 = vmatpush1.msra.mxu0 %v2009
        %2437 = vmatprep.subr.mxu0 0.0
        %2438 = vmatpush1.msra.mxu0 %v2010
        %2439 = vmatprep.subr.mxu0 0.0
        %2440 = vmatpush1.msra.mxu0 %v2011
        %2441 = vmatprep.subr.mxu0 0.0
        %2442 = vmatpush1.msra.mxu0 %v2012
        %2443 = vmatprep.subr.mxu0 0.0
        %2444 = vmatpush1.msra.mxu0 %v2013
        %2445 = vmatprep.subr.mxu0 0.0
        %2446 = vmatpush1.msra.mxu0 %v2014
        %2447 = vmatprep.subr.mxu0 0.0
        %2448 = vmatpush1.msra.mxu0 %v2015
        %2449 = vmatprep.subr.mxu0 0.0
        %2450 = vmatpush1.msra.mxu0 %v2016
        %2451 = vmatprep.subr.mxu0 0.0
        %2452 = vmatpush1.msra.mxu0 %v2017
        %2453 = vmatprep.subr.mxu0 0.0
        %2454 = vmatpush1.msra.mxu0 %v2018
        %2455 = vmatprep.subr.mxu0 0.0
        %2456 = vmatpush1.msra.mxu0 0.0
        %2457 = vmatprep.subr.mxu0 0.0
        %2458 = vmatpush1.msra.mxu0 0.0
        %2459 = vmatprep.subr.mxu0 0.0
        %2460 = vmatpush1.msra.mxu0 0.0
        %2461 = vmatprep.subr.mxu0 0.0
        %2462 = vmatpush1.msra.mxu0 0.0
        %2463 = vmatprep.subr.mxu0 0.0
        %2464 = vmatpush1.msra.mxu0 0.0
        %2465 = vmatprep.subr.mxu0 0.0
        %2466 = vmatpush1.msra.mxu0 0.0
        %2467 = vmatprep.mubr.f32.mxu0 %v2389
        %2468 = vmatmul.mubr.f32.gmra.mrb[0].mxu0 %v1977
        %v2469 = vpop.f32.mrb[0].mxu0
        %v2470 = vadd.f32 %v2175, %v2469
        %v2471 = vpop.f32.mrb[0].mxu0
        %2472 = vmatprep.mubr.f32.mxu0 %v2391
        %2473 = vmatmul.mubr.f32.gmra.mrb[0].mxu0 %v1979
        %v2474 = vpop.f32.mrb[0].mxu0
        %v2475 = vadd.f32 %v2180, %v2474
        %v2476 = vpop.f32.mrb[0].mxu0
        %2477 = vmatprep.mubr.f32.mxu0 %v2393
        %2478 = vmatmul.mubr.f32.gmra.mrb[0].mxu0 %v1981
        %v2479 = vpop.f32.mrb[0].mxu0
        %v2480 = vadd.f32 %v2185, %v2479
        %v2481 = vpop.f32.mrb[0].mxu0
        %2482 = vmatprep.mubr.f32.mxu0 %v2395
        %2483 = vmatmul.mubr.f32.gmra.mrb[0].mxu0 %v1983
        %v2484 = vpop.f32.mrb[0].mxu0
        %v2485 = vadd.f32 %v2190, %v2484
        %v2486 = vpop.f32.mrb[0].mxu0
        %2487 = vmatprep.mubr.f32.mxu0 %v2397
        %2488 = vmatmul.mubr.f32.gmra.mrb[0].mxu0 %v1985
        %v2489 = vpop.f32.mrb[0].mxu0
        %v2490 = vadd.f32 %v2195, %v2489
        %v2491 = vpop.f32.mrb[0].mxu0
        %2492 = vmatprep.mubr.f32.mxu0 %v2399
        %2493 = vmatmul.mubr.f32.gmra.mrb[0].mxu0 %v1987
        %v2494 = vpop.f32.mrb[0].mxu0
        %v2495 = vadd.f32 %v2200, %v2494
        %v2496 = vpop.f32.mrb[0].mxu0
        %2497 = vmatprep.mubr.f32.mxu0 %v2401
        %2498 = vmatmul.mubr.f32.gmra.mrb[0].mxu0 %v1989
        %v2499 = vpop.f32.mrb[0].mxu0
        %v2500 = vadd.f32 %v2205, %v2499
        %v2501 = vpop.f32.mrb[0].mxu0
        %2502 = vdwg.mxu0
        %v2503 = vadd.f32 %v2470, %v2356
        %v2504 = vadd.f32 %v2475, %v2361
        %v2505 = vadd.f32 %v2480, %v2366
        %v2506 = vadd.f32 %v2485, %v2371
        %v2507 = vadd.f32 %v2490, %v2376
        %v2508 = vadd.f32 %v2495, %v2381
        %v2509 = vadd.f32 %v2500, %v2386
        %v2510 = vld [vmem:[%s6] sm:$0x1]
        %v2512 = vlaneseq
        %v2513 = vshrl.u32 %v2512, 7
        %v2514 = vsub.s32 0, %v2513
        %v2515 = vrot.slane %v2510, %v2514
        %v2517 = vadd.f32 %v2503, %v2515
        %v2518 = vadd.f32 %v2504, %v2515
        %v2519 = vadd.f32 %v2505, %v2515
        %v2520 = vadd.f32 %v2506, %v2515
        %v2521 = vadd.f32 %v2507, %v2515
        %v2522 = vadd.f32 %v2508, %v2515
        %v2523 = vadd.f32 %v2509, %v2515
        %v2524 = vld [vmem:[%s7] sm:$0xff]
        %v2525 = vld [vmem:[%s7 + $0x8] sm:$0xff]
        %v2526 = vld [vmem:[%s7 + $0x10] sm:$0xff]
        %v2527 = vld [vmem:[%s7 + $0x18] sm:$0xff]
        %v2528 = vld [vmem:[%s7 + $0x20] sm:$0xff]
        %v2529 = vld [vmem:[%s7 + $0x28] sm:$0xff]
        %v2530 = vld [vmem:[%s7 + $0x30] sm:$0xff]
        %v2531 = vld [vmem:[%s7 + $0x38] sm:$0xff]
        %v2532 = vld [vmem:[%s7 + $0x40] sm:$0xff]
        %v2533 = vld [vmem:[%s7 + $0x48] sm:$0xff]
        %v2534 = vld [vmem:[%s7 + $0x50] sm:$0xff]
        %s2535 = scalar_lea.vmem %s7, 88
        %v2536 = vld [vmem:[%s2535] sm:$0xff]
        %v2537 = vld [vmem:[%s2535 + $0x8] sm:$0xff]
        %v2538 = vld [vmem:[%s2535 + $0x10] sm:$0xff]
        %v2539 = vld [vmem:[%s2535 + $0x18] sm:$0xff]
        %v2540 = vld [vmem:[%s2535 + $0x20] sm:$0xff]
        %v2541 = vld [vmem:[%s2535 + $0x28] sm:$0xff]
        %v2542 = vld [vmem:[%s2535 + $0x30] sm:$0xff]
        %v2543 = vld [vmem:[%s2535 + $0x38] sm:$0xff]
        %v2544 = vld [vmem:[%s2535 + $0x40] sm:$0xff]
        %v2545 = vld [vmem:[%s2535 + $0x48] sm:$0xff]
        %v2546 = vld [vmem:[%s2535 + $0x50] sm:$0xff]
        %v2554 = vrot.slane %v2517, 2
        %v2555 = vrot.slane %v2518, 2
        %v2556 = vsel %vm692, %v2554, %v2555
        %v2557 = vrot.slane %v2519, 2
        %v2558 = vsel %vm692, %v2555, %v2557
        %v2559 = vrot.slane %v2520, 2
        %v2560 = vsel %vm692, %v2557, %v2559
        %v2561 = vrot.slane %v2521, 2
        %v2562 = vsel %vm692, %v2559, %v2561
        %v2563 = vrot.slane %v2522, 2
        %v2564 = vsel %vm692, %v2561, %v2563
        %v2565 = vrot.slane %v2523, 2
        %v2566 = vsel %vm692, %v2563, %v2565
        %vm2567 = vcmask 719872
        %v2568 = vsel %vm2567, %v2556, 0
        %v2570 = vsel %vm2567, %v2558, 0
        %v2572 = vsel %vm2567, %v2560, 0
        %v2574 = vsel %vm2567, %v2562, 0
        %v2576 = vsel %vm2567, %v2564, 0
        %v2578 = vsel %vm2567, %v2566, 0
        %v2580 = vsel %vm2567, %v2565, 0
        %2582 = vmatprep.subr.mxu0 0.0
        %2583 = vmatpush1.msra.mxu0 %v2536
        %2584 = vmatprep.subr.mxu0 0.0
        %2585 = vmatpush1.msra.mxu0 %v2537
        %2586 = vmatprep.subr.mxu0 0.0
        %2587 = vmatpush1.msra.mxu0 %v2538
        %2588 = vmatprep.subr.mxu0 0.0
        %2589 = vmatpush1.msra.mxu0 %v2539
        %2590 = vmatprep.subr.mxu0 0.0
        %2591 = vmatpush1.msra.mxu0 %v2540
        %2592 = vmatprep.subr.mxu0 0.0
        %2593 = vmatpush1.msra.mxu0 %v2541
        %2594 = vmatprep.subr.mxu0 0.0
        %2595 = vmatpush1.msra.mxu0 %v2542
        %2596 = vmatprep.subr.mxu0 0.0
        %2597 = vmatpush1.msra.mxu0 %v2543
        %2598 = vmatprep.subr.mxu0 0.0
        %2599 = vmatpush1.msra.mxu0 %v2544
        %2600 = vmatprep.subr.mxu0 0.0
        %2601 = vmatpush1.msra.mxu0 %v2545
        %2602 = vmatprep.subr.mxu0 0.0
        %2603 = vmatpush1.msra.mxu0 %v2546
        %2604 = vmatprep.subr.mxu0 0.0
        %2605 = vmatpush1.msra.mxu0 0.0
        %2606 = vmatprep.subr.mxu0 0.0
        %2607 = vmatpush1.msra.mxu0 0.0
        %2608 = vmatprep.subr.mxu0 0.0
        %2609 = vmatpush1.msra.mxu0 0.0
        %2610 = vmatprep.subr.mxu0 0.0
        %2611 = vmatpush1.msra.mxu0 0.0
        %2612 = vmatprep.subr.mxu0 0.0
        %2613 = vmatpush1.msra.mxu0 0.0
        %2614 = vmatprep.subr.mxu0 0.0
        %2615 = vmatpush1.msra.mxu0 0.0
        %2616 = vmatprep.subr.mxu0 0.0
        %2617 = vmatpush1.msra.mxu0 0.0
        %2618 = vmatprep.subr.mxu0 0.0
        %2619 = vmatpush1.msra.mxu0 0.0
        %2620 = vmatprep.subr.mxu0 0.0
        %2621 = vmatpush1.msra.mxu0 0.0
        %2622 = vmatprep.subr.mxu0 0.0
        %2623 = vmatpush1.msra.mxu0 0.0
        %2624 = vmatprep.subr.mxu0 0.0
        %2625 = vmatpush1.msra.mxu0 0.0
        %2626 = vmatprep.subr.mxu0 0.0
        %2627 = vmatpush1.msra.mxu0 0.0
        %2628 = vmatprep.subr.mxu0 0.0
        %2629 = vmatpush1.msra.mxu0 0.0
        %2630 = vmatprep.subr.mxu0 0.0
        %2631 = vmatpush1.msra.mxu0 0.0
        %2632 = vmatprep.subr.mxu0 0.0
        %2633 = vmatpush1.msra.mxu0 0.0
        %2634 = vmatprep.subr.mxu0 0.0
        %2635 = vmatpush1.msra.mxu0 0.0
        %2636 = vmatprep.subr.mxu0 0.0
        %2637 = vmatpush1.msra.mxu0 0.0
        %2638 = vmatprep.subr.mxu0 0.0
        %2639 = vmatpush1.msra.mxu0 0.0
        %2640 = vmatprep.subr.mxu0 0.0
        %2641 = vmatpush1.msra.mxu0 0.0
        %2642 = vmatprep.subr.mxu0 0.0
        %2643 = vmatpush1.msra.mxu0 0.0
        %2644 = vmatprep.subr.mxu0 0.0
        %2645 = vmatpush1.msra.mxu0 0.0
        %2646 = vmatprep.mubr.f32.mxu0 0.0
        %2647 = vmatmul.mubr.f32.gmra.mrb[0].mxu0 %v2568
        %v2648 = vpop.f32.mrb[0].mxu0
        %v2649 = vadd.f32 0.0, %v2648
        %v2650 = vpop.f32.mrb[0].mxu0
        %2651 = vmatprep.mubr.f32.mxu0 0.0
        %2652 = vmatmul.mubr.f32.gmra.mrb[0].mxu0 %v2570
        %v2653 = vpop.f32.mrb[0].mxu0
        %v2654 = vadd.f32 0.0, %v2653
        %v2655 = vpop.f32.mrb[0].mxu0
        %2656 = vmatprep.mubr.f32.mxu0 0.0
        %2657 = vmatmul.mubr.f32.gmra.mrb[0].mxu0 %v2572
        %v2658 = vpop.f32.mrb[0].mxu0
        %v2659 = vadd.f32 0.0, %v2658
        %v2660 = vpop.f32.mrb[0].mxu0
        %2661 = vmatprep.mubr.f32.mxu0 0.0
        %2662 = vmatmul.mubr.f32.gmra.mrb[0].mxu0 %v2574
        %v2663 = vpop.f32.mrb[0].mxu0
        %v2664 = vadd.f32 0.0, %v2663
        %v2665 = vpop.f32.mrb[0].mxu0
        %2666 = vmatprep.mubr.f32.mxu0 0.0
        %2667 = vmatmul.mubr.f32.gmra.mrb[0].mxu0 %v2576
        %v2668 = vpop.f32.mrb[0].mxu0
        %v2669 = vadd.f32 0.0, %v2668
        %v2670 = vpop.f32.mrb[0].mxu0
        %2671 = vmatprep.mubr.f32.mxu0 0.0
        %2672 = vmatmul.mubr.f32.gmra.mrb[0].mxu0 %v2578
        %v2673 = vpop.f32.mrb[0].mxu0
        %v2674 = vadd.f32 0.0, %v2673
        %v2675 = vpop.f32.mrb[0].mxu0
        %2676 = vmatprep.mubr.f32.mxu0 0.0
        %2677 = vmatmul.mubr.f32.gmra.mrb[0].mxu0 %v2580
        %v2678 = vpop.f32.mrb[0].mxu0
        %v2679 = vadd.f32 0.0, %v2678
        %v2680 = vpop.f32.mrb[0].mxu0
        %2681 = vdwg.mxu0
        %s2682 = scalar_lea.vmem %s7, 176
        %v2683 = vld [vmem:[%s2682] sm:$0xff]
        %v2684 = vld [vmem:[%s2682 + $0x8] sm:$0xff]
        %v2685 = vld [vmem:[%s2682 + $0x10] sm:$0xff]
        %v2686 = vld [vmem:[%s2682 + $0x18] sm:$0xff]
        %v2687 = vld [vmem:[%s2682 + $0x20] sm:$0xff]
        %v2688 = vld [vmem:[%s2682 + $0x28] sm:$0xff]
        %v2689 = vld [vmem:[%s2682 + $0x30] sm:$0xff]
        %v2690 = vld [vmem:[%s2682 + $0x38] sm:$0xff]
        %v2691 = vld [vmem:[%s2682 + $0x40] sm:$0xff]
        %v2692 = vld [vmem:[%s2682 + $0x48] sm:$0xff]
        %v2693 = vld [vmem:[%s2682 + $0x50] sm:$0xff]
        %v2694 = vrot.slane %v2517, 4
        %v2695 = vrot.slane %v2518, 4
        %v2696 = vsel %vm2237, %v2694, %v2695
        %v2697 = vrot.slane %v2519, 4
        %v2698 = vsel %vm2237, %v2695, %v2697
        %v2699 = vrot.slane %v2520, 4
        %v2700 = vsel %vm2237, %v2697, %v2699
        %v2701 = vrot.slane %v2521, 4
        %v2702 = vsel %vm2237, %v2699, %v2701
        %v2703 = vrot.slane %v2522, 4
        %v2704 = vsel %vm2237, %v2701, %v2703
        %v2705 = vrot.slane %v2523, 4
        %v2706 = vsel %vm2237, %v2703, %v2705
        %v2707 = vsel %vm2567, %v2696, 0
        %v2709 = vsel %vm2567, %v2698, 0
        %v2711 = vsel %vm2567, %v2700, 0
        %v2713 = vsel %vm2567, %v2702, 0
        %v2715 = vsel %vm2567, %v2704, 0
        %v2717 = vsel %vm2567, %v2706, 0
        %v2719 = vsel %vm2567, %v2705, 0
        %2721 = vmatprep.subr.mxu0 0.0
        %2722 = vmatpush1.msra.mxu0 %v2683
        %2723 = vmatprep.subr.mxu0 0.0
        %2724 = vmatpush1.msra.mxu0 %v2684
        %2725 = vmatprep.subr.mxu0 0.0
        %2726 = vmatpush1.msra.mxu0 %v2685
        %2727 = vmatprep.subr.mxu0 0.0
        %2728 = vmatpush1.msra.mxu0 %v2686
        %2729 = vmatprep.subr.mxu0 0.0
        %2730 = vmatpush1.msra.mxu0 %v2687
        %2731 = vmatprep.subr.mxu0 0.0
        %2732 = vmatpush1.msra.mxu0 %v2688
        %2733 = vmatprep.subr.mxu0 0.0
        %2734 = vmatpush1.msra.mxu0 %v2689
        %2735 = vmatprep.subr.mxu0 0.0
        %2736 = vmatpush1.msra.mxu0 %v2690
        %2737 = vmatprep.subr.mxu0 0.0
        %2738 = vmatpush1.msra.mxu0 %v2691
        %2739 = vmatprep.subr.mxu0 0.0
        %2740 = vmatpush1.msra.mxu0 %v2692
        %2741 = vmatprep.subr.mxu0 0.0
        %2742 = vmatpush1.msra.mxu0 %v2693
        %2743 = vmatprep.subr.mxu0 0.0
        %2744 = vmatpush1.msra.mxu0 0.0
        %2745 = vmatprep.subr.mxu0 0.0
        %2746 = vmatpush1.msra.mxu0 0.0
        %2747 = vmatprep.subr.mxu0 0.0
        %2748 = vmatpush1.msra.mxu0 0.0
        %2749 = vmatprep.subr.mxu0 0.0
        %2750 = vmatpush1.msra.mxu0 0.0
        %2751 = vmatprep.subr.mxu0 0.0
        %2752 = vmatpush1.msra.mxu0 0.0
        %2753 = vmatprep.subr.mxu0 0.0
        %2754 = vmatpush1.msra.mxu0 0.0
        %2755 = vmatprep.subr.mxu0 0.0
        %2756 = vmatpush1.msra.mxu0 0.0
        %2757 = vmatprep.subr.mxu0 0.0
        %2758 = vmatpush1.msra.mxu0 0.0
        %2759 = vmatprep.subr.mxu0 0.0
        %2760 = vmatpush1.msra.mxu0 0.0
        %2761 = vmatprep.subr.mxu0 0.0
        %2762 = vmatpush1.msra.mxu0 0.0
        %2763 = vmatprep.subr.mxu0 0.0
        %2764 = vmatpush1.msra.mxu0 0.0
        %2765 = vmatprep.subr.mxu0 0.0
        %2766 = vmatpush1.msra.mxu0 0.0
        %2767 = vmatprep.subr.mxu0 0.0
        %2768 = vmatpush1.msra.mxu0 0.0
        %2769 = vmatprep.subr.mxu0 0.0
        %2770 = vmatpush1.msra.mxu0 0.0
        %2771 = vmatprep.subr.mxu0 0.0
        %2772 = vmatpush1.msra.mxu0 0.0
        %2773 = vmatprep.subr.mxu0 0.0
        %2774 = vmatpush1.msra.mxu0 0.0
        %2775 = vmatprep.subr.mxu0 0.0
        %2776 = vmatpush1.msra.mxu0 0.0
        %2777 = vmatprep.subr.mxu0 0.0
        %2778 = vmatpush1.msra.mxu0 0.0
        %2779 = vmatprep.subr.mxu0 0.0
        %2780 = vmatpush1.msra.mxu0 0.0
        %2781 = vmatprep.subr.mxu0 0.0
        %2782 = vmatpush1.msra.mxu0 0.0
        %2783 = vmatprep.subr.mxu0 0.0
        %2784 = vmatpush1.msra.mxu0 0.0
        %2785 = vmatprep.mubr.f32.mxu0 0.0
        %2786 = vmatmul.mubr.f32.gmra.mrb[0].mxu0 %v2707
        %v2787 = vpop.f32.mrb[0].mxu0
        %v2788 = vadd.f32 0.0, %v2787
        %v2789 = vpop.f32.mrb[0].mxu0
        %2790 = vmatprep.mubr.f32.mxu0 0.0
        %2791 = vmatmul.mubr.f32.gmra.mrb[0].mxu0 %v2709
        %v2792 = vpop.f32.mrb[0].mxu0
        %v2793 = vadd.f32 0.0, %v2792
        %v2794 = vpop.f32.mrb[0].mxu0
        %2795 = vmatprep.mubr.f32.mxu0 0.0
        %2796 = vmatmul.mubr.f32.gmra.mrb[0].mxu0 %v2711
        %v2797 = vpop.f32.mrb[0].mxu0
        %v2798 = vadd.f32 0.0, %v2797
        %v2799 = vpop.f32.mrb[0].mxu0
        %2800 = vmatprep.mubr.f32.mxu0 0.0
        %2801 = vmatmul.mubr.f32.gmra.mrb[0].mxu0 %v2713
        %v2802 = vpop.f32.mrb[0].mxu0
        %v2803 = vadd.f32 0.0, %v2802
        %v2804 = vpop.f32.mrb[0].mxu0
        %2805 = vmatprep.mubr.f32.mxu0 0.0
        %2806 = vmatmul.mubr.f32.gmra.mrb[0].mxu0 %v2715
        %v2807 = vpop.f32.mrb[0].mxu0
        %v2808 = vadd.f32 0.0, %v2807
        %v2809 = vpop.f32.mrb[0].mxu0
        %2810 = vmatprep.mubr.f32.mxu0 0.0
        %2811 = vmatmul.mubr.f32.gmra.mrb[0].mxu0 %v2717
        %v2812 = vpop.f32.mrb[0].mxu0
        %v2813 = vadd.f32 0.0, %v2812
        %v2814 = vpop.f32.mrb[0].mxu0
        %2815 = vmatprep.mubr.f32.mxu0 0.0
        %2816 = vmatmul.mubr.f32.gmra.mrb[0].mxu0 %v2719
        %v2817 = vpop.f32.mrb[0].mxu0
        %v2818 = vadd.f32 0.0, %v2817
        %v2819 = vpop.f32.mrb[0].mxu0
        %2820 = vdwg.mxu0
        %v2821 = vsel %vm2567, %v2517, 0
        %v2823 = vsel %vm2567, %v2518, 0
        %v2825 = vsel %vm2567, %v2519, 0
        %v2827 = vsel %vm2567, %v2520, 0
        %v2829 = vsel %vm2567, %v2521, 0
        %v2831 = vsel %vm2567, %v2522, 0
        %v2833 = vsel %vm2567, %v2523, 0
        %2835 = vmatprep.subr.mxu0 0.0
        %2836 = vmatpush1.msra.mxu0 %v2524
        %2837 = vmatprep.subr.mxu0 0.0
        %2838 = vmatpush1.msra.mxu0 %v2525
        %2839 = vmatprep.subr.mxu0 0.0
        %2840 = vmatpush1.msra.mxu0 %v2526
        %2841 = vmatprep.subr.mxu0 0.0
        %2842 = vmatpush1.msra.mxu0 %v2527
        %2843 = vmatprep.subr.mxu0 0.0
        %2844 = vmatpush1.msra.mxu0 %v2528
        %2845 = vmatprep.subr.mxu0 0.0
        %2846 = vmatpush1.msra.mxu0 %v2529
        %2847 = vmatprep.subr.mxu0 0.0
        %2848 = vmatpush1.msra.mxu0 %v2530
        %2849 = vmatprep.subr.mxu0 0.0
        %2850 = vmatpush1.msra.mxu0 %v2531
        %2851 = vmatprep.subr.mxu0 0.0
        %2852 = vmatpush1.msra.mxu0 %v2532
        %2853 = vmatprep.subr.mxu0 0.0
        %2854 = vmatpush1.msra.mxu0 %v2533
        %2855 = vmatprep.subr.mxu0 0.0
        %2856 = vmatpush1.msra.mxu0 %v2534
        %2857 = vmatprep.subr.mxu0 0.0
        %2858 = vmatpush1.msra.mxu0 0.0
        %2859 = vmatprep.subr.mxu0 0.0
        %2860 = vmatpush1.msra.mxu0 0.0
        %2861 = vmatprep.subr.mxu0 0.0
        %2862 = vmatpush1.msra.mxu0 0.0
        %2863 = vmatprep.subr.mxu0 0.0
        %2864 = vmatpush1.msra.mxu0 0.0
        %2865 = vmatprep.subr.mxu0 0.0
        %2866 = vmatpush1.msra.mxu0 0.0
        %2867 = vmatprep.subr.mxu0 0.0
        %2868 = vmatpush1.msra.mxu0 0.0
        %2869 = vmatprep.subr.mxu0 0.0
        %2870 = vmatpush1.msra.mxu0 0.0
        %2871 = vmatprep.subr.mxu0 0.0
        %2872 = vmatpush1.msra.mxu0 0.0
        %2873 = vmatprep.subr.mxu0 0.0
        %2874 = vmatpush1.msra.mxu0 0.0
        %2875 = vmatprep.subr.mxu0 0.0
        %2876 = vmatpush1.msra.mxu0 0.0
        %2877 = vmatprep.subr.mxu0 0.0
        %2878 = vmatpush1.msra.mxu0 0.0
        %2879 = vmatprep.subr.mxu0 0.0
        %2880 = vmatpush1.msra.mxu0 0.0
        %2881 = vmatprep.subr.mxu0 0.0
        %2882 = vmatpush1.msra.mxu0 0.0
        %2883 = vmatprep.subr.mxu0 0.0
        %2884 = vmatpush1.msra.mxu0 0.0
        %2885 = vmatprep.subr.mxu0 0.0
        %2886 = vmatpush1.msra.mxu0 0.0
        %2887 = vmatprep.subr.mxu0 0.0
        %2888 = vmatpush1.msra.mxu0 0.0
        %2889 = vmatprep.subr.mxu0 0.0
        %2890 = vmatpush1.msra.mxu0 0.0
        %2891 = vmatprep.subr.mxu0 0.0
        %2892 = vmatpush1.msra.mxu0 0.0
        %2893 = vmatprep.subr.mxu0 0.0
        %2894 = vmatpush1.msra.mxu0 0.0
        %2895 = vmatprep.subr.mxu0 0.0
        %2896 = vmatpush1.msra.mxu0 0.0
        %2897 = vmatprep.subr.mxu0 0.0
        %2898 = vmatpush1.msra.mxu0 0.0
        %2899 = vmatprep.mubr.f32.mxu0 0.0
        %2900 = vmatmul.mubr.f32.gmra.mrb[0].mxu0 %v2821
        %v2901 = vpop.f32.mrb[0].mxu0
        %v2902 = vadd.f32 %v2649, %v2901
        %v2903 = vpop.f32.mrb[0].mxu0
        %2904 = vmatprep.mubr.f32.mxu0 0.0
        %2905 = vmatmul.mubr.f32.gmra.mrb[0].mxu0 %v2823
        %v2906 = vpop.f32.mrb[0].mxu0
        %v2907 = vadd.f32 %v2654, %v2906
        %v2908 = vpop.f32.mrb[0].mxu0
        %2909 = vmatprep.mubr.f32.mxu0 0.0
        %2910 = vmatmul.mubr.f32.gmra.mrb[0].mxu0 %v2825
        %v2911 = vpop.f32.mrb[0].mxu0
        %v2912 = vadd.f32 %v2659, %v2911
        %v2913 = vpop.f32.mrb[0].mxu0
        %2914 = vmatprep.mubr.f32.mxu0 0.0
        %2915 = vmatmul.mubr.f32.gmra.mrb[0].mxu0 %v2827
        %v2916 = vpop.f32.mrb[0].mxu0
        %v2917 = vadd.f32 %v2664, %v2916
        %v2918 = vpop.f32.mrb[0].mxu0
        %2919 = vmatprep.mubr.f32.mxu0 0.0
        %2920 = vmatmul.mubr.f32.gmra.mrb[0].mxu0 %v2829
        %v2921 = vpop.f32.mrb[0].mxu0
        %v2922 = vadd.f32 %v2669, %v2921
        %v2923 = vpop.f32.mrb[0].mxu0
        %2924 = vmatprep.mubr.f32.mxu0 0.0
        %2925 = vmatmul.mubr.f32.gmra.mrb[0].mxu0 %v2831
        %v2926 = vpop.f32.mrb[0].mxu0
        %v2927 = vadd.f32 %v2674, %v2926
        %v2928 = vpop.f32.mrb[0].mxu0
        %2929 = vmatprep.mubr.f32.mxu0 0.0
        %2930 = vmatmul.mubr.f32.gmra.mrb[0].mxu0 %v2833
        %v2931 = vpop.f32.mrb[0].mxu0
        %v2932 = vadd.f32 %v2679, %v2931
        %v2933 = vpop.f32.mrb[0].mxu0
        %2934 = vdwg.mxu0
        %v2935 = vadd.f32 %v2902, %v2788
        %v2936 = vadd.f32 %v2907, %v2793
        %v2937 = vadd.f32 %v2912, %v2798
        %v2938 = vadd.f32 %v2917, %v2803
        %v2939 = vadd.f32 %v2922, %v2808
        %v2940 = vadd.f32 %v2927, %v2813
        %v2941 = vadd.f32 %v2932, %v2818
        %v2942 = vld [vmem:[%s8] sm:$0x1]
        %v2944 = vlaneseq
        %v2945 = vshrl.u32 %v2944, 7
        %v2946 = vsub.s32 0, %v2945
        %v2947 = vrot.slane %v2942, %v2946
        %v2949 = vadd.f32 %v2935, %v2947
        %v2950 = vadd.f32 %v2936, %v2947
        %v2951 = vadd.f32 %v2937, %v2947
        %v2952 = vadd.f32 %v2938, %v2947
        %v2953 = vadd.f32 %v2939, %v2947
        %v2954 = vadd.f32 %v2940, %v2947
        %v2955 = vadd.f32 %v2941, %v2947
        %v2962 = vrot.slane %v2949, 2
        %v2963 = vrot.slane %v2950, 2
        %v2964 = vsel %vm692, %v2962, %v2963
        %v2965 = vrot.slane %v2951, 2
        %v2966 = vsel %vm692, %v2963, %v2965
        %v2967 = vrot.slane %v2952, 2
        %v2968 = vsel %vm692, %v2965, %v2967
        %v2969 = vrot.slane %v2953, 2
        %v2970 = vsel %vm692, %v2967, %v2969
        %v2971 = vrot.slane %v2954, 2
        %v2972 = vsel %vm692, %v2969, %v2971
        %v2979 = vmax.f32 %v2949, %v2964
        %v2980 = vmax.f32 %v2950, %v2966
        %v2981 = vmax.f32 %v2951, %v2968
        %v2982 = vmax.f32 %v2952, %v2970
        %v2983 = vmax.f32 %v2953, %v2972
        %v2984 = vmax.f32 %v2954, %v2971
        %v2986 = vrot.slane %v2949, 4
        %v2987 = vrot.slane %v2950, 4
        %v2988 = vsel %vm2237, %v2986, %v2987
        %v2989 = vrot.slane %v2951, 4
        %v2990 = vsel %vm2237, %v2987, %v2989
        %v2991 = vrot.slane %v2952, 4
        %v2992 = vsel %vm2237, %v2989, %v2991
        %v2993 = vrot.slane %v2953, 4
        %v2994 = vsel %vm2237, %v2991, %v2993
        %v2995 = vrot.slane %v2954, 4
        %v2996 = vsel %vm2237, %v2993, %v2995
        %v2997 = vrot.slane %v2955, 4
        %v2998 = vsel %vm2237, %v2995, %v2997
        %v3005 = vmax.f32 %v2979, %v2988
        %v3006 = vmax.f32 %v2980, %v2990
        %v3007 = vmax.f32 %v2981, %v2992
        %v3008 = vmax.f32 %v2982, %v2994
        %v3009 = vmax.f32 %v2983, %v2996
        %v3010 = vmax.f32 %v2984, %v2998
        %3017 = vrot.lane.b32.xlu0 %v3005, 120
        %v3018 = vpop.permute.xlu0 %3017
        %3019 = vrot.lane.b32.xlu0 %v3006, 120
        %v3020 = vpop.permute.xlu0 %3019
        %3021 = vrot.lane.b32.xlu0 %v3007, 120
        %v3022 = vpop.permute.xlu0 %3021
        %3023 = vrot.lane.b32.xlu0 %v3008, 120
        %v3024 = vpop.permute.xlu0 %3023
        %3025 = vrot.lane.b32.xlu0 %v3009, 120
        %v3026 = vpop.permute.xlu0 %3025
        %3027 = vrot.lane.b32.xlu0 %v3010, 120
        %v3028 = vpop.permute.xlu0 %3027
        %v3035 = vmax.f32 %v3005, %v3018
        %v3036 = vmax.f32 %v3006, %v3020
        %v3037 = vmax.f32 %v3007, %v3022
        %v3038 = vmax.f32 %v3008, %v3024
        %v3039 = vmax.f32 %v3009, %v3026
        %v3040 = vmax.f32 %v3010, %v3028
        %3041 = vrot.lane.b32.xlu0 %v3005, 112
        %v3042 = vpop.permute.xlu0 %3041
        %3043 = vrot.lane.b32.xlu0 %v3006, 112
        %v3044 = vpop.permute.xlu0 %3043
        %3045 = vrot.lane.b32.xlu0 %v3007, 112
        %v3046 = vpop.permute.xlu0 %3045
        %3047 = vrot.lane.b32.xlu0 %v3008, 112
        %v3048 = vpop.permute.xlu0 %3047
        %3049 = vrot.lane.b32.xlu0 %v3009, 112
        %v3050 = vpop.permute.xlu0 %3049
        %3051 = vrot.lane.b32.xlu0 %v3010, 112
        %v3052 = vpop.permute.xlu0 %3051
        %v3059 = vmax.f32 %v3035, %v3042
        %v3060 = vmax.f32 %v3036, %v3044
        %v3061 = vmax.f32 %v3037, %v3046
        %v3062 = vmax.f32 %v3038, %v3048
        %v3063 = vmax.f32 %v3039, %v3050
        %v3064 = vmax.f32 %v3040, %v3052
        %v3065 = vld [vmem:[%s9] sm:$0xff]
        %v3066 = vld [vmem:[%s9 + $0x8] sm:$0xff]
        %v3067 = vld [vmem:[%s9 + $0x10] sm:$0xff]
        %v3068 = vld [vmem:[%s9 + $0x18] sm:$0xff]
        %v3069 = vld [vmem:[%s9 + $0x20] sm:$0xff]
        %v3070 = vld [vmem:[%s9 + $0x28] sm:$0xff]
        %v3071 = vld [vmem:[%s9 + $0x30] sm:$0xff]
        %s3072 = scalar_lea.vmem %s9, 56
        %v3073 = vld [vmem:[%s3072] sm:$0xff]
        %v3074 = vld [vmem:[%s3072 + $0x8] sm:$0xff]
        %v3075 = vld [vmem:[%s3072 + $0x10] sm:$0xff]
        %v3076 = vld [vmem:[%s3072 + $0x18] sm:$0xff]
        %v3077 = vld [vmem:[%s3072 + $0x20] sm:$0xff]
        %v3078 = vld [vmem:[%s3072 + $0x28] sm:$0xff]
        %v3079 = vld [vmem:[%s3072 + $0x30] sm:$0xff]
        %v3085 = vrot.slane %v3059, 4
        %v3086 = vrot.slane %v3060, 4
        %v3087 = vsel %vm2237, %v3085, %v3086
        %v3088 = vrot.slane %v3061, 4
        %v3089 = vsel %vm2237, %v3086, %v3088
        %v3090 = vrot.slane %v3062, 4
        %v3091 = vsel %vm2237, %v3088, %v3090
        %v3092 = vrot.slane %v3063, 4
        %v3093 = vsel %vm2237, %v3090, %v3092
        %vm3094 = vcmask 457728
        %v3095 = vsel %vm3094, %v3087, 0
        %v3097 = vsel %vm3094, %v3089, 0
        %v3099 = vsel %vm3094, %v3091, 0
        %v3101 = vsel %vm3094, %v3093, 0
        %v3103 = vsel %vm3094, %v3092, 0
        %3105 = vmatprep.subr.mxu0 0.0
        %3106 = vmatpush1.msra.mxu0 %v3073
        %3107 = vmatprep.subr.mxu0 0.0
        %3108 = vmatpush1.msra.mxu0 %v3074
        %3109 = vmatprep.subr.mxu0 0.0
        %3110 = vmatpush1.msra.mxu0 %v3075
        %3111 = vmatprep.subr.mxu0 0.0
        %3112 = vmatpush1.msra.mxu0 %v3076
        %3113 = vmatprep.subr.mxu0 0.0
        %3114 = vmatpush1.msra.mxu0 %v3077
        %3115 = vmatprep.subr.mxu0 0.0
        %3116 = vmatpush1.msra.mxu0 %v3078
        %3117 = vmatprep.subr.mxu0 0.0
        %3118 = vmatpush1.msra.mxu0 %v3079
        %3119 = vmatprep.subr.mxu0 0.0
        %3120 = vmatpush1.msra.mxu0 0.0
        %3121 = vmatprep.subr.mxu0 0.0
        %3122 = vmatpush1.msra.mxu0 0.0
        %3123 = vmatprep.subr.mxu0 0.0
        %3124 = vmatpush1.msra.mxu0 0.0
        %3125 = vmatprep.subr.mxu0 0.0
        %3126 = vmatpush1.msra.mxu0 0.0
        %3127 = vmatprep.subr.mxu0 0.0
        %3128 = vmatpush1.msra.mxu0 0.0
        %3129 = vmatprep.subr.mxu0 0.0
        %3130 = vmatpush1.msra.mxu0 0.0
        %3131 = vmatprep.subr.mxu0 0.0
        %3132 = vmatpush1.msra.mxu0 0.0
        %3133 = vmatprep.subr.mxu0 0.0
        %3134 = vmatpush1.msra.mxu0 0.0
        %3135 = vmatprep.subr.mxu0 0.0
        %3136 = vmatpush1.msra.mxu0 0.0
        %3137 = vmatprep.subr.mxu0 0.0
        %3138 = vmatpush1.msra.mxu0 0.0
        %3139 = vmatprep.subr.mxu0 0.0
        %3140 = vmatpush1.msra.mxu0 0.0
        %3141 = vmatprep.subr.mxu0 0.0
        %3142 = vmatpush1.msra.mxu0 0.0
        %3143 = vmatprep.subr.mxu0 0.0
        %3144 = vmatpush1.msra.mxu0 0.0
        %3145 = vmatprep.subr.mxu0 0.0
        %3146 = vmatpush1.msra.mxu0 0.0
        %3147 = vmatprep.subr.mxu0 0.0
        %3148 = vmatpush1.msra.mxu0 0.0
        %3149 = vmatprep.subr.mxu0 0.0
        %3150 = vmatpush1.msra.mxu0 0.0
        %3151 = vmatprep.subr.mxu0 0.0
        %3152 = vmatpush1.msra.mxu0 0.0
        %3153 = vmatprep.subr.mxu0 0.0
        %3154 = vmatpush1.msra.mxu0 0.0
        %3155 = vmatprep.subr.mxu0 0.0
        %3156 = vmatpush1.msra.mxu0 0.0
        %3157 = vmatprep.subr.mxu0 0.0
        %3158 = vmatpush1.msra.mxu0 0.0
        %3159 = vmatprep.subr.mxu0 0.0
        %3160 = vmatpush1.msra.mxu0 0.0
        %3161 = vmatprep.subr.mxu0 0.0
        %3162 = vmatpush1.msra.mxu0 0.0
        %3163 = vmatprep.subr.mxu0 0.0
        %3164 = vmatpush1.msra.mxu0 0.0
        %3165 = vmatprep.subr.mxu0 0.0
        %3166 = vmatpush1.msra.mxu0 0.0
        %3167 = vmatprep.subr.mxu0 0.0
        %3168 = vmatpush1.msra.mxu0 0.0
        %3169 = vmatprep.mubr.f32.mxu0 0.0
        %3170 = vmatmul.mubr.f32.gmra.mrb[0].mxu0 %v3095
        %v3171 = vpop.f32.mrb[0].mxu0
        %v3172 = vadd.f32 0.0, %v3171
        %v3173 = vpop.f32.mrb[0].mxu0
        %3174 = vmatprep.mubr.f32.mxu0 0.0
        %3175 = vmatmul.mubr.f32.gmra.mrb[0].mxu0 %v3097
        %v3176 = vpop.f32.mrb[0].mxu0
        %v3177 = vpop.f32.mrb[0].mxu0
        %3178 = vmatprep.mubr.f32.mxu0 0.0
        %3179 = vmatmul.mubr.f32.gmra.mrb[0].mxu0 %v3099
        %v3180 = vpop.f32.mrb[0].mxu0
        %v3181 = vpop.f32.mrb[0].mxu0
        %3182 = vmatprep.mubr.f32.mxu0 0.0
        %3183 = vmatmul.mubr.f32.gmra.mrb[0].mxu0 %v3101
        %v3184 = vpop.f32.mrb[0].mxu0
        %v3185 = vpop.f32.mrb[0].mxu0
        %3186 = vmatprep.mubr.f32.mxu0 0.0
        %3187 = vmatmul.mubr.f32.gmra.mrb[0].mxu0 %v3103
        %v3188 = vpop.f32.mrb[0].mxu0
        %v3189 = vadd.f32 0.0, %v3188
        %v3190 = vpop.f32.mrb[0].mxu0
        %3191 = vdwg.mxu0
        %s3192 = scalar_lea.vmem %s9, 112
        %v3193 = vld [vmem:[%s3192] sm:$0xff]
        %v3194 = vld [vmem:[%s3192 + $0x8] sm:$0xff]
        %v3195 = vld [vmem:[%s3192 + $0x10] sm:$0xff]
        %v3196 = vld [vmem:[%s3192 + $0x18] sm:$0xff]
        %v3197 = vld [vmem:[%s3192 + $0x20] sm:$0xff]
        %v3198 = vld [vmem:[%s3192 + $0x28] sm:$0xff]
        %v3199 = vld [vmem:[%s3192 + $0x30] sm:$0xff]
        %s3200 = scalar_lea.vmem %s9, 168
        %v3201 = vld [vmem:[%s3200] sm:$0xff]
        %v3202 = vld [vmem:[%s3200 + $0x8] sm:$0xff]
        %v3203 = vld [vmem:[%s3200 + $0x10] sm:$0xff]
        %v3204 = vld [vmem:[%s3200 + $0x18] sm:$0xff]
        %v3205 = vld [vmem:[%s3200 + $0x20] sm:$0xff]
        %v3206 = vld [vmem:[%s3200 + $0x28] sm:$0xff]
        %v3207 = vld [vmem:[%s3200 + $0x30] sm:$0xff]
        %v3209 = vrot.slane %v3064, 4
        %v3210 = vsel %vm2237, %v3092, %v3209
        %v3211 = vsel %vm3094, %v3210, 0
        %v3213 = vsel %vm3094, %v3209, 0
        %3215 = vmatprep.subr.mxu0 0.0
        %3216 = vmatpush1.msra.mxu0 %v3201
        %3217 = vmatprep.subr.mxu0 0.0
        %3218 = vmatpush1.msra.mxu0 %v3202
        %3219 = vmatprep.subr.mxu0 0.0
        %3220 = vmatpush1.msra.mxu0 %v3203
        %3221 = vmatprep.subr.mxu0 0.0
        %3222 = vmatpush1.msra.mxu0 %v3204
        %3223 = vmatprep.subr.mxu0 0.0
        %3224 = vmatpush1.msra.mxu0 %v3205
        %3225 = vmatprep.subr.mxu0 0.0
        %3226 = vmatpush1.msra.mxu0 %v3206
        %3227 = vmatprep.subr.mxu0 0.0
        %3228 = vmatpush1.msra.mxu0 %v3207
        %3229 = vmatprep.subr.mxu0 0.0
        %3230 = vmatpush1.msra.mxu0 0.0
        %3231 = vmatprep.subr.mxu0 0.0
        %3232 = vmatpush1.msra.mxu0 0.0
        %3233 = vmatprep.subr.mxu0 0.0
        %3234 = vmatpush1.msra.mxu0 0.0
        %3235 = vmatprep.subr.mxu0 0.0
        %3236 = vmatpush1.msra.mxu0 0.0
        %3237 = vmatprep.subr.mxu0 0.0
        %3238 = vmatpush1.msra.mxu0 0.0
        %3239 = vmatprep.subr.mxu0 0.0
        %3240 = vmatpush1.msra.mxu0 0.0
        %3241 = vmatprep.subr.mxu0 0.0
        %3242 = vmatpush1.msra.mxu0 0.0
        %3243 = vmatprep.subr.mxu0 0.0
        %3244 = vmatpush1.msra.mxu0 0.0
        %3245 = vmatprep.subr.mxu0 0.0
        %3246 = vmatpush1.msra.mxu0 0.0
        %3247 = vmatprep.subr.mxu0 0.0
        %3248 = vmatpush1.msra.mxu0 0.0
        %3249 = vmatprep.subr.mxu0 0.0
        %3250 = vmatpush1.msra.mxu0 0.0
        %3251 = vmatprep.subr.mxu0 0.0
        %3252 = vmatpush1.msra.mxu0 0.0
        %3253 = vmatprep.subr.mxu0 0.0
        %3254 = vmatpush1.msra.mxu0 0.0
        %3255 = vmatprep.subr.mxu0 0.0
        %3256 = vmatpush1.msra.mxu0 0.0
        %3257 = vmatprep.subr.mxu0 0.0
        %3258 = vmatpush1.msra.mxu0 0.0
        %3259 = vmatprep.subr.mxu0 0.0
        %3260 = vmatpush1.msra.mxu0 0.0
        %3261 = vmatprep.subr.mxu0 0.0
        %3262 = vmatpush1.msra.mxu0 0.0
        %3263 = vmatprep.subr.mxu0 0.0
        %3264 = vmatpush1.msra.mxu0 0.0
        %3265 = vmatprep.subr.mxu0 0.0
        %3266 = vmatpush1.msra.mxu0 0.0
        %3267 = vmatprep.subr.mxu0 0.0
        %3268 = vmatpush1.msra.mxu0 0.0
        %3269 = vmatprep.subr.mxu0 0.0
        %3270 = vmatpush1.msra.mxu0 0.0
        %3271 = vmatprep.subr.mxu0 0.0
        %3272 = vmatpush1.msra.mxu0 0.0
        %3273 = vmatprep.subr.mxu0 0.0
        %3274 = vmatpush1.msra.mxu0 0.0
        %3275 = vmatprep.subr.mxu0 0.0
        %3276 = vmatpush1.msra.mxu0 0.0
        %3277 = vmatprep.subr.mxu0 0.0
        %3278 = vmatpush1.msra.mxu0 0.0
        %3279 = vmatprep.mubr.f32.mxu0 0.0
        %3280 = vmatmul.mubr.f32.gmra.mrb[0].mxu0 %v3097
        %v3281 = vpop.f32.mrb[0].mxu0
        %v3282 = vadd.f32 0.0, %v3281
        %v3283 = vpop.f32.mrb[0].mxu0
        %3284 = vmatprep.mubr.f32.mxu0 0.0
        %3285 = vmatmul.mubr.f32.gmra.mrb[0].mxu0 %v3099
        %v3286 = vpop.f32.mrb[0].mxu0
        %v3287 = vpop.f32.mrb[0].mxu0
        %3288 = vmatprep.mubr.f32.mxu0 0.0
        %3289 = vmatmul.mubr.f32.gmra.mrb[0].mxu0 %v3101
        %v3290 = vpop.f32.mrb[0].mxu0
        %v3291 = vpop.f32.mrb[0].mxu0
        %3292 = vmatprep.mubr.f32.mxu0 0.0
        %3293 = vmatmul.mubr.f32.gmra.mrb[0].mxu0 %v3211
        %v3294 = vpop.f32.mrb[0].mxu0
        %v3295 = vpop.f32.mrb[0].mxu0
        %3296 = vmatprep.mubr.f32.mxu0 0.0
        %3297 = vmatmul.mubr.f32.gmra.mrb[0].mxu0 %v3213
        %v3298 = vpop.f32.mrb[0].mxu0
        %v3299 = vadd.f32 0.0, %v3298
        %v3300 = vpop.f32.mrb[0].mxu0
        %3301 = vdwg.mxu0
        %v3302 = vsel %vm3094, %v3059, 0
        %v3304 = vsel %vm3094, %v3060, 0
        %v3306 = vsel %vm3094, %v3061, 0
        %v3308 = vsel %vm3094, %v3062, 0
        %v3310 = vsel %vm3094, %v3063, 0
        %3312 = vmatprep.subr.mxu0 0.0
        %3313 = vmatpush1.msra.mxu0 %v3065
        %3314 = vmatprep.subr.mxu0 0.0
        %3315 = vmatpush1.msra.mxu0 %v3066
        %3316 = vmatprep.subr.mxu0 0.0
        %3317 = vmatpush1.msra.mxu0 %v3067
        %3318 = vmatprep.subr.mxu0 0.0
        %3319 = vmatpush1.msra.mxu0 %v3068
        %3320 = vmatprep.subr.mxu0 0.0
        %3321 = vmatpush1.msra.mxu0 %v3069
        %3322 = vmatprep.subr.mxu0 0.0
        %3323 = vmatpush1.msra.mxu0 %v3070
        %3324 = vmatprep.subr.mxu0 0.0
        %3325 = vmatpush1.msra.mxu0 %v3071
        %3326 = vmatprep.subr.mxu0 0.0
        %3327 = vmatpush1.msra.mxu0 0.0
        %3328 = vmatprep.subr.mxu0 0.0
        %3329 = vmatpush1.msra.mxu0 0.0
        %3330 = vmatprep.subr.mxu0 0.0
        %3331 = vmatpush1.msra.mxu0 0.0
        %3332 = vmatprep.subr.mxu0 0.0
        %3333 = vmatpush1.msra.mxu0 0.0
        %3334 = vmatprep.subr.mxu0 0.0
        %3335 = vmatpush1.msra.mxu0 0.0
        %3336 = vmatprep.subr.mxu0 0.0
        %3337 = vmatpush1.msra.mxu0 0.0
        %3338 = vmatprep.subr.mxu0 0.0
        %3339 = vmatpush1.msra.mxu0 0.0
        %3340 = vmatprep.subr.mxu0 0.0
        %3341 = vmatpush1.msra.mxu0 0.0
        %3342 = vmatprep.subr.mxu0 0.0
        %3343 = vmatpush1.msra.mxu0 0.0
        %3344 = vmatprep.subr.mxu0 0.0
        %3345 = vmatpush1.msra.mxu0 0.0
        %3346 = vmatprep.subr.mxu0 0.0
        %3347 = vmatpush1.msra.mxu0 0.0
        %3348 = vmatprep.subr.mxu0 0.0
        %3349 = vmatpush1.msra.mxu0 0.0
        %3350 = vmatprep.subr.mxu0 0.0
        %3351 = vmatpush1.msra.mxu0 0.0
        %3352 = vmatprep.subr.mxu0 0.0
        %3353 = vmatpush1.msra.mxu0 0.0
        %3354 = vmatprep.subr.mxu0 0.0
        %3355 = vmatpush1.msra.mxu0 0.0
        %3356 = vmatprep.subr.mxu0 0.0
        %3357 = vmatpush1.msra.mxu0 0.0
        %3358 = vmatprep.subr.mxu0 0.0
        %3359 = vmatpush1.msra.mxu0 0.0
        %3360 = vmatprep.subr.mxu0 0.0
        %3361 = vmatpush1.msra.mxu0 0.0
        %3362 = vmatprep.subr.mxu0 0.0
        %3363 = vmatpush1.msra.mxu0 0.0
        %3364 = vmatprep.subr.mxu0 0.0
        %3365 = vmatpush1.msra.mxu0 0.0
        %3366 = vmatprep.subr.mxu0 0.0
        %3367 = vmatpush1.msra.mxu0 0.0
        %3368 = vmatprep.subr.mxu0 0.0
        %3369 = vmatpush1.msra.mxu0 0.0
        %3370 = vmatprep.subr.mxu0 0.0
        %3371 = vmatpush1.msra.mxu0 0.0
        %3372 = vmatprep.subr.mxu0 0.0
        %3373 = vmatpush1.msra.mxu0 0.0
        %3374 = vmatprep.subr.mxu0 0.0
        %3375 = vmatpush1.msra.mxu0 0.0
        %3376 = vmatprep.mubr.f32.mxu0 0.0
        %3377 = vmatmul.mubr.f32.gmra.mrb[0].mxu0 %v3302
        %v3378 = vpop.f32.mrb[0].mxu0
        %v3379 = vadd.f32 %v3172, %v3378
        %v3380 = vpop.f32.mrb[0].mxu0
        %3381 = vmatprep.mubr.f32.mxu0 0.0
        %3382 = vmatmul.mubr.f32.gmra.mrb[0].mxu0 %v3304
        %v3383 = vpop.f32.mrb[0].mxu0
        %v3384 = vpop.f32.mrb[0].mxu0
        %3385 = vmatprep.mubr.f32.mxu0 0.0
        %3386 = vmatmul.mubr.f32.gmra.mrb[0].mxu0 %v3306
        %v3387 = vpop.f32.mrb[0].mxu0
        %v3388 = vpop.f32.mrb[0].mxu0
        %3389 = vmatprep.mubr.f32.mxu0 0.0
        %3390 = vmatmul.mubr.f32.gmra.mrb[0].mxu0 %v3308
        %v3391 = vpop.f32.mrb[0].mxu0
        %v3392 = vpop.f32.mrb[0].mxu0
        %3393 = vmatprep.mubr.f32.mxu0 0.0
        %3394 = vmatmul.mubr.f32.gmra.mrb[0].mxu0 %v3310
        %v3395 = vpop.f32.mrb[0].mxu0
        %v3396 = vadd.f32 %v3189, %v3395
        %v3397 = vpop.f32.mrb[0].mxu0
        %3398 = vdwg.mxu0
        %v3399 = vsel %vm3094, %v3064, 0
        %3401 = vmatprep.subr.mxu0 0.0
        %3402 = vmatpush1.msra.mxu0 %v3193
        %3403 = vmatprep.subr.mxu0 0.0
        %3404 = vmatpush1.msra.mxu0 %v3194
        %3405 = vmatprep.subr.mxu0 0.0
        %3406 = vmatpush1.msra.mxu0 %v3195
        %3407 = vmatprep.subr.mxu0 0.0
        %3408 = vmatpush1.msra.mxu0 %v3196
        %3409 = vmatprep.subr.mxu0 0.0
        %3410 = vmatpush1.msra.mxu0 %v3197
        %3411 = vmatprep.subr.mxu0 0.0
        %3412 = vmatpush1.msra.mxu0 %v3198
        %3413 = vmatprep.subr.mxu0 0.0
        %3414 = vmatpush1.msra.mxu0 %v3199
        %3415 = vmatprep.subr.mxu0 0.0
        %3416 = vmatpush1.msra.mxu0 0.0
        %3417 = vmatprep.subr.mxu0 0.0
        %3418 = vmatpush1.msra.mxu0 0.0
        %3419 = vmatprep.subr.mxu0 0.0
        %3420 = vmatpush1.msra.mxu0 0.0
        %3421 = vmatprep.subr.mxu0 0.0
        %3422 = vmatpush1.msra.mxu0 0.0
        %3423 = vmatprep.subr.mxu0 0.0
        %3424 = vmatpush1.msra.mxu0 0.0
        %3425 = vmatprep.subr.mxu0 0.0
        %3426 = vmatpush1.msra.mxu0 0.0
        %3427 = vmatprep.subr.mxu0 0.0
        %3428 = vmatpush1.msra.mxu0 0.0
        %3429 = vmatprep.subr.mxu0 0.0
        %3430 = vmatpush1.msra.mxu0 0.0
        %3431 = vmatprep.subr.mxu0 0.0
        %3432 = vmatpush1.msra.mxu0 0.0
        %3433 = vmatprep.subr.mxu0 0.0
        %3434 = vmatpush1.msra.mxu0 0.0
        %3435 = vmatprep.subr.mxu0 0.0
        %3436 = vmatpush1.msra.mxu0 0.0
        %3437 = vmatprep.subr.mxu0 0.0
        %3438 = vmatpush1.msra.mxu0 0.0
        %3439 = vmatprep.subr.mxu0 0.0
        %3440 = vmatpush1.msra.mxu0 0.0
        %3441 = vmatprep.subr.mxu0 0.0
        %3442 = vmatpush1.msra.mxu0 0.0
        %3443 = vmatprep.subr.mxu0 0.0
        %3444 = vmatpush1.msra.mxu0 0.0
        %3445 = vmatprep.subr.mxu0 0.0
        %3446 = vmatpush1.msra.mxu0 0.0
        %3447 = vmatprep.subr.mxu0 0.0
        %3448 = vmatpush1.msra.mxu0 0.0
        %3449 = vmatprep.subr.mxu0 0.0
        %3450 = vmatpush1.msra.mxu0 0.0
        %3451 = vmatprep.subr.mxu0 0.0
        %3452 = vmatpush1.msra.mxu0 0.0
        %3453 = vmatprep.subr.mxu0 0.0
        %3454 = vmatpush1.msra.mxu0 0.0
        %3455 = vmatprep.subr.mxu0 0.0
        %3456 = vmatpush1.msra.mxu0 0.0
        %3457 = vmatprep.subr.mxu0 0.0
        %3458 = vmatpush1.msra.mxu0 0.0
        %3459 = vmatprep.subr.mxu0 0.0
        %3460 = vmatpush1.msra.mxu0 0.0
        %3461 = vmatprep.subr.mxu0 0.0
        %3462 = vmatpush1.msra.mxu0 0.0
        %3463 = vmatprep.subr.mxu0 0.0
        %3464 = vmatpush1.msra.mxu0 0.0
        %3465 = vmatprep.mubr.f32.mxu0 0.0
        %3466 = vmatmul.mubr.f32.gmra.mrb[0].mxu0 %v3304
        %v3467 = vpop.f32.mrb[0].mxu0
        %v3468 = vadd.f32 %v3282, %v3467
        %v3469 = vpop.f32.mrb[0].mxu0
        %3470 = vmatprep.mubr.f32.mxu0 0.0
        %3471 = vmatmul.mubr.f32.gmra.mrb[0].mxu0 %v3306
        %v3472 = vpop.f32.mrb[0].mxu0
        %v3473 = vpop.f32.mrb[0].mxu0
        %3474 = vmatprep.mubr.f32.mxu0 0.0
        %3475 = vmatmul.mubr.f32.gmra.mrb[0].mxu0 %v3308
        %v3476 = vpop.f32.mrb[0].mxu0
        %v3477 = vpop.f32.mrb[0].mxu0
        %3478 = vmatprep.mubr.f32.mxu0 0.0
        %3479 = vmatmul.mubr.f32.gmra.mrb[0].mxu0 %v3310
        %v3480 = vpop.f32.mrb[0].mxu0
        %v3481 = vpop.f32.mrb[0].mxu0
        %3482 = vmatprep.mubr.f32.mxu0 0.0
        %3483 = vmatmul.mubr.f32.gmra.mrb[0].mxu0 %v3399
        %v3484 = vpop.f32.mrb[0].mxu0
        %v3485 = vadd.f32 %v3299, %v3484
        %v3486 = vpop.f32.mrb[0].mxu0
        %3487 = vdwg.mxu0
        %v3488 = vadd.f32 %v3379, %v3468
        %v3489 = vadd.f32 %v3396, %v3485
        %v3490 = vld [vmem:[%s10] sm:$0x1]
        %v3492 = vlaneseq
        %v3493 = vshrl.u32 %v3492, 7
        %v3494 = vsub.s32 0, %v3493
        %v3495 = vrot.slane %v3490, %v3494
        %v3497 = vadd.f32 %v3488, %v3495
        %v3498 = vadd.f32 %v3489, %v3495
        %v3500 = vrot.slane %v3498, 7
        %vm3502 = vcmask 1040384
        %v3503 = vsel %vm3502, %v3497, %v3500
        %v3504 = vmax.f32 %v3503, 0.0
        %v3505 = vld [vmem:[%s11] sm:$0xff]
        %v3506 = vld [vmem:[%s11 + $0x8] sm:$0xff]
        %v3507 = vld [vmem:[%s11 + $0x10] sm:$0xff]
        %v3508 = vld [vmem:[%s11 + $0x18] sm:$0xff]
        %v3509 = vld [vmem:[%s12] sm:$0x1]
        %v3511 = vlaneseq
        %v3512 = vshrl.u32 %v3511, 7
        %v3513 = vsub.s32 0, %v3512
        %v3514 = vrot.slane %v3509, %v3513
        %vm3516 = vcmask 261120
        %v3518 = vsel %vm3516, %v3504, 0
        %3520 = vmatprep.subr.mxu0 0.0
        %3521 = vmatpush1.msra.mxu0 %v3505
        %3522 = vmatprep.subr.mxu0 0.0
        %3523 = vmatpush1.msra.mxu0 %v3506
        %3524 = vmatprep.subr.mxu0 0.0
        %3525 = vmatpush1.msra.mxu0 %v3507
        %3526 = vmatprep.subr.mxu0 0.0
        %3527 = vmatpush1.msra.mxu0 %v3508
        %3528 = vmatprep.subr.mxu0 0.0
        %3529 = vmatpush1.msra.mxu0 0.0
        %3530 = vmatprep.subr.mxu0 0.0
        %3531 = vmatpush1.msra.mxu0 0.0
        %3532 = vmatprep.subr.mxu0 0.0
        %3533 = vmatpush1.msra.mxu0 0.0
        %3534 = vmatprep.subr.mxu0 0.0
        %3535 = vmatpush1.msra.mxu0 0.0
        %3536 = vmatprep.subr.mxu0 0.0
        %3537 = vmatpush1.msra.mxu0 0.0
        %3538 = vmatprep.subr.mxu0 0.0
        %3539 = vmatpush1.msra.mxu0 0.0
        %3540 = vmatprep.subr.mxu0 0.0
        %3541 = vmatpush1.msra.mxu0 0.0
        %3542 = vmatprep.subr.mxu0 0.0
        %3543 = vmatpush1.msra.mxu0 0.0
        %3544 = vmatprep.subr.mxu0 0.0
        %3545 = vmatpush1.msra.mxu0 0.0
        %3546 = vmatprep.subr.mxu0 0.0
        %3547 = vmatpush1.msra.mxu0 0.0
        %3548 = vmatprep.subr.mxu0 0.0
        %3549 = vmatpush1.msra.mxu0 0.0
        %3550 = vmatprep.subr.mxu0 0.0
        %3551 = vmatpush1.msra.mxu0 0.0
        %3552 = vmatprep.subr.mxu0 0.0
        %3553 = vmatpush1.msra.mxu0 0.0
        %3554 = vmatprep.subr.mxu0 0.0
        %3555 = vmatpush1.msra.mxu0 0.0
        %3556 = vmatprep.subr.mxu0 0.0
        %3557 = vmatpush1.msra.mxu0 0.0
        %3558 = vmatprep.subr.mxu0 0.0
        %3559 = vmatpush1.msra.mxu0 0.0
        %3560 = vmatprep.subr.mxu0 0.0
        %3561 = vmatpush1.msra.mxu0 0.0
        %3562 = vmatprep.subr.mxu0 0.0
        %3563 = vmatpush1.msra.mxu0 0.0
        %3564 = vmatprep.subr.mxu0 0.0
        %3565 = vmatpush1.msra.mxu0 0.0
        %3566 = vmatprep.subr.mxu0 0.0
        %3567 = vmatpush1.msra.mxu0 0.0
        %3568 = vmatprep.subr.mxu0 0.0
        %3569 = vmatpush1.msra.mxu0 0.0
        %3570 = vmatprep.subr.mxu0 0.0
        %3571 = vmatpush1.msra.mxu0 0.0
        %3572 = vmatprep.subr.mxu0 0.0
        %3573 = vmatpush1.msra.mxu0 0.0
        %3574 = vmatprep.subr.mxu0 0.0
        %3575 = vmatpush1.msra.mxu0 0.0
        %3576 = vmatprep.subr.mxu0 0.0
        %3577 = vmatpush1.msra.mxu0 0.0
        %3578 = vmatprep.subr.mxu0 0.0
        %3579 = vmatpush1.msra.mxu0 0.0
        %3580 = vmatprep.subr.mxu0 0.0
        %3581 = vmatpush1.msra.mxu0 0.0
        %3582 = vmatprep.subr.mxu0 0.0
        %3583 = vmatpush1.msra.mxu0 0.0
        %3584 = vmatprep.mubr.f32.mxu0 0.0
        %3585 = vmatmul.mubr.f32.gmra.mrb[0].mxu0 %v3518
        %v3586 = vpop.f32.mrb[0].mxu0
        %v3587 = vadd.f32 %v3514, %v3586
        %v3588 = vpop.f32.mrb[0].mxu0
        %3589 = vdwg.mxu0
        %vm3590 = vcmask 74752
        %3591 = vst.msk [vmem:[%s434] sm:$0x3] %vm3590, %v3587
        %s3592 = sand.u32 %s313, 1
        %s3593 = scalar_lea.sflag [#allocation3], %s3592
        %s3594 = sand.u32 %s313, 1
        %s3595 = smul.addr %s3594, 2
        %s3596 = scalar_lea.vmem [#allocation2], %s3595
        // Predicated region
        $region73: #{conv_neural_net_forward.1} parent=71 // pred_check
          %p3597 = pneg %p323
        $region74: #{conv_neural_net_forward.1} parent=71 // pred_check_branch
          %3599 = sbr.rel (%p3597) target = $region76
        $region75: #{conv_neural_net_forward.1} parent=71 // pred_region
          %s3601 = ssub.s32 32, 32
          %3602 = vsyncadd %s3593, %s3601
          %s3603 = smul.addr %s27, 32
          %s3604 = scalar_lea.hbm %s13, %s3603
          %s3606 = sshll.u32 %s3596, 4
          %s3607 = int_to_ptr.vmem [resolvable:$true] %s3606
          %3609 = dma.vmem_to_hbm [thread:$0]  %s3607, 32, %s3604, %s3593
        $region76: #{conv_neural_net_forward.1} parent=71 // pred_fallthru
          _
      $region72: #{conv_neural_net_forward.1} parent=5 // pred_fallthru
        _
      %p3610 = scmp.le.s32.totalorder 2, %s22
      // Predicated region
      $region77: #{conv_neural_net_forward.1} parent=5 // pred_check
        %p3611 = pneg %p3610
      $region78: #{conv_neural_net_forward.1} parent=5 // pred_check_branch
        %3613 = sbr.rel (%p3611) target = $region80
      $region79: #{conv_neural_net_forward.1} parent=5 // pred_region
        %s3614 = ssub.s32 %s22, 2
        // Predicated region
        $region81: #{conv_neural_net_forward.1} parent=79 // pred_check
          %p3615 = pneg %p329
        $region82: #{conv_neural_net_forward.1} parent=79 // pred_check_branch
          %3617 = sbr.rel (%p3615) target = $region84
        $region83: #{conv_neural_net_forward.1} parent=79 // pred_region
          %s3618 = sand.u32 %s314, 1
          %s3619 = scalar_lea.sflag [#allocation3], %s3618
          %s3620 = sand.u32 %s314, 1
          %s3621 = smul.addr %s3620, 2
          %s3622 = scalar_lea.vmem [#allocation2], %s3621
          %3623 = dma.done %s3619, 32
        $region84: #{conv_neural_net_forward.1} parent=79 // pred_fallthru
          _
      $region80: #{conv_neural_net_forward.1} parent=5 // pred_fallthru
        _
    $region6: #{conv_neural_net_forward.1} parent=1 // loop_footer
      %s26 = sadd.s32 1, %s22
    $region7: #{conv_neural_net_forward.1} parent=1 // loop_footer_branch
      %21 = sbr.rel target = $region3
    $region8: #{conv_neural_net_forward.1} parent=1 // loop_exit
      _
    %3624 = vsyncpa [#allocation3], 1
    %s3625 = scalar_lea.sflag [#allocation3], 1
    %3626 = vsyncpa %s3625, 1

</llo_original>
